<compile_context>
chip_gen: v5e
topology: v5e:2x2
jax: 0.10.0
libtpu: 0.0.40
codegen_flags: <defaults>
</compile_context>

<pallas_src>
import jax
import jax.numpy as jnp
import numpy as np
from jax.experimental import pallas as pl
from jax.experimental.pallas import tpu as pltpu

EPS = 1e-5
LANE = 128

_VMEM_BUDGET = None


def _round_up(x, m):
    return (x + m - 1) // m * m


def _vmem_budget_bytes():
    """~75% of physical VMEM, capped at 100 MiB (v5e/v6e: ~96 MiB, v7x: ~48 MiB)."""
    global _VMEM_BUDGET
    if _VMEM_BUDGET is None:
        try:
            cap = int(pltpu.get_tpu_info().vmem_capacity_bytes)
        except Exception:
            cap = 64 * 1024 * 1024          # conservative (v7x-sized) fallback
        _VMEM_BUDGET = max(32 * 1024 * 1024, min(cap * 3 // 4, 100 * 1024 * 1024))
    return _VMEM_BUDGET


def _pick_band_rows(h, w, cmax, cap_bytes):
    """Largest divisor TH of h such that a (TH*w, cmax) f32 accumulator stays under cap.
    Prefers >= 2 row bands so the band grid axis is actually exercised."""
    cands = [d for d in range(1, h + 1) if h % d == 0 and d * w * cmax * 4 <= cap_bytes]
    if not cands:
        return 1
    multi = [d for d in cands if h // d >= 2]
    return max(multi) if multi else max(cands)


# ---------------------------------------------------------------------------
# In-kernel helpers
# ---------------------------------------------------------------------------
def _load_halo_band(plane_ref, h0, th, hdim):
    """(th+2, W, C) band = rows [h0-1, h0+th] of the unpadded resident plane.
    Out-of-image rows are read with a clamped start and MUST be masked by the caller."""
    top = plane_ref[0, pl.ds(jnp.maximum(h0 - 1, 0), 1), :, :]
    mid = plane_ref[0, pl.ds(h0, th), :, :]
    bot = plane_ref[0, pl.ds(jnp.minimum(h0 + th, hdim - 1), 1), :, :]
    return jnp.concatenate([top, mid, bot], axis=0)


def _row_valid_mask(h0, th, hdim):
    """(th+2, 1, 1) bool: True where the band row is a real image row (conv zero pad)."""
    g = jax.lax.broadcasted_iota(jnp.int32, (th + 2, 1, 1), 0) + (h0 - 1)
    return (g >= 0) & (g <= hdim - 1)


def _conv3x3_band(band, w_ref, th, wdim, cdim, coutp):
    """3x3 conv over a (th+2, wdim, cdim) bf16 band whose out-of-image rows are already
    zero.  dy taps are cheap leading-dim slices; dx=+/-1 taps are built with a zero
    column (conv zero padding); accumulation in f32 on the MXU.
    Returns a (th*wdim, coutp) f32 accumulator."""
    zcol = jnp.zeros((th, 1, cdim), band.dtype)
    acc = jnp.zeros((th * wdim, coutp), jnp.float32)
    for dy in range(3):
        rows = band[dy:dy + th]                                   # (th, wdim, cdim)
        for dx in range(3):
            if dx == 0:          # output col s reads col s-1; col 0 <- 0
                tap = jnp.concatenate([zcol, rows[:, :wdim - 1, :]], axis=1)
            elif dx == 1:        # centre tap: no shift, no copy
                tap = rows
            else:                # output col s reads col s+1; col wdim-1 <- 0
                tap = jnp.concatenate([rows[:, 1:, :], zcol], axis=1)
            acc = acc + jnp.dot(tap.reshape(th * wdim, cdim), w_ref[3 * dy + dx],
                                preferred_element_type=jnp.float32)
    # TODO(synk): v6e/v7x MXU fill — concatenate the 3 dx taps along K (K=3*cdim) per dy
    # group, or move the shifted-tap data movement onto the XLU with pltpu.roll once
    # verified on hardware; K=cdim already fills the v5e 128-deep MXU.
    return acc


# ---------------------------------------------------------------------------
# Kernels
# ---------------------------------------------------------------------------
def _make_conv1_kernel(th, wdim, cp, coutp, hdim):
    """conv1 over the bf16 input band + BN1 partial stats (sum, sum of squares)."""

    def kernel(x_ref, w1_ref, y1_ref, s_ref, q_ref):
        h0 = pl.multiple_of(pl.program_id(1) * th, th)
        band = _load_halo_band(x_ref, h0, th, hdim)                        # (th+2,W,cp) bf16
        band = jnp.where(_row_valid_mask(h0, th, hdim), band, jnp.zeros_like(band))
        acc = _conv3x3_band(band, w1_ref, th, wdim, cp, coutp)             # (th*W,coutp) f32
        y1_ref[0] = acc.reshape(th, wdim, coutp).astype(jnp.bfloat16)
        s_ref[0, 0] = jnp.sum(acc, axis=0, keepdims=True)
        q_ref[0, 0] = jnp.sum(acc * acc, axis=0, keepdims=True)

    return kernel


def _make_conv2_kernel(th, wdim, coutp, hdim):
    """fused BN1 + ReLU -> conv2 + BN2 partial stats (reads unpadded bf16 y1)."""

    def kernel(y1_ref, w2_ref, sc_ref, sh_ref, y2_ref, s_ref, q_ref):
        h0 = pl.multiple_of(pl.program_id(1) * th, th)
        band = _load_halo_band(y1_ref, h0, th, hdim).astype(jnp.float32)   # (th+2,W,coutp)
        sc = sc_ref[...].reshape(1, 1, coutp)
        sh = sh_ref[...].reshape(1, 1, coutp)
        hband = jnp.maximum(band * sc + sh, 0.0)                           # BN1 + ReLU (f32)
        hband = jnp.where(_row_valid_mask(h0, th, hdim), hband, 0.0)       # conv zero pad
        acc = _conv3x3_band(hband.astype(jnp.bfloat16), w2_ref, th, wdim, coutp, coutp)
        y2_ref[0] = acc.reshape(th, wdim, coutp).astype(jnp.bfloat16)
        s_ref[0, 0] = jnp.sum(acc, axis=0, keepdims=True)
        q_ref[0, 0] = jnp.sum(acc * acc, axis=0, keepdims=True)

    return kernel


def _make_finalize_kernel(has_proj, th, wdim, cp, coutp):
    """BN2 apply + residual (re-read input tile / recomputed 1x1 projection) + ReLU."""

    def kernel(*refs):
        if has_proj:
            y2_ref, xin_ref, wr_ref, br_ref, sc_ref, sh_ref, o_ref = refs
        else:
            y2_ref, xin_ref, sc_ref, sh_ref, o_ref = refs
        sc = sc_ref[...].reshape(1, 1, coutp)
        sh = sh_ref[...].reshape(1, 1, coutp)
        y2 = y2_ref[0].astype(jnp.float32)                                 # (th, W, coutp)
        if has_proj:
            xin = xin_ref[0].reshape(th * wdim, cp)                        # bf16 input tile
            res = jnp.dot(xin, wr_ref[...], preferred_element_type=jnp.float32)
            res = (res + br_ref[...]).reshape(th, wdim, coutp)
        else:
            res = xin_ref[0].astype(jnp.float32)                           # identity skip
        o_ref[0] = jnp.maximum(y2 * sc + sh + res, 0.0)

    return kernel


# ---------------------------------------------------------------------------
# Parameters (deterministic synthetic init; shapes from the module __init__)
# ---------------------------------------------------------------------------
def init_params(key, cin, cout):
    ks = jax.random.split(key, 10)
    params = {
        "w1": 0.2 * jax.random.normal(ks[0], (3, 3, cin, cout), jnp.float32),
        "b1": 0.1 * jax.random.normal(ks[1], (cout,), jnp.float32),
        "g1": 1.0 + 0.1 * jax.random.normal(ks[2], (cout,), jnp.float32),
        "beta1": 0.1 * jax.random.normal(ks[3], (cout,), jnp.float32),
        "w2": 0.2 * jax.random.normal(ks[4], (3, 3, cout, cout), jnp.float32),
        "b2": 0.1 * jax.random.normal(ks[5], (cout,), jnp.float32),
        "g2": 1.0 + 0.1 * jax.random.normal(ks[6], (cout,), jnp.float32),
        "beta2": 0.1 * jax.random.normal(ks[7], (cout,), jnp.float32),
    }
    if cin != cout:
        params["wr"] = 0.2 * jax.random.normal(ks[8], (cin, cout), jnp.float32)
        params["br"] = 0.1 * jax.random.normal(ks[9], (cout,), jnp.float32)
    return params


# ---------------------------------------------------------------------------
# Forward pass: NCHW in, NCHW out — same contract as the PyTorch module
# ---------------------------------------------------------------------------
@jax.jit
def residual_block_forward(x_nchw, params):
    cout = params["w1"].shape[-1]
    n, cin, h, w = x_nchw.shape
    cp = _round_up(cin, LANE)
    coutp = _round_up(cout, LANE)
    has_proj = cin != cout

    vmem_limit = _vmem_budget_bytes()
    th = _pick_band_rows(h, w, max(cp, coutp), cap_bytes=max(2 << 20, vmem_limit // 12))
    hb = h // th
    cnt = float(n * h * w)

    cparams = pltpu.CompilerParams(
        dimension_semantics=("parallel", "parallel"),   # batch x row-band, both independent
        vmem_limit_bytes=vmem_limit,
    )

    # --- input packing: one fused pass (NCHW->NHWC transpose + bf16 cast + channel pad) ---
    xin = jnp.pad(jnp.transpose(x_nchw, (0, 2, 3, 1)).astype(jnp.bfloat16),
                  ((0, 0), (0, 0), (0, 0), (0, cp - cin)))

    # --- parameter packing: channel-pad to lane multiples, bf16 matmul operands ---
    w1 = jnp.zeros((3, 3, cp, coutp), jnp.float32).at[:, :, :cin, :cout].set(params["w1"])
    w1 = w1.reshape(9, cp, coutp).astype(jnp.bfloat16)
    w2 = jnp.zeros((3, 3, coutp, coutp), jnp.float32).at[:, :, :cout, :cout].set(params["w2"])
    w2 = w2.reshape(9, coutp, coutp).astype(jnp.bfloat16)
    g1 = jnp.zeros((1, coutp), jnp.float32).at[:, :cout].set(params["g1"])
    be1 = jnp.zeros((1, coutp), jnp.float32).at[:, :cout].set(params["beta1"])
    g2 = jnp.zeros((1, coutp), jnp.float32).at[:, :cout].set(params["g2"])
    be2 = jnp.zeros((1, coutp), jnp.float32).at[:, :cout].set(params["beta2"])
    # NOTE: conv biases b1/b2 are intentionally not used: train-mode BN subtracts the
    # batch mean, so a pre-BN bias cancels exactly.

    grid = (n, hb)
    # TODO(synk): for very large H*W*C the whole-plane-resident input blocks below should
    # become banded halo blocks / manual make_async_copy fetches (first limit: v7x 64 MiB),
    # and the constant-index weight specs could be single-buffered (pipeline_mode).
    plane_x_spec = pl.BlockSpec((1, h, w, cp), lambda i, j: (i, 0, 0, 0))
    plane_y1_spec = pl.BlockSpec((1, h, w, coutp), lambda i, j: (i, 0, 0, 0))
    xin_tile_spec = pl.BlockSpec((1, th, w, cp), lambda i, j: (i, j, 0, 0))
    out_tile_spec = pl.BlockSpec((1, th, w, coutp), lambda i, j: (i, j, 0, 0))
    stat_spec = pl.BlockSpec((1, 1, 1, coutp), lambda i, j: (i, j, 0, 0))
    vec_spec = pl.BlockSpec((1, coutp), lambda i, j: (0, 0))
    w1_spec = pl.BlockSpec((9, cp, coutp), lambda i, j: (0, 0, 0))
    w2_spec = pl.BlockSpec((9, coutp, coutp), lambda i, j: (0, 0, 0))

    # ---------------- kernel 1: conv1 + BN1 partial stats (y1 stored bf16) -----------
    y1, s1, q1 = pl.pallas_call(
        _make_conv1_kernel(th, w, cp, coutp, h),
        grid=grid,
        in_specs=[plane_x_spec, w1_spec],
        out_specs=(out_tile_spec, stat_spec, stat_spec),
        out_shape=(
            jax.ShapeDtypeStruct((n, h, w, coutp), jnp.bfloat16),   # pre-BN conv1 (bf16)
            jax.ShapeDtypeStruct((n, hb, 1, coutp), jnp.float32),   # per-tile sum
            jax.ShapeDtypeStruct((n, hb, 1, coutp), jnp.float32),   # per-tile sum of squares
        ),
        compiler_params=cparams,
    )(xin, w1)

    # fold BN1 partials -> per-channel affine (tiny per-channel reduction)
    mean1 = jnp.sum(s1, axis=(0, 1)) / cnt
    var1 = jnp.maximum(jnp.sum(q1, axis=(0, 1)) / cnt - mean1 * mean1, 0.0)
    sc1 = g1 * jax.lax.rsqrt(var1 + EPS)
    sh1 = be1 - mean1 * sc1

    # ---------------- kernel 2: fused BN1+ReLU -> conv2 + BN2 partial stats ----------
    y2, s2, q2 = pl.pallas_call(
        _make_conv2_kernel(th, w, coutp, h),
        grid=grid,
        in_specs=[plane_y1_spec, w2_spec, vec_spec, vec_spec],
        out_specs=(out_tile_spec, stat_spec, stat_spec),
        out_shape=(
            jax.ShapeDtypeStruct((n, h, w, coutp), jnp.bfloat16),   # pre-BN conv2 (bf16)
            jax.ShapeDtypeStruct((n, hb, 1, coutp), jnp.float32),
            jax.ShapeDtypeStruct((n, hb, 1, coutp), jnp.float32),
        ),
        compiler_params=cparams,
    )(y1, w2, sc1, sh1)

    mean2 = jnp.sum(s2, axis=(0, 1)) / cnt
    var2 = jnp.maximum(jnp.sum(q2, axis=(0, 1)) / cnt - mean2 * mean2, 0.0)
    sc2 = g2 * jax.lax.rsqrt(var2 + EPS)
    sh2 = be2 - mean2 * sc2

    # ---------------- kernel 3: BN2 apply + residual + ReLU --------------------------
    k3_in = [y2, xin]
    k3_specs = [out_tile_spec, xin_tile_spec]
    if has_proj:
        wr = jnp.zeros((cp, coutp), jnp.float32).at[:cin, :cout].set(params["wr"])
        br = jnp.zeros((1, coutp), jnp.float32).at[:, :cout].set(params["br"])
        k3_in += [wr.astype(jnp.bfloat16), br]
        k3_specs += [pl.BlockSpec((cp, coutp), lambda i, j: (0, 0)), vec_spec]
    k3_in += [sc2, sh2]
    k3_specs += [vec_spec, vec_spec]

    out = pl.pallas_call(
        _make_finalize_kernel(has_proj, th, w, cp, coutp),
        grid=grid,
        in_specs=k3_specs,
        out_specs=out_tile_spec,
        out_shape=jax.ShapeDtypeStruct((n, h, w, coutp), jnp.float32),
        compiler_params=cparams,
    )(*k3_in)

    return jnp.transpose(out[..., :cout], (0, 3, 1, 2))             # NHWC -> NCHW


# ---------------------------------------------------------------------------
# Pure-JAX reference (mirrors the bf16 matmul-operand casts for a tight check)
# ---------------------------------------------------------------------------
def _reference(x_nchw, params):
    x = jnp.transpose(x_nchw, (0, 2, 3, 1)).astype(jnp.float32)
    cin = x.shape[-1]
    cout = params["w1"].shape[-1]

    def conv3(xx, wgt, b):
        y = jax.lax.conv_general_dilated(
            xx.astype(jnp.bfloat16), wgt.astype(jnp.bfloat16),
            window_strides=(1, 1), padding="SAME",
            dimension_numbers=("NHWC", "HWIO", "NHWC"),
            preferred_element_type=jnp.float32)
        return y + b.reshape(1, 1, 1, -1)

    def bn(y, g, beta):
        mean = y.mean(axis=(0, 1, 2))
        var = jnp.square(y - mean).mean(axis=(0, 1, 2))
        return (y - mean) * jax.lax.rsqrt(var + EPS) * g + beta

    hdn = jax.nn.relu(bn(conv3(x, params["w1"], params["b1"]), params["g1"], params["beta1"]))
    out = bn(conv3(hdn, params["w2"], params["b2"]), params["g2"], params["beta2"])
    if cin != cout:
        resid = jnp.einsum("nhwc,cd->nhwd", x.astype(jnp.bfloat16),
                           params["wr"].astype(jnp.bfloat16),
                           preferred_element_type=jnp.float32)
        resid = resid + params["br"].reshape(1, 1, 1, -1)
    else:
        resid = x.astype(jnp.bfloat16).astype(jnp.float32)
    out = jax.nn.relu(out + resid)
    return jnp.transpose(out, (0, 3, 1, 2))


if __name__ == "__main__":
    key = jax.random.PRNGKey(0)
    k_x, k_p, k_p2 = jax.random.split(key, 3)

    # projection-skip case (in_channels != out_channels -> 1x1 residual conv)
    N, CIN, COUT, H, W = 2, 4, 8, 16, 16
    x = jax.random.normal(k_x, (N, CIN, H, W), jnp.float32)
    params = init_params(k_p, CIN, COUT)
    out = jax.block_until_ready(residual_block_forward(x, params))
    ref = jax.block_until_ready(_reference(x, params))
    assert out.shape == (N, COUT, H, W), out.shape
    # tolerance accounts for bf16 storage of the y1/y2 intermediates (kernel) vs f32 (ref)
    np.testing.assert_allclose(np.asarray(out), np.asarray(ref), rtol=2e-2, atol=2e-2)

    # identity-skip case (in_channels == out_channels -> no projection matmul)
    params_id = init_params(k_p2, COUT, COUT)
    x2 = jax.random.normal(k_x, (N, COUT, H, W), jnp.float32)
    out2 = jax.block_until_ready(residual_block_forward(x2, params_id))
    ref2 = jax.block_until_ready(_reference(x2, params_id))
    np.testing.assert_allclose(np.asarray(out2), np.asarray(ref2), rtol=2e-2, atol=2e-2)

    print("KERNEL_OK")
</pallas_src>

<mosaic_0001>
module attributes {stable_mosaic.version = 11 : i64} {
  func.func @kernel(%arg0: i32, %arg1: i32, %arg2: memref<1x16x16x128xbf16, #tpu.memory_space<vmem>>, %arg3: memref<9x128x128xbf16, #tpu.memory_space<vmem>>, %arg4: memref<1x8x16x128xbf16, #tpu.memory_space<vmem>>, %arg5: memref<1x1x1x128xf32, #tpu.memory_space<vmem>>, %arg6: memref<1x1x1x128xf32, #tpu.memory_space<vmem>>) attributes {dimension_semantics = [#tpu.dimension_semantics<parallel>, #tpu.dimension_semantics<parallel>], iteration_bounds = array<i64: 2, 2>, scalar_prefetch = 0 : i64, scratch_operands = 0 : i64, tpu.core_type = #tpu.core_type<tc>, window_params = [{transform_indices = @transform_0, window_bounds = array<i64: 1, 16, 16, 128>}, {pipeline_mode = #tpu.pipeline_mode<synchronous>, transform_indices = @transform_1, window_bounds = array<i64: 9, 128, 128>}, {transform_indices = @transform_2, window_bounds = array<i64: 1, 8, 16, 128>}, {transform_indices = @transform_3, window_bounds = array<i64: 1, 1, 1, 128>}, {transform_indices = @transform_4, window_bounds = array<i64: 1, 1, 1, 128>}]} {
    %c8_i32 = arith.constant 8 : i32
    %0 = arith.muli %arg1, %c8_i32 : i32
    %1 = tpu.assume_multiple %0, 8 : i32
    %c1_i32 = arith.constant 1 : i32
    %2 = arith.subi %1, %c1_i32 : i32
    %c0_i32 = arith.constant 0 : i32
    %3 = arith.maxsi %2, %c0_i32 : i32
    %c0 = arith.constant 0 : index
    %4 = arith.index_cast %3 : i32 to index
    %c0_0 = arith.constant 0 : index
    %c0_1 = arith.constant 0 : index
    %5 = vector.load %arg2[%c0, %4, %c0_0, %c0_1] : memref<1x16x16x128xbf16, #tpu.memory_space<vmem>>, vector<1x1x16x128xbf16>
    %6 = vector.shape_cast %5 : vector<1x1x16x128xbf16> to vector<1x16x128xbf16>
    %c0_2 = arith.constant 0 : index
    %7 = arith.index_cast %1 : i32 to index
    %c0_3 = arith.constant 0 : index
    %c0_4 = arith.constant 0 : index
    %8 = vector.load %arg2[%c0_2, %7, %c0_3, %c0_4] : memref<1x16x16x128xbf16, #tpu.memory_space<vmem>>, vector<1x8x16x128xbf16>
    %9 = vector.shape_cast %8 : vector<1x8x16x128xbf16> to vector<8x16x128xbf16>
    %c8_i32_5 = arith.constant 8 : i32
    %10 = arith.addi %1, %c8_i32_5 : i32
    %c15_i32 = arith.constant 15 : i32
    %11 = arith.minsi %10, %c15_i32 : i32
    %c0_6 = arith.constant 0 : index
    %12 = arith.index_cast %11 : i32 to index
    %c0_7 = arith.constant 0 : index
    %c0_8 = arith.constant 0 : index
    %13 = vector.load %arg2[%c0_6, %12, %c0_7, %c0_8] : memref<1x16x16x128xbf16, #tpu.memory_space<vmem>>, vector<1x1x16x128xbf16>
    %14 = vector.shape_cast %13 : vector<1x1x16x128xbf16> to vector<1x16x128xbf16>
    %15 = tpu.concatenate %6, %9, %14 in 0 : vector<1x16x128xbf16>, vector<8x16x128xbf16>, vector<1x16x128xbf16> -> vector<10x16x128xbf16>
    %16 = tpu.iota {dimensions = array<i32: 0>} : vector<10x1x1xi32>
    %c1_i32_9 = arith.constant 1 : i32
    %17 = arith.subi %1, %c1_i32_9 : i32
    %18 = vector.broadcast %17 : i32 to vector<10x1x1xi32>
    %19 = arith.addi %16, %18 : vector<10x1x1xi32>
    %c0_i32_10 = arith.constant 0 : i32
    %20 = vector.broadcast %c0_i32_10 : i32 to vector<10x1x1xi32>
    %21 = arith.cmpi sge, %19, %20 : vector<10x1x1xi32>
    %c15_i32_11 = arith.constant 15 : i32
    %22 = vector.broadcast %c15_i32_11 : i32 to vector<10x1x1xi32>
    %23 = arith.cmpi sle, %19, %22 : vector<10x1x1xi32>
    %24 = arith.andi %21, %23 : vector<10x1x1xi1>
    %cst = arith.constant 0.000000e+00 : bf16
    %25 = vector.broadcast %cst : bf16 to vector<10x16x128xbf16>
    %26 = vector.shape_cast %24 : vector<10x1x1xi1> to vector<10x1x1xi1>
    %27 = vector.broadcast %26 : vector<10x1x1xi1> to vector<10x16x128xi1>
    %28 = arith.select %27, %15, %25 : vector<10x16x128xi1>, vector<10x16x128xbf16>
    %cst_12 = arith.constant 0.000000e+00 : bf16
    %29 = vector.broadcast %cst_12 : bf16 to vector<8x1x128xbf16>
    %cst_13 = arith.constant 0.000000e+00 : f32
    %30 = vector.broadcast %cst_13 : f32 to vector<128x128xf32>
    %31 = vector.extract_strided_slice %28 {offsets = [0, 0, 0], sizes = [8, 16, 128], strides = [1, 1, 1]} : vector<10x16x128xbf16> to vector<8x16x128xbf16>
    %32 = vector.extract_strided_slice %31 {offsets = [0, 0, 0], sizes = [8, 15, 128], strides = [1, 1, 1]} : vector<8x16x128xbf16> to vector<8x15x128xbf16>
    %33 = tpu.concatenate %29, %32 in 1 : vector<8x1x128xbf16>, vector<8x15x128xbf16> -> vector<8x16x128xbf16>
    %34 = vector.shape_cast %33 : vector<8x16x128xbf16> to vector<128x128xbf16>
    %c0_14 = arith.constant 0 : index
    %c0_15 = arith.constant 0 : index
    %c0_16 = arith.constant 0 : index
    %35 = vector.load %arg3[%c0_14, %c0_15, %c0_16] : memref<9x128x128xbf16, #tpu.memory_space<vmem>>, vector<1x128x128xbf16>
    %36 = vector.shape_cast %35 : vector<1x128x128xbf16> to vector<128x128xbf16>
    %cst_17 = arith.constant dense<0.000000e+00> : vector<128x128xf32>
    %37 = tpu.matmul %34, %36, %cst_17 {dimension_numbers = #tpu.dot_dimension_numbers<[1], [0], [0], [1], [0, 0, 1, 1], [], []>} : vector<128x128xbf16>, vector<128x128xbf16>, vector<128x128xf32> -> vector<128x128xf32>
    %38 = arith.addf %30, %37 : vector<128x128xf32>
    %39 = vector.shape_cast %31 : vector<8x16x128xbf16> to vector<128x128xbf16>
    %c1 = arith.constant 1 : index
    %c0_18 = arith.constant 0 : index
    %c0_19 = arith.constant 0 : index
    %40 = vector.load %arg3[%c1, %c0_18, %c0_19] : memref<9x128x128xbf16, #tpu.memory_space<vmem>>, vector<1x128x128xbf16>
    %41 = vector.shape_cast %40 : vector<1x128x128xbf16> to vector<128x128xbf16>
    %cst_20 = arith.constant dense<0.000000e+00> : vector<128x128xf32>
    %42 = tpu.matmul %39, %41, %cst_20 {dimension_numbers = #tpu.dot_dimension_numbers<[1], [0], [0], [1], [0, 0, 1, 1], [], []>} : vector<128x128xbf16>, vector<128x128xbf16>, vector<128x128xf32> -> vector<128x128xf32>
    %43 = arith.addf %38, %42 : vector<128x128xf32>
    %44 = vector.extract_strided_slice %31 {offsets = [0, 1, 0], sizes = [8, 15, 128], strides = [1, 1, 1]} : vector<8x16x128xbf16> to vector<8x15x128xbf16>
    %45 = tpu.concatenate %44, %29 in 1 : vector<8x15x128xbf16>, vector<8x1x128xbf16> -> vector<8x16x128xbf16>
    %46 = vector.shape_cast %45 : vector<8x16x128xbf16> to vector<128x128xbf16>
    %c2 = arith.constant 2 : index
    %c0_21 = arith.constant 0 : index
    %c0_22 = arith.constant 0 : index
    %47 = vector.load %arg3[%c2, %c0_21, %c0_22] : memref<9x128x128xbf16, #tpu.memory_space<vmem>>, vector<1x128x128xbf16>
    %48 = vector.shape_cast %47 : vector<1x128x128xbf16> to vector<128x128xbf16>
    %cst_23 = arith.constant dense<0.000000e+00> : vector<128x128xf32>
    %49 = tpu.matmul %46, %48, %cst_23 {dimension_numbers = #tpu.dot_dimension_numbers<[1], [0], [0], [1], [0, 0, 1, 1], [], []>} : vector<128x128xbf16>, vector<128x128xbf16>, vector<128x128xf32> -> vector<128x128xf32>
    %50 = arith.addf %43, %49 : vector<128x128xf32>
    %51 = vector.extract_strided_slice %28 {offsets = [1, 0, 0], sizes = [8, 16, 128], strides = [1, 1, 1]} : vector<10x16x128xbf16> to vector<8x16x128xbf16>
    %52 = vector.extract_strided_slice %51 {offsets = [0, 0, 0], sizes = [8, 15, 128], strides = [1, 1, 1]} : vector<8x16x128xbf16> to vector<8x15x128xbf16>
    %53 = tpu.concatenate %29, %52 in 1 : vector<8x1x128xbf16>, vector<8x15x128xbf16> -> vector<8x16x128xbf16>
    %54 = vector.shape_cast %53 : vector<8x16x128xbf16> to vector<128x128xbf16>
    %c3 = arith.constant 3 : index
    %c0_24 = arith.constant 0 : index
    %c0_25 = arith.constant 0 : index
    %55 = vector.load %arg3[%c3, %c0_24, %c0_25] : memref<9x128x128xbf16, #tpu.memory_space<vmem>>, vector<1x128x128xbf16>
    %56 = vector.shape_cast %55 : vector<1x128x128xbf16> to vector<128x128xbf16>
    %cst_26 = arith.constant dense<0.000000e+00> : vector<128x128xf32>
    %57 = tpu.matmul %54, %56, %cst_26 {dimension_numbers = #tpu.dot_dimension_numbers<[1], [0], [0], [1], [0, 0, 1, 1], [], []>} : vector<128x128xbf16>, vector<128x128xbf16>, vector<128x128xf32> -> vector<128x128xf32>
    %58 = arith.addf %50, %57 : vector<128x128xf32>
    %59 = vector.shape_cast %51 : vector<8x16x128xbf16> to vector<128x128xbf16>
    %c4 = arith.constant 4 : index
    %c0_27 = arith.constant 0 : index
    %c0_28 = arith.constant 0 : index
    %60 = vector.load %arg3[%c4, %c0_27, %c0_28] : memref<9x128x128xbf16, #tpu.memory_space<vmem>>, vector<1x128x128xbf16>
    %61 = vector.shape_cast %60 : vector<1x128x128xbf16> to vector<128x128xbf16>
    %cst_29 = arith.constant dense<0.000000e+00> : vector<128x128xf32>
    %62 = tpu.matmul %59, %61, %cst_29 {dimension_numbers = #tpu.dot_dimension_numbers<[1], [0], [0], [1], [0, 0, 1, 1], [], []>} : vector<128x128xbf16>, vector<128x128xbf16>, vector<128x128xf32> -> vector<128x128xf32>
    %63 = arith.addf %58, %62 : vector<128x128xf32>
    %64 = vector.extract_strided_slice %51 {offsets = [0, 1, 0], sizes = [8, 15, 128], strides = [1, 1, 1]} : vector<8x16x128xbf16> to vector<8x15x128xbf16>
    %65 = tpu.concatenate %64, %29 in 1 : vector<8x15x128xbf16>, vector<8x1x128xbf16> -> vector<8x16x128xbf16>
    %66 = vector.shape_cast %65 : vector<8x16x128xbf16> to vector<128x128xbf16>
    %c5 = arith.constant 5 : index
    %c0_30 = arith.constant 0 : index
    %c0_31 = arith.constant 0 : index
    %67 = vector.load %arg3[%c5, %c0_30, %c0_31] : memref<9x128x128xbf16, #tpu.memory_space<vmem>>, vector<1x128x128xbf16>
    %68 = vector.shape_cast %67 : vector<1x128x128xbf16> to vector<128x128xbf16>
    %cst_32 = arith.constant dense<0.000000e+00> : vector<128x128xf32>
    %69 = tpu.matmul %66, %68, %cst_32 {dimension_numbers = #tpu.dot_dimension_numbers<[1], [0], [0], [1], [0, 0, 1, 1], [], []>} : vector<128x128xbf16>, vector<128x128xbf16>, vector<128x128xf32> -> vector<128x128xf32>
    %70 = arith.addf %63, %69 : vector<128x128xf32>
    %71 = vector.extract_strided_slice %28 {offsets = [2, 0, 0], sizes = [8, 16, 128], strides = [1, 1, 1]} : vector<10x16x128xbf16> to vector<8x16x128xbf16>
    %72 = vector.extract_strided_slice %71 {offsets = [0, 0, 0], sizes = [8, 15, 128], strides = [1, 1, 1]} : vector<8x16x128xbf16> to vector<8x15x128xbf16>
    %73 = tpu.concatenate %29, %72 in 1 : vector<8x1x128xbf16>, vector<8x15x128xbf16> -> vector<8x16x128xbf16>
    %74 = vector.shape_cast %73 : vector<8x16x128xbf16> to vector<128x128xbf16>
    %c6 = arith.constant 6 : index
    %c0_33 = arith.constant 0 : index
    %c0_34 = arith.constant 0 : index
    %75 = vector.load %arg3[%c6, %c0_33, %c0_34] : memref<9x128x128xbf16, #tpu.memory_space<vmem>>, vector<1x128x128xbf16>
    %76 = vector.shape_cast %75 : vector<1x128x128xbf16> to vector<128x128xbf16>
    %cst_35 = arith.constant dense<0.000000e+00> : vector<128x128xf32>
    %77 = tpu.matmul %74, %76, %cst_35 {dimension_numbers = #tpu.dot_dimension_numbers<[1], [0], [0], [1], [0, 0, 1, 1], [], []>} : vector<128x128xbf16>, vector<128x128xbf16>, vector<128x128xf32> -> vector<128x128xf32>
    %78 = arith.addf %70, %77 : vector<128x128xf32>
    %79 = vector.shape_cast %71 : vector<8x16x128xbf16> to vector<128x128xbf16>
    %c7 = arith.constant 7 : index
    %c0_36 = arith.constant 0 : index
    %c0_37 = arith.constant 0 : index
    %80 = vector.load %arg3[%c7, %c0_36, %c0_37] : memref<9x128x128xbf16, #tpu.memory_space<vmem>>, vector<1x128x128xbf16>
    %81 = vector.shape_cast %80 : vector<1x128x128xbf16> to vector<128x128xbf16>
    %cst_38 = arith.constant dense<0.000000e+00> : vector<128x128xf32>
    %82 = tpu.matmul %79, %81, %cst_38 {dimension_numbers = #tpu.dot_dimension_numbers<[1], [0], [0], [1], [0, 0, 1, 1], [], []>} : vector<128x128xbf16>, vector<128x128xbf16>, vector<128x128xf32> -> vector<128x128xf32>
    %83 = arith.addf %78, %82 : vector<128x128xf32>
    %84 = vector.extract_strided_slice %71 {offsets = [0, 1, 0], sizes = [8, 15, 128], strides = [1, 1, 1]} : vector<8x16x128xbf16> to vector<8x15x128xbf16>
    %85 = tpu.concatenate %84, %29 in 1 : vector<8x15x128xbf16>, vector<8x1x128xbf16> -> vector<8x16x128xbf16>
    %86 = vector.shape_cast %85 : vector<8x16x128xbf16> to vector<128x128xbf16>
    %c8 = arith.constant 8 : index
    %c0_39 = arith.constant 0 : index
    %c0_40 = arith.constant 0 : index
    %87 = vector.load %arg3[%c8, %c0_39, %c0_40] : memref<9x128x128xbf16, #tpu.memory_space<vmem>>, vector<1x128x128xbf16>
    %88 = vector.shape_cast %87 : vector<1x128x128xbf16> to vector<128x128xbf16>
    %cst_41 = arith.constant dense<0.000000e+00> : vector<128x128xf32>
    %89 = tpu.matmul %86, %88, %cst_41 {dimension_numbers = #tpu.dot_dimension_numbers<[1], [0], [0], [1], [0, 0, 1, 1], [], []>} : vector<128x128xbf16>, vector<128x128xbf16>, vector<128x128xf32> -> vector<128x128xf32>
    %90 = arith.addf %83, %89 : vector<128x128xf32>
    %91 = vector.shape_cast %90 : vector<128x128xf32> to vector<8x16x128xf32>
    %92 = arith.truncf %91 : vector<8x16x128xf32> to vector<8x16x128xbf16>
    %c0_42 = arith.constant 0 : index
    %c0_43 = arith.constant 0 : index
    %c0_44 = arith.constant 0 : index
    %c0_45 = arith.constant 0 : index
    %93 = vector.load %arg4[%c0_42, %c0_43, %c0_44, %c0_45] : memref<1x8x16x128xbf16, #tpu.memory_space<vmem>>, vector<1x8x16x128xbf16>
    %94 = vector.shape_cast %93 : vector<1x8x16x128xbf16> to vector<8x16x128xbf16>
    %95 = vector.shape_cast %92 : vector<8x16x128xbf16> to vector<1x8x16x128xbf16>
    tpu.vector_store %arg4[%c0_42, %c0_43, %c0_44, %c0_45], %95 {strides = array<i32>} : memref<1x8x16x128xbf16, #tpu.memory_space<vmem>>, vector<1x8x16x128xbf16>,
    %cst_46 = arith.constant dense<0.000000e+00> : vector<128xf32>
    %96 = vector.multi_reduction <add>, %90, %cst_46 [0] : vector<128x128xf32> to vector<128xf32>
    %97 = vector.shape_cast %96 : vector<128xf32> to vector<1x128xf32>
    %c0_47 = arith.constant 0 : index
    %c0_48 = arith.constant 0 : index
    %c0_49 = arith.constant 0 : index
    %c0_50 = arith.constant 0 : index
    %98 = vector.load %arg5[%c0_47, %c0_48, %c0_49, %c0_50] : memref<1x1x1x128xf32, #tpu.memory_space<vmem>>, vector<1x1x1x128xf32>
    %99 = vector.shape_cast %98 : vector<1x1x1x128xf32> to vector<1x128xf32>
    %100 = vector.shape_cast %97 : vector<1x128xf32> to vector<1x1x1x128xf32>
    tpu.vector_store %arg5[%c0_47, %c0_48, %c0_49, %c0_50], %100 {strides = array<i32>} : memref<1x1x1x128xf32, #tpu.memory_space<vmem>>, vector<1x1x1x128xf32>,
    %101 = arith.mulf %90, %90 : vector<128x128xf32>
    %cst_51 = arith.constant dense<0.000000e+00> : vector<128xf32>
    %102 = vector.multi_reduction <add>, %101, %cst_51 [0] : vector<128x128xf32> to vector<128xf32>
    %103 = vector.shape_cast %102 : vector<128xf32> to vector<1x128xf32>
    %c0_52 = arith.constant 0 : index
    %c0_53 = arith.constant 0 : index
    %c0_54 = arith.constant 0 : index
    %c0_55 = arith.constant 0 : index
    %104 = vector.load %arg6[%c0_52, %c0_53, %c0_54, %c0_55] : memref<1x1x1x128xf32, #tpu.memory_space<vmem>>, vector<1x1x1x128xf32>
    %105 = vector.shape_cast %104 : vector<1x1x1x128xf32> to vector<1x128xf32>
    %106 = vector.shape_cast %103 : vector<1x128xf32> to vector<1x1x1x128xf32>
    tpu.vector_store %arg6[%c0_52, %c0_53, %c0_54, %c0_55], %106 {strides = array<i32>} : memref<1x1x1x128xf32, #tpu.memory_space<vmem>>, vector<1x1x1x128xf32>,
    return
  }
  func.func @transform_0(%arg0: i32, %arg1: i32) -> (i32, i32, i32, i32) {
    %c0_i32 = arith.constant 0 : i32
    %c0_i32_0 = arith.constant 0 : i32
    %c0_i32_1 = arith.constant 0 : i32
    %c0_i32_2 = arith.constant 0 : i32
    return %arg0, %c0_i32, %c0_i32_0, %c0_i32_1 : i32, i32, i32, i32
  }
  func.func @transform_1(%arg0: i32, %arg1: i32) -> (i32, i32, i32) {
    %c0_i32 = arith.constant 0 : i32
    %c0_i32_0 = arith.constant 0 : i32
    %c0_i32_1 = arith.constant 0 : i32
    %c0_i32_2 = arith.constant 0 : i32
    return %c0_i32, %c0_i32_0, %c0_i32_1 : i32, i32, i32
  }
  func.func @transform_2(%arg0: i32, %arg1: i32) -> (i32, i32, i32, i32) {
    %c0_i32 = arith.constant 0 : i32
    %c0_i32_0 = arith.constant 0 : i32
    %c0_i32_1 = arith.constant 0 : i32
    return %arg0, %arg1, %c0_i32, %c0_i32_0 : i32, i32, i32, i32
  }
  func.func @transform_3(%arg0: i32, %arg1: i32) -> (i32, i32, i32, i32) {
    %c0_i32 = arith.constant 0 : i32
    %c0_i32_0 = arith.constant 0 : i32
    %c0_i32_1 = arith.constant 0 : i32
    return %arg0, %arg1, %c0_i32, %c0_i32_0 : i32, i32, i32, i32
  }
  func.func @transform_4(%arg0: i32, %arg1: i32) -> (i32, i32, i32, i32) {
    %c0_i32 = arith.constant 0 : i32
    %c0_i32_0 = arith.constant 0 : i32
    %c0_i32_1 = arith.constant 0 : i32
    return %arg0, %arg1, %c0_i32, %c0_i32_0 : i32, i32, i32, i32
  }
}

module attributes {stable_mosaic.version = 11 : i64} {
  func.func @kernel(%arg0: i32, %arg1: i32, %arg2: memref<1x16x16x128xbf16, #tpu.memory_space<vmem>>, %arg3: memref<9x128x128xbf16, #tpu.memory_space<vmem>>, %arg4: memref<1x128xf32, #tpu.memory_space<vmem>>, %arg5: memref<1x128xf32, #tpu.memory_space<vmem>>, %arg6: memref<1x8x16x128xbf16, #tpu.memory_space<vmem>>, %arg7: memref<1x1x1x128xf32, #tpu.memory_space<vmem>>, %arg8: memref<1x1x1x128xf32, #tpu.memory_space<vmem>>) attributes {dimension_semantics = [#tpu.dimension_semantics<parallel>, #tpu.dimension_semantics<parallel>], iteration_bounds = array<i64: 2, 2>, scalar_prefetch = 0 : i64, scratch_operands = 0 : i64, tpu.core_type = #tpu.core_type<tc>, window_params = [{transform_indices = @transform_0, window_bounds = array<i64: 1, 16, 16, 128>}, {pipeline_mode = #tpu.pipeline_mode<synchronous>, transform_indices = @transform_1, window_bounds = array<i64: 9, 128, 128>}, {pipeline_mode = #tpu.pipeline_mode<synchronous>, transform_indices = @transform_2, window_bounds = array<i64: 1, 128>}, {pipeline_mode = #tpu.pipeline_mode<synchronous>, transform_indices = @transform_3, window_bounds = array<i64: 1, 128>}, {transform_indices = @transform_4, window_bounds = array<i64: 1, 8, 16, 128>}, {transform_indices = @transform_5, window_bounds = array<i64: 1, 1, 1, 128>}, {transform_indices = @transform_6, window_bounds = array<i64: 1, 1, 1, 128>}]} {
    %c8_i32 = arith.constant 8 : i32
    %0 = arith.muli %arg1, %c8_i32 : i32
    %1 = tpu.assume_multiple %0, 8 : i32
    %c1_i32 = arith.constant 1 : i32
    %2 = arith.subi %1, %c1_i32 : i32
    %c0_i32 = arith.constant 0 : i32
    %3 = arith.maxsi %2, %c0_i32 : i32
    %c0 = arith.constant 0 : index
    %4 = arith.index_cast %3 : i32 to index
    %c0_0 = arith.constant 0 : index
    %c0_1 = arith.constant 0 : index
    %5 = vector.load %arg2[%c0, %4, %c0_0, %c0_1] : memref<1x16x16x128xbf16, #tpu.memory_space<vmem>>, vector<1x1x16x128xbf16>
    %6 = vector.shape_cast %5 : vector<1x1x16x128xbf16> to vector<1x16x128xbf16>
    %c0_2 = arith.constant 0 : index
    %7 = arith.index_cast %1 : i32 to index
    %c0_3 = arith.constant 0 : index
    %c0_4 = arith.constant 0 : index
    %8 = vector.load %arg2[%c0_2, %7, %c0_3, %c0_4] : memref<1x16x16x128xbf16, #tpu.memory_space<vmem>>, vector<1x8x16x128xbf16>
    %9 = vector.shape_cast %8 : vector<1x8x16x128xbf16> to vector<8x16x128xbf16>
    %c8_i32_5 = arith.constant 8 : i32
    %10 = arith.addi %1, %c8_i32_5 : i32
    %c15_i32 = arith.constant 15 : i32
    %11 = arith.minsi %10, %c15_i32 : i32
    %c0_6 = arith.constant 0 : index
    %12 = arith.index_cast %11 : i32 to index
    %c0_7 = arith.constant 0 : index
    %c0_8 = arith.constant 0 : index
    %13 = vector.load %arg2[%c0_6, %12, %c0_7, %c0_8] : memref<1x16x16x128xbf16, #tpu.memory_space<vmem>>, vector<1x1x16x128xbf16>
    %14 = vector.shape_cast %13 : vector<1x1x16x128xbf16> to vector<1x16x128xbf16>
    %15 = tpu.concatenate %6, %9, %14 in 0 : vector<1x16x128xbf16>, vector<8x16x128xbf16>, vector<1x16x128xbf16> -> vector<10x16x128xbf16>
    %16 = arith.extf %15 : vector<10x16x128xbf16> to vector<10x16x128xf32>
    %c0_9 = arith.constant 0 : index
    %c0_10 = arith.constant 0 : index
    %17 = vector.load %arg4[%c0_9, %c0_10] : memref<1x128xf32, #tpu.memory_space<vmem>>, vector<1x128xf32>
    %18 = vector.shape_cast %17 : vector<1x128xf32> to vector<1x1x128xf32>
    %c0_11 = arith.constant 0 : index
    %c0_12 = arith.constant 0 : index
    %19 = vector.load %arg5[%c0_11, %c0_12] : memref<1x128xf32, #tpu.memory_space<vmem>>, vector<1x128xf32>
    %20 = vector.shape_cast %19 : vector<1x128xf32> to vector<1x1x128xf32>
    %21 = vector.broadcast %18 : vector<1x1x128xf32> to vector<10x16x128xf32>
    %22 = arith.mulf %16, %21 : vector<10x16x128xf32>
    %23 = vector.broadcast %20 : vector<1x1x128xf32> to vector<10x16x128xf32>
    %24 = arith.addf %22, %23 : vector<10x16x128xf32>
    %cst = arith.constant 0.000000e+00 : f32
    %25 = vector.broadcast %cst : f32 to vector<10x16x128xf32>
    %26 = arith.maximumf %24, %25 : vector<10x16x128xf32>
    %27 = tpu.iota {dimensions = array<i32: 0>} : vector<10x1x1xi32>
    %c1_i32_13 = arith.constant 1 : i32
    %28 = arith.subi %1, %c1_i32_13 : i32
    %29 = vector.broadcast %28 : i32 to vector<10x1x1xi32>
    %30 = arith.addi %27, %29 : vector<10x1x1xi32>
    %c0_i32_14 = arith.constant 0 : i32
    %31 = vector.broadcast %c0_i32_14 : i32 to vector<10x1x1xi32>
    %32 = arith.cmpi sge, %30, %31 : vector<10x1x1xi32>
    %c15_i32_15 = arith.constant 15 : i32
    %33 = vector.broadcast %c15_i32_15 : i32 to vector<10x1x1xi32>
    %34 = arith.cmpi sle, %30, %33 : vector<10x1x1xi32>
    %35 = arith.andi %32, %34 : vector<10x1x1xi1>
    %cst_16 = arith.constant 0.000000e+00 : f32
    %36 = vector.shape_cast %35 : vector<10x1x1xi1> to vector<10x1x1xi1>
    %37 = vector.broadcast %36 : vector<10x1x1xi1> to vector<10x16x128xi1>
    %38 = vector.broadcast %cst_16 : f32 to vector<10x16x128xf32>
    %39 = arith.select %37, %26, %38 : vector<10x16x128xi1>, vector<10x16x128xf32>
    %40 = arith.truncf %39 : vector<10x16x128xf32> to vector<10x16x128xbf16>
    %cst_17 = arith.constant 0.000000e+00 : bf16
    %41 = vector.broadcast %cst_17 : bf16 to vector<8x1x128xbf16>
    %cst_18 = arith.constant 0.000000e+00 : f32
    %42 = vector.broadcast %cst_18 : f32 to vector<128x128xf32>
    %43 = vector.extract_strided_slice %40 {offsets = [0, 0, 0], sizes = [8, 16, 128], strides = [1, 1, 1]} : vector<10x16x128xbf16> to vector<8x16x128xbf16>
    %44 = vector.extract_strided_slice %43 {offsets = [0, 0, 0], sizes = [8, 15, 128], strides = [1, 1, 1]} : vector<8x16x128xbf16> to vector<8x15x128xbf16>
    %45 = tpu.concatenate %41, %44 in 1 : vector<8x1x128xbf16>, vector<8x15x128xbf16> -> vector<8x16x128xbf16>
    %46 = vector.shape_cast %45 : vector<8x16x128xbf16> to vector<128x128xbf16>
    %c0_19 = arith.constant 0 : index
    %c0_20 = arith.constant 0 : index
    %c0_21 = arith.constant 0 : index
    %47 = vector.load %arg3[%c0_19, %c0_20, %c0_21] : memref<9x128x128xbf16, #tpu.memory_space<vmem>>, vector<1x128x128xbf16>
    %48 = vector.shape_cast %47 : vector<1x128x128xbf16> to vector<128x128xbf16>
    %cst_22 = arith.constant dense<0.000000e+00> : vector<128x128xf32>
    %49 = tpu.matmul %46, %48, %cst_22 {dimension_numbers = #tpu.dot_dimension_numbers<[1], [0], [0], [1], [0, 0, 1, 1], [], []>} : vector<128x128xbf16>, vector<128x128xbf16>, vector<128x128xf32> -> vector<128x128xf32>
    %50 = arith.addf %42, %49 : vector<128x128xf32>
    %51 = vector.shape_cast %43 : vector<8x16x128xbf16> to vector<128x128xbf16>
    %c1 = arith.constant 1 : index
    %c0_23 = arith.constant 0 : index
    %c0_24 = arith.constant 0 : index
    %52 = vector.load %arg3[%c1, %c0_23, %c0_24] : memref<9x128x128xbf16, #tpu.memory_space<vmem>>, vector<1x128x128xbf16>
    %53 = vector.shape_cast %52 : vector<1x128x128xbf16> to vector<128x128xbf16>
    %cst_25 = arith.constant dense<0.000000e+00> : vector<128x128xf32>
    %54 = tpu.matmul %51, %53, %cst_25 {dimension_numbers = #tpu.dot_dimension_numbers<[1], [0], [0], [1], [0, 0, 1, 1], [], []>} : vector<128x128xbf16>, vector<128x128xbf16>, vector<128x128xf32> -> vector<128x128xf32>
    %55 = arith.addf %50, %54 : vector<128x128xf32>
    %56 = vector.extract_strided_slice %43 {offsets = [0, 1, 0], sizes = [8, 15, 128], strides = [1, 1, 1]} : vector<8x16x128xbf16> to vector<8x15x128xbf16>
    %57 = tpu.concatenate %56, %41 in 1 : vector<8x15x128xbf16>, vector<8x1x128xbf16> -> vector<8x16x128xbf16>
    %58 = vector.shape_cast %57 : vector<8x16x128xbf16> to vector<128x128xbf16>
    %c2 = arith.constant 2 : index
    %c0_26 = arith.constant 0 : index
    %c0_27 = arith.constant 0 : index
    %59 = vector.load %arg3[%c2, %c0_26, %c0_27] : memref<9x128x128xbf16, #tpu.memory_space<vmem>>, vector<1x128x128xbf16>
    %60 = vector.shape_cast %59 : vector<1x128x128xbf16> to vector<128x128xbf16>
    %cst_28 = arith.constant dense<0.000000e+00> : vector<128x128xf32>
    %61 = tpu.matmul %58, %60, %cst_28 {dimension_numbers = #tpu.dot_dimension_numbers<[1], [0], [0], [1], [0, 0, 1, 1], [], []>} : vector<128x128xbf16>, vector<128x128xbf16>, vector<128x128xf32> -> vector<128x128xf32>
    %62 = arith.addf %55, %61 : vector<128x128xf32>
    %63 = vector.extract_strided_slice %40 {offsets = [1, 0, 0], sizes = [8, 16, 128], strides = [1, 1, 1]} : vector<10x16x128xbf16> to vector<8x16x128xbf16>
    %64 = vector.extract_strided_slice %63 {offsets = [0, 0, 0], sizes = [8, 15, 128], strides = [1, 1, 1]} : vector<8x16x128xbf16> to vector<8x15x128xbf16>
    %65 = tpu.concatenate %41, %64 in 1 : vector<8x1x128xbf16>, vector<8x15x128xbf16> -> vector<8x16x128xbf16>
    %66 = vector.shape_cast %65 : vector<8x16x128xbf16> to vector<128x128xbf16>
    %c3 = arith.constant 3 : index
    %c0_29 = arith.constant 0 : index
    %c0_30 = arith.constant 0 : index
    %67 = vector.load %arg3[%c3, %c0_29, %c0_30] : memref<9x128x128xbf16, #tpu.memory_space<vmem>>, vector<1x128x128xbf16>
    %68 = vector.shape_cast %67 : vector<1x128x128xbf16> to vector<128x128xbf16>
    %cst_31 = arith.constant dense<0.000000e+00> : vector<128x128xf32>
    %69 = tpu.matmul %66, %68, %cst_31 {dimension_numbers = #tpu.dot_dimension_numbers<[1], [0], [0], [1], [0, 0, 1, 1], [], []>} : vector<128x128xbf16>, vector<128x128xbf16>, vector<128x128xf32> -> vector<128x128xf32>
    %70 = arith.addf %62, %69 : vector<128x128xf32>
    %71 = vector.shape_cast %63 : vector<8x16x128xbf16> to vector<128x128xbf16>
    %c4 = arith.constant 4 : index
    %c0_32 = arith.constant 0 : index
    %c0_33 = arith.constant 0 : index
    %72 = vector.load %arg3[%c4, %c0_32, %c0_33] : memref<9x128x128xbf16, #tpu.memory_space<vmem>>, vector<1x128x128xbf16>
    %73 = vector.shape_cast %72 : vector<1x128x128xbf16> to vector<128x128xbf16>
    %cst_34 = arith.constant dense<0.000000e+00> : vector<128x128xf32>
    %74 = tpu.matmul %71, %73, %cst_34 {dimension_numbers = #tpu.dot_dimension_numbers<[1], [0], [0], [1], [0, 0, 1, 1], [], []>} : vector<128x128xbf16>, vector<128x128xbf16>, vector<128x128xf32> -> vector<128x128xf32>
    %75 = arith.addf %70, %74 : vector<128x128xf32>
    %76 = vector.extract_strided_slice %63 {offsets = [0, 1, 0], sizes = [8, 15, 128], strides = [1, 1, 1]} : vector<8x16x128xbf16> to vector<8x15x128xbf16>
    %77 = tpu.concatenate %76, %41 in 1 : vector<8x15x128xbf16>, vector<8x1x128xbf16> -> vector<8x16x128xbf16>
    %78 = vector.shape_cast %77 : vector<8x16x128xbf16> to vector<128x128xbf16>
    %c5 = arith.constant 5 : index
    %c0_35 = arith.constant 0 : index
    %c0_36 = arith.constant 0 : index
    %79 = vector.load %arg3[%c5, %c0_35, %c0_36] : memref<9x128x128xbf16, #tpu.memory_space<vmem>>, vector<1x128x128xbf16>
    %80 = vector.shape_cast %79 : vector<1x128x128xbf16> to vector<128x128xbf16>
    %cst_37 = arith.constant dense<0.000000e+00> : vector<128x128xf32>
    %81 = tpu.matmul %78, %80, %cst_37 {dimension_numbers = #tpu.dot_dimension_numbers<[1], [0], [0], [1], [0, 0, 1, 1], [], []>} : vector<128x128xbf16>, vector<128x128xbf16>, vector<128x128xf32> -> vector<128x128xf32>
    %82 = arith.addf %75, %81 : vector<128x128xf32>
    %83 = vector.extract_strided_slice %40 {offsets = [2, 0, 0], sizes = [8, 16, 128], strides = [1, 1, 1]} : vector<10x16x128xbf16> to vector<8x16x128xbf16>
    %84 = vector.extract_strided_slice %83 {offsets = [0, 0, 0], sizes = [8, 15, 128], strides = [1, 1, 1]} : vector<8x16x128xbf16> to vector<8x15x128xbf16>
    %85 = tpu.concatenate %41, %84 in 1 : vector<8x1x128xbf16>, vector<8x15x128xbf16> -> vector<8x16x128xbf16>
    %86 = vector.shape_cast %85 : vector<8x16x128xbf16> to vector<128x128xbf16>
    %c6 = arith.constant 6 : index
    %c0_38 = arith.constant 0 : index
    %c0_39 = arith.constant 0 : index
    %87 = vector.load %arg3[%c6, %c0_38, %c0_39] : memref<9x128x128xbf16, #tpu.memory_space<vmem>>, vector<1x128x128xbf16>
    %88 = vector.shape_cast %87 : vector<1x128x128xbf16> to vector<128x128xbf16>
    %cst_40 = arith.constant dense<0.000000e+00> : vector<128x128xf32>
    %89 = tpu.matmul %86, %88, %cst_40 {dimension_numbers = #tpu.dot_dimension_numbers<[1], [0], [0], [1], [0, 0, 1, 1], [], []>} : vector<128x128xbf16>, vector<128x128xbf16>, vector<128x128xf32> -> vector<128x128xf32>
    %90 = arith.addf %82, %89 : vector<128x128xf32>
    %91 = vector.shape_cast %83 : vector<8x16x128xbf16> to vector<128x128xbf16>
    %c7 = arith.constant 7 : index
    %c0_41 = arith.constant 0 : index
    %c0_42 = arith.constant 0 : index
    %92 = vector.load %arg3[%c7, %c0_41, %c0_42] : memref<9x128x128xbf16, #tpu.memory_space<vmem>>, vector<1x128x128xbf16>
    %93 = vector.shape_cast %92 : vector<1x128x128xbf16> to vector<128x128xbf16>
    %cst_43 = arith.constant dense<0.000000e+00> : vector<128x128xf32>
    %94 = tpu.matmul %91, %93, %cst_43 {dimension_numbers = #tpu.dot_dimension_numbers<[1], [0], [0], [1], [0, 0, 1, 1], [], []>} : vector<128x128xbf16>, vector<128x128xbf16>, vector<128x128xf32> -> vector<128x128xf32>
    %95 = arith.addf %90, %94 : vector<128x128xf32>
    %96 = vector.extract_strided_slice %83 {offsets = [0, 1, 0], sizes = [8, 15, 128], strides = [1, 1, 1]} : vector<8x16x128xbf16> to vector<8x15x128xbf16>
    %97 = tpu.concatenate %96, %41 in 1 : vector<8x15x128xbf16>, vector<8x1x128xbf16> -> vector<8x16x128xbf16>
    %98 = vector.shape_cast %97 : vector<8x16x128xbf16> to vector<128x128xbf16>
    %c8 = arith.constant 8 : index
    %c0_44 = arith.constant 0 : index
    %c0_45 = arith.constant 0 : index
    %99 = vector.load %arg3[%c8, %c0_44, %c0_45] : memref<9x128x128xbf16, #tpu.memory_space<vmem>>, vector<1x128x128xbf16>
    %100 = vector.shape_cast %99 : vector<1x128x128xbf16> to vector<128x128xbf16>
    %cst_46 = arith.constant dense<0.000000e+00> : vector<128x128xf32>
    %101 = tpu.matmul %98, %100, %cst_46 {dimension_numbers = #tpu.dot_dimension_numbers<[1], [0], [0], [1], [0, 0, 1, 1], [], []>} : vector<128x128xbf16>, vector<128x128xbf16>, vector<128x128xf32> -> vector<128x128xf32>
    %102 = arith.addf %95, %101 : vector<128x128xf32>
    %103 = vector.shape_cast %102 : vector<128x128xf32> to vector<8x16x128xf32>
    %104 = arith.truncf %103 : vector<8x16x128xf32> to vector<8x16x128xbf16>
    %c0_47 = arith.constant 0 : index
    %c0_48 = arith.constant 0 : index
    %c0_49 = arith.constant 0 : index
    %c0_50 = arith.constant 0 : index
    %105 = vector.load %arg6[%c0_47, %c0_48, %c0_49, %c0_50] : memref<1x8x16x128xbf16, #tpu.memory_space<vmem>>, vector<1x8x16x128xbf16>
    %106 = vector.shape_cast %105 : vector<1x8x16x128xbf16> to vector<8x16x128xbf16>
    %107 = vector.shape_cast %104 : vector<8x16x128xbf16> to vector<1x8x16x128xbf16>
    tpu.vector_store %arg6[%c0_47, %c0_48, %c0_49, %c0_50], %107 {strides = array<i32>} : memref<1x8x16x128xbf16, #tpu.memory_space<vmem>>, vector<1x8x16x128xbf16>,
    %cst_51 = arith.constant dense<0.000000e+00> : vector<128xf32>
    %108 = vector.multi_reduction <add>, %102, %cst_51 [0] : vector<128x128xf32> to vector<128xf32>
    %109 = vector.shape_cast %108 : vector<128xf32> to vector<1x128xf32>
    %c0_52 = arith.constant 0 : index
    %c0_53 = arith.constant 0 : index
    %c0_54 = arith.constant 0 : index
    %c0_55 = arith.constant 0 : index
    %110 = vector.load %arg7[%c0_52, %c0_53, %c0_54, %c0_55] : memref<1x1x1x128xf32, #tpu.memory_space<vmem>>, vector<1x1x1x128xf32>
    %111 = vector.shape_cast %110 : vector<1x1x1x128xf32> to vector<1x128xf32>
    %112 = vector.shape_cast %109 : vector<1x128xf32> to vector<1x1x1x128xf32>
    tpu.vector_store %arg7[%c0_52, %c0_53, %c0_54, %c0_55], %112 {strides = array<i32>} : memref<1x1x1x128xf32, #tpu.memory_space<vmem>>, vector<1x1x1x128xf32>,
    %113 = arith.mulf %102, %102 : vector<128x128xf32>
    %cst_56 = arith.constant dense<0.000000e+00> : vector<128xf32>
    %114 = vector.multi_reduction <add>, %113, %cst_56 [0] : vector<128x128xf32> to vector<128xf32>
    %115 = vector.shape_cast %114 : vector<128xf32> to vector<1x128xf32>
    %c0_57 = arith.constant 0 : index
    %c0_58 = arith.constant 0 : index
    %c0_59 = arith.constant 0 : index
    %c0_60 = arith.constant 0 : index
    %116 = vector.load %arg8[%c0_57, %c0_58, %c0_59, %c0_60] : memref<1x1x1x128xf32, #tpu.memory_space<vmem>>, vector<1x1x1x128xf32>
    %117 = vector.shape_cast %116 : vector<1x1x1x128xf32> to vector<1x128xf32>
    %118 = vector.shape_cast %115 : vector<1x128xf32> to vector<1x1x1x128xf32>
    tpu.vector_store %arg8[%c0_57, %c0_58, %c0_59, %c0_60], %118 {strides = array<i32>} : memref<1x1x1x128xf32, #tpu.memory_space<vmem>>, vector<1x1x1x128xf32>,
    return
  }
  func.func @transform_0(%arg0: i32, %arg1: i32) -> (i32, i32, i32, i32) {
    %c0_i32 = arith.constant 0 : i32
    %c0_i32_0 = arith.constant 0 : i32
    %c0_i32_1 = arith.constant 0 : i32
    %c0_i32_2 = arith.constant 0 : i32
    return %arg0, %c0_i32, %c0_i32_0, %c0_i32_1 : i32, i32, i32, i32
  }
  func.func @transform_1(%arg0: i32, %arg1: i32) -> (i32, i32, i32) {
    %c0_i32 = arith.constant 0 : i32
    %c0_i32_0 = arith.constant 0 : i32
    %c0_i32_1 = arith.constant 0 : i32
    %c0_i32_2 = arith.constant 0 : i32
    return %c0_i32, %c0_i32_0, %c0_i32_1 : i32, i32, i32
  }
  func.func @transform_2(%arg0: i32, %arg1: i32) -> (i32, i32) {
    %c0_i32 = arith.constant 0 : i32
    %c0_i32_0 = arith.constant 0 : i32
    %c0_i32_1 = arith.constant 0 : i32
    return %c0_i32, %c0_i32_0 : i32, i32
  }
  func.func @transform_3(%arg0: i32, %arg1: i32) -> (i32, i32) {
    %c0_i32 = arith.constant 0 : i32
    %c0_i32_0 = arith.constant 0 : i32
    %c0_i32_1 = arith.constant 0 : i32
    return %c0_i32, %c0_i32_0 : i32, i32
  }
  func.func @transform_4(%arg0: i32, %arg1: i32) -> (i32, i32, i32, i32) {
    %c0_i32 = arith.constant 0 : i32
    %c0_i32_0 = arith.constant 0 : i32
    %c0_i32_1 = arith.constant 0 : i32
    return %arg0, %arg1, %c0_i32, %c0_i32_0 : i32, i32, i32, i32
  }
  func.func @transform_5(%arg0: i32, %arg1: i32) -> (i32, i32, i32, i32) {
    %c0_i32 = arith.constant 0 : i32
    %c0_i32_0 = arith.constant 0 : i32
    %c0_i32_1 = arith.constant 0 : i32
    return %arg0, %arg1, %c0_i32, %c0_i32_0 : i32, i32, i32, i32
  }
  func.func @transform_6(%arg0: i32, %arg1: i32) -> (i32, i32, i32, i32) {
    %c0_i32 = arith.constant 0 : i32
    %c0_i32_0 = arith.constant 0 : i32
    %c0_i32_1 = arith.constant 0 : i32
    return %arg0, %arg1, %c0_i32, %c0_i32_0 : i32, i32, i32, i32
  }
}

module attributes {stable_mosaic.version = 11 : i64} {
  func.func @kernel(%arg0: i32, %arg1: i32, %arg2: memref<1x8x16x128xbf16, #tpu.memory_space<vmem>>, %arg3: memref<1x8x16x128xbf16, #tpu.memory_space<vmem>>, %arg4: memref<128x128xbf16, #tpu.memory_space<vmem>>, %arg5: memref<1x128xf32, #tpu.memory_space<vmem>>, %arg6: memref<1x128xf32, #tpu.memory_space<vmem>>, %arg7: memref<1x128xf32, #tpu.memory_space<vmem>>, %arg8: memref<1x8x16x128xf32, #tpu.memory_space<vmem>>) attributes {dimension_semantics = [#tpu.dimension_semantics<parallel>, #tpu.dimension_semantics<parallel>], iteration_bounds = array<i64: 2, 2>, scalar_prefetch = 0 : i64, scratch_operands = 0 : i64, tpu.core_type = #tpu.core_type<tc>, window_params = [{transform_indices = @transform_0, window_bounds = array<i64: 1, 8, 16, 128>}, {transform_indices = @transform_1, window_bounds = array<i64: 1, 8, 16, 128>}, {pipeline_mode = #tpu.pipeline_mode<synchronous>, transform_indices = @transform_2, window_bounds = array<i64: 128, 128>}, {pipeline_mode = #tpu.pipeline_mode<synchronous>, transform_indices = @transform_3, window_bounds = array<i64: 1, 128>}, {pipeline_mode = #tpu.pipeline_mode<synchronous>, transform_indices = @transform_4, window_bounds = array<i64: 1, 128>}, {pipeline_mode = #tpu.pipeline_mode<synchronous>, transform_indices = @transform_5, window_bounds = array<i64: 1, 128>}, {transform_indices = @transform_6, window_bounds = array<i64: 1, 8, 16, 128>}]} {
    %c0 = arith.constant 0 : index
    %c0_0 = arith.constant 0 : index
    %0 = vector.load %arg6[%c0, %c0_0] : memref<1x128xf32, #tpu.memory_space<vmem>>, vector<1x128xf32>
    %1 = vector.shape_cast %0 : vector<1x128xf32> to vector<1x1x128xf32>
    %c0_1 = arith.constant 0 : index
    %c0_2 = arith.constant 0 : index
    %2 = vector.load %arg7[%c0_1, %c0_2] : memref<1x128xf32, #tpu.memory_space<vmem>>, vector<1x128xf32>
    %3 = vector.shape_cast %2 : vector<1x128xf32> to vector<1x1x128xf32>
    %c0_3 = arith.constant 0 : index
    %c0_4 = arith.constant 0 : index
    %c0_5 = arith.constant 0 : index
    %c0_6 = arith.constant 0 : index
    %4 = vector.load %arg2[%c0_3, %c0_4, %c0_5, %c0_6] : memref<1x8x16x128xbf16, #tpu.memory_space<vmem>>, vector<1x8x16x128xbf16>
    %5 = vector.shape_cast %4 : vector<1x8x16x128xbf16> to vector<8x16x128xbf16>
    %6 = arith.extf %5 : vector<8x16x128xbf16> to vector<8x16x128xf32>
    %c0_7 = arith.constant 0 : index
    %c0_8 = arith.constant 0 : index
    %c0_9 = arith.constant 0 : index
    %c0_10 = arith.constant 0 : index
    %7 = vector.load %arg3[%c0_7, %c0_8, %c0_9, %c0_10] : memref<1x8x16x128xbf16, #tpu.memory_space<vmem>>, vector<1x8x16x128xbf16>
    %8 = vector.shape_cast %7 : vector<1x8x16x128xbf16> to vector<8x16x128xbf16>
    %9 = vector.shape_cast %8 : vector<8x16x128xbf16> to vector<128x128xbf16>
    %c0_11 = arith.constant 0 : index
    %c0_12 = arith.constant 0 : index
    %10 = vector.load %arg4[%c0_11, %c0_12] : memref<128x128xbf16, #tpu.memory_space<vmem>>, vector<128x128xbf16>
    %cst = arith.constant dense<0.000000e+00> : vector<128x128xf32>
    %11 = tpu.matmul %9, %10, %cst {dimension_numbers = #tpu.dot_dimension_numbers<[1], [0], [0], [1], [0, 0, 1, 1], [], []>} : vector<128x128xbf16>, vector<128x128xbf16>, vector<128x128xf32> -> vector<128x128xf32>
    %c0_13 = arith.constant 0 : index
    %c0_14 = arith.constant 0 : index
    %12 = vector.load %arg5[%c0_13, %c0_14] : memref<1x128xf32, #tpu.memory_space<vmem>>, vector<1x128xf32>
    %13 = vector.broadcast %12 : vector<1x128xf32> to vector<128x128xf32>
    %14 = arith.addf %11, %13 : vector<128x128xf32>
    %15 = vector.shape_cast %14 : vector<128x128xf32> to vector<8x16x128xf32>
    %16 = vector.broadcast %1 : vector<1x1x128xf32> to vector<8x16x128xf32>
    %17 = arith.mulf %6, %16 : vector<8x16x128xf32>
    %18 = vector.broadcast %3 : vector<1x1x128xf32> to vector<8x16x128xf32>
    %19 = arith.addf %17, %18 : vector<8x16x128xf32>
    %20 = arith.addf %19, %15 : vector<8x16x128xf32>
    %cst_15 = arith.constant 0.000000e+00 : f32
    %21 = vector.broadcast %cst_15 : f32 to vector<8x16x128xf32>
    %22 = arith.maximumf %20, %21 : vector<8x16x128xf32>
    %c0_16 = arith.constant 0 : index
    %c0_17 = arith.constant 0 : index
    %c0_18 = arith.constant 0 : index
    %c0_19 = arith.constant 0 : index
    %23 = vector.load %arg8[%c0_16, %c0_17, %c0_18, %c0_19] : memref<1x8x16x128xf32, #tpu.memory_space<vmem>>, vector<1x8x16x128xf32>
    %24 = vector.shape_cast %23 : vector<1x8x16x128xf32> to vector<8x16x128xf32>
    %25 = vector.shape_cast %22 : vector<8x16x128xf32> to vector<1x8x16x128xf32>
    tpu.vector_store %arg8[%c0_16, %c0_17, %c0_18, %c0_19], %25 {strides = array<i32>} : memref<1x8x16x128xf32, #tpu.memory_space<vmem>>, vector<1x8x16x128xf32>,
    return
  }
  func.func @transform_0(%arg0: i32, %arg1: i32) -> (i32, i32, i32, i32) {
    %c0_i32 = arith.constant 0 : i32
    %c0_i32_0 = arith.constant 0 : i32
    %c0_i32_1 = arith.constant 0 : i32
    return %arg0, %arg1, %c0_i32, %c0_i32_0 : i32, i32, i32, i32
  }
  func.func @transform_1(%arg0: i32, %arg1: i32) -> (i32, i32, i32, i32) {
    %c0_i32 = arith.constant 0 : i32
    %c0_i32_0 = arith.constant 0 : i32
    %c0_i32_1 = arith.constant 0 : i32
    return %arg0, %arg1, %c0_i32, %c0_i32_0 : i32, i32, i32, i32
  }
  func.func @transform_2(%arg0: i32, %arg1: i32) -> (i32, i32) {
    %c0_i32 = arith.constant 0 : i32
    %c0_i32_0 = arith.constant 0 : i32
    %c0_i32_1 = arith.constant 0 : i32
    return %c0_i32, %c0_i32_0 : i32, i32
  }
  func.func @transform_3(%arg0: i32, %arg1: i32) -> (i32, i32) {
    %c0_i32 = arith.constant 0 : i32
    %c0_i32_0 = arith.constant 0 : i32
    %c0_i32_1 = arith.constant 0 : i32
    return %c0_i32, %c0_i32_0 : i32, i32
  }
  func.func @transform_4(%arg0: i32, %arg1: i32) -> (i32, i32) {
    %c0_i32 = arith.constant 0 : i32
    %c0_i32_0 = arith.constant 0 : i32
    %c0_i32_1 = arith.constant 0 : i32
    return %c0_i32, %c0_i32_0 : i32, i32
  }
  func.func @transform_5(%arg0: i32, %arg1: i32) -> (i32, i32) {
    %c0_i32 = arith.constant 0 : i32
    %c0_i32_0 = arith.constant 0 : i32
    %c0_i32_1 = arith.constant 0 : i32
    return %c0_i32, %c0_i32_0 : i32, i32
  }
  func.func @transform_6(%arg0: i32, %arg1: i32) -> (i32, i32, i32, i32) {
    %c0_i32 = arith.constant 0 : i32
    %c0_i32_0 = arith.constant 0 : i32
    %c0_i32_1 = arith.constant 0 : i32
    return %arg0, %arg1, %c0_i32, %c0_i32_0 : i32, i32, i32, i32
  }
}

</mosaic_0001>

<llo_original>
// kernel: residual_block_forward.5
$region0: #{residual_block_forward.5}
  #allocation0 [shape = 'u32[]', space=smem, size = 0x4, offset = 0x4, fixed_abs, tag = 'smem constant byte address 0x4 - core index']
  #allocation1 [shape = 'u32[72,128]{1,0:T(1,128)}', space=vmem, size = 0x9000, scoped, tag = 'internal scratch']
  %s0 = inlined_call_operand.vmem [shape: bf16[2,16,16,128], index: 0, kind: input, shape index: {}]
  %s1 = inlined_call_operand.vmem [shape: bf16[2,16,16,128], index: 1, kind: input, shape index: {}]
  %s2 = inlined_call_operand.vmem [shape: bf16[128,128], index: 2, kind: input, shape index: {}]
  %s3 = inlined_call_operand.vmem [shape: f32[1,128], index: 3, kind: input, shape index: {}]
  %s4 = inlined_call_operand.vmem [shape: f32[1,128], index: 4, kind: input, shape index: {}]
  %s5 = inlined_call_operand.vmem [shape: f32[1,128], index: 5, kind: input, shape index: {}]
  %s6 = inlined_call_operand.vmem [shape: f32[2,16,16,128], index: 6, kind: output, shape index: {}]
  %s7 = sld [smem:[#allocation0]]
  $region57: #{residual_block_forward.5} parent=0
    _
  %s9 = ssub.s32 1, %s7
  %s10 = scalar_select 0, %s9, %s7
  loop: start=0, step=1, limit=6
  $region2: #{residual_block_forward.5} parent=0 // loop_pre_header
    _
  $region3: #{residual_block_forward.5} parent=0 // loop_header
    %s12 = sphi 0, %s16
    %p13 = scmp.ge.s32.totalorder %s12, 6
    %s19 = sphi 0, %s31
    %s20 = sphi 0, %s27
    %s21 = sphi 0, %s19
    %s22 = sphi 0, %s20
    %s23 = sphi 0, %s21
    %s24 = sphi 0, %s22
    %s36 = sphi 0, %s38
    %s39 = sphi 0, %s36
    %s40 = sphi 0, %s39
    %s56 = sphi 0, %s40
    %s64 = sphi 0, %s66
    %s67 = sphi 0, %s64
    %s68 = sphi 0, %s67
    %s84 = sphi 0, %s68
    %s88 = sphi 0, %s88
    %s90 = sphi 0, %s88
    %s91 = sphi 0, %s90
    %s105 = sphi 0, %s91
    %s109 = sphi 0, %s109
    %s111 = sphi 0, %s109
    %s112 = sphi 0, %s111
    %s126 = sphi 0, %s112
    %s130 = sphi 0, %s130
    %s132 = sphi 0, %s130
    %s133 = sphi 0, %s132
    %s147 = sphi 0, %s133
    %s151 = sphi 0, %s151
    %s153 = sphi 0, %s151
    %s154 = sphi 0, %s153
    %s168 = sphi 0, %s154
    %s176 = sphi 0, %s178
    %s179 = sphi 0, %s176
    %s180 = sphi 0, %s179
    %s196 = sphi 0, %s180
  $region4: #{residual_block_forward.5} parent=0 // loop_header_branch
    %15 = sbr.rel (%p13) target = $region8
  $region5: #{residual_block_forward.5} parent=0 // loop_body
    %s17 = ssub.s32 %s12, 1
    %s18 = ssub.s32 %s12, 2
    %s25 = sadd.s32 1, %s20
    %p26 = scmp.ge.s32.totalorder %s25, 2
    %s27 = scalar_select %p26, 0, %s25
    %s28 = sadd.s32 1, %s19
    %s29 = scalar_select %p26, %s28, %s19
    %p30 = scmp.ge.s32.totalorder %s29, 2
    %s31 = scalar_select %p30, 0, %s29
    %s32 = ssub.s32 %s19, %s31
    %s33 = ssub.s32 %s20, %s27
    %s34 = sor.u32 %s32, %s33
    %p35 = scmp.eq.s32.totalorder %s34, 0
    %s37 = sadd.s32 %s36, 1
    %s38 = scalar_select %p35, %s36, %s37
    %p41 = pneg %p35
    %p42 = scmp.eq.s32.totalorder %s12, 3
    %p43 = por %p41, %p42
    %p44 = scmp.ne.s32.totalorder %s36, %s39
    %p45 = scmp.eq.s32.totalorder %s12, 0
    %p46 = por %p44, %p45
    %p47 = scmp.ne.s32.totalorder %s36, %s39
    %p48 = scmp.eq.s32.totalorder %s17, 3
    %p49 = por %p47, %p48
    %p50 = scmp.ne.s32.totalorder %s39, %s40
    %p51 = scmp.eq.s32.totalorder %s17, 0
    %p52 = por %p50, %p51
    %p53 = scmp.ne.s32.totalorder %s39, %s40
    %p54 = scmp.eq.s32.totalorder %s18, 3
    %p55 = por %p53, %p54
    %p57 = scmp.ne.s32.totalorder %s40, %s56
    %p58 = scmp.eq.s32.totalorder %s18, 0
    %p59 = por %p57, %p58
    %s60 = ssub.s32 %s19, %s31
    %s61 = ssub.s32 %s20, %s27
    %s62 = sor.u32 %s60, %s61
    %p63 = scmp.eq.s32.totalorder %s62, 0
    %s65 = sadd.s32 %s64, 1
    %s66 = scalar_select %p63, %s64, %s65
    %p69 = pneg %p63
    %p70 = scmp.eq.s32.totalorder %s12, 3
    %p71 = por %p69, %p70
    %p72 = scmp.ne.s32.totalorder %s64, %s67
    %p73 = scmp.eq.s32.totalorder %s12, 0
    %p74 = por %p72, %p73
    %p75 = scmp.ne.s32.totalorder %s64, %s67
    %p76 = scmp.eq.s32.totalorder %s17, 3
    %p77 = por %p75, %p76
    %p78 = scmp.ne.s32.totalorder %s67, %s68
    %p79 = scmp.eq.s32.totalorder %s17, 0
    %p80 = por %p78, %p79
    %p81 = scmp.ne.s32.totalorder %s67, %s68
    %p82 = scmp.eq.s32.totalorder %s18, 3
    %p83 = por %p81, %p82
    %p85 = scmp.ne.s32.totalorder %s68, %s84
    %p86 = scmp.eq.s32.totalorder %s18, 0
    %p87 = por %p85, %p86
    %s89 = sadd.s32 %s88, 1
    %p92 = scmp.eq.s32.totalorder %s12, 3
    %p93 = scmp.ne.s32.totalorder %s88, %s90
    %p94 = scmp.eq.s32.totalorder %s12, 0
    %p95 = por %p93, %p94
    %p96 = scmp.ne.s32.totalorder %s88, %s90
    %p97 = scmp.eq.s32.totalorder %s17, 3
    %p98 = por %p96, %p97
    %p99 = scmp.ne.s32.totalorder %s90, %s91
    %p100 = scmp.eq.s32.totalorder %s17, 0
    %p101 = por %p99, %p100
    %p102 = scmp.ne.s32.totalorder %s90, %s91
    %p103 = scmp.eq.s32.totalorder %s18, 3
    %p104 = por %p102, %p103
    %p106 = scmp.ne.s32.totalorder %s91, %s105
    %p107 = scmp.eq.s32.totalorder %s18, 0
    %p108 = por %p106, %p107
    %s110 = sadd.s32 %s109, 1
    %p113 = scmp.eq.s32.totalorder %s12, 3
    %p114 = scmp.ne.s32.totalorder %s109, %s111
    %p115 = scmp.eq.s32.totalorder %s12, 0
    %p116 = por %p114, %p115
    %p117 = scmp.ne.s32.totalorder %s109, %s111
    %p118 = scmp.eq.s32.totalorder %s17, 3
    %p119 = por %p117, %p118
    %p120 = scmp.ne.s32.totalorder %s111, %s112
    %p121 = scmp.eq.s32.totalorder %s17, 0
    %p122 = por %p120, %p121
    %p123 = scmp.ne.s32.totalorder %s111, %s112
    %p124 = scmp.eq.s32.totalorder %s18, 3
    %p125 = por %p123, %p124
    %p127 = scmp.ne.s32.totalorder %s112, %s126
    %p128 = scmp.eq.s32.totalorder %s18, 0
    %p129 = por %p127, %p128
    %s131 = sadd.s32 %s130, 1
    %p134 = scmp.eq.s32.totalorder %s12, 3
    %p135 = scmp.ne.s32.totalorder %s130, %s132
    %p136 = scmp.eq.s32.totalorder %s12, 0
    %p137 = por %p135, %p136
    %p138 = scmp.ne.s32.totalorder %s130, %s132
    %p139 = scmp.eq.s32.totalorder %s17, 3
    %p140 = por %p138, %p139
    %p141 = scmp.ne.s32.totalorder %s132, %s133
    %p142 = scmp.eq.s32.totalorder %s17, 0
    %p143 = por %p141, %p142
    %p144 = scmp.ne.s32.totalorder %s132, %s133
    %p145 = scmp.eq.s32.totalorder %s18, 3
    %p146 = por %p144, %p145
    %p148 = scmp.ne.s32.totalorder %s133, %s147
    %p149 = scmp.eq.s32.totalorder %s18, 0
    %p150 = por %p148, %p149
    %s152 = sadd.s32 %s151, 1
    %p155 = scmp.eq.s32.totalorder %s12, 3
    %p156 = scmp.ne.s32.totalorder %s151, %s153
    %p157 = scmp.eq.s32.totalorder %s12, 0
    %p158 = por %p156, %p157
    %p159 = scmp.ne.s32.totalorder %s151, %s153
    %p160 = scmp.eq.s32.totalorder %s17, 3
    %p161 = por %p159, %p160
    %p162 = scmp.ne.s32.totalorder %s153, %s154
    %p163 = scmp.eq.s32.totalorder %s17, 0
    %p164 = por %p162, %p163
    %p165 = scmp.ne.s32.totalorder %s153, %s154
    %p166 = scmp.eq.s32.totalorder %s18, 3
    %p167 = por %p165, %p166
    %p169 = scmp.ne.s32.totalorder %s154, %s168
    %p170 = scmp.eq.s32.totalorder %s18, 0
    %p171 = por %p169, %p170
    %s172 = ssub.s32 %s19, %s31
    %s173 = ssub.s32 %s20, %s27
    %s174 = sor.u32 %s172, %s173
    %p175 = scmp.eq.s32.totalorder %s174, 0
    %s177 = sadd.s32 %s176, 1
    %s178 = scalar_select %p175, %s176, %s177
    %p181 = pneg %p175
    %p182 = scmp.eq.s32.totalorder %s12, 3
    %p183 = por %p181, %p182
    %p184 = scmp.ne.s32.totalorder %s176, %s179
    %p185 = scmp.eq.s32.totalorder %s12, 0
    %p186 = por %p184, %p185
    %p187 = scmp.ne.s32.totalorder %s176, %s179
    %p188 = scmp.eq.s32.totalorder %s17, 3
    %p189 = por %p187, %p188
    %p190 = scmp.ne.s32.totalorder %s179, %s180
    %p191 = scmp.eq.s32.totalorder %s17, 0
    %p192 = por %p190, %p191
    %p193 = scmp.ne.s32.totalorder %s179, %s180
    %p194 = scmp.eq.s32.totalorder %s18, 3
    %p195 = por %p193, %p194
    %p197 = scmp.ne.s32.totalorder %s180, %s196
    %p198 = scmp.eq.s32.totalorder %s18, 0
    %p199 = por %p197, %p198
    %p200 = scmp.le.s32.totalorder 1, %s12
    %p201 = scmp.lt.s32.totalorder %s12, 5
    %p202 = pnand %p200, %p201
    %p203 = pneg %p202
    // Predicated region
    $region9: #{residual_block_forward.5} parent=5 // pred_check
      _
    $region10: #{residual_block_forward.5} parent=5 // pred_check_branch
      %205 = sbr.rel (%p202) target = $region12
    $region11: #{residual_block_forward.5} parent=5 // pred_region
      %s206 = ssub.s32 %s12, 1
      // Predicated region
      $region13: #{residual_block_forward.5} parent=11 // pred_check
        %p207 = pneg %p101
      $region14: #{residual_block_forward.5} parent=11 // pred_check_branch
        %209 = sbr.rel (%p207) target = $region16
      $region15: #{residual_block_forward.5} parent=11 // pred_region
        _
      $region16: #{residual_block_forward.5} parent=11 // pred_fallthru
        _
      // Predicated region
      $region17: #{residual_block_forward.5} parent=11 // pred_check
        %p210 = pneg %p122
      $region18: #{residual_block_forward.5} parent=11 // pred_check_branch
        %212 = sbr.rel (%p210) target = $region20
      $region19: #{residual_block_forward.5} parent=11 // pred_region
        _
      $region20: #{residual_block_forward.5} parent=11 // pred_fallthru
        _
      // Predicated region
      $region21: #{residual_block_forward.5} parent=11 // pred_check
        %p213 = pneg %p143
      $region22: #{residual_block_forward.5} parent=11 // pred_check_branch
        %215 = sbr.rel (%p213) target = $region24
      $region23: #{residual_block_forward.5} parent=11 // pred_region
        _
      $region24: #{residual_block_forward.5} parent=11 // pred_fallthru
        _
      // Predicated region
      $region25: #{residual_block_forward.5} parent=11 // pred_check
        %p216 = pneg %p164
      $region26: #{residual_block_forward.5} parent=11 // pred_check_branch
        %218 = sbr.rel (%p216) target = $region28
      $region27: #{residual_block_forward.5} parent=11 // pred_region
        _
      $region28: #{residual_block_forward.5} parent=11 // pred_fallthru
        _
    $region12: #{residual_block_forward.5} parent=5 // pred_fallthru
      _
    %p219 = scmp.lt.s32.totalorder %s12, 4
    // Predicated region
    $region29: #{residual_block_forward.5} parent=5 // pred_check
      %p220 = pneg %p219
    $region30: #{residual_block_forward.5} parent=5 // pred_check_branch
      %222 = sbr.rel (%p220) target = $region32
    $region31: #{residual_block_forward.5} parent=5 // pred_region
      // Predicated region
      $region33: #{residual_block_forward.5} parent=31 // pred_check
        %p223 = pneg %p46
      $region34: #{residual_block_forward.5} parent=31 // pred_check_branch
        %225 = sbr.rel (%p223) target = $region36
      $region35: #{residual_block_forward.5} parent=31 // pred_region
        %s226 = smul.u32 8, %s20
        %p227 = scmp.lt.s32.totalorder %s19, 1
        %s228 = scalar_select %p227, %s19, 1
        %p229 = scmp.lt.s32.totalorder %s226, 15
        %s230 = scalar_select %p229, %s226, 15
        %s231 = smul.addr %s230, 2
        %s232 = smul.addr %s228, 32
        %s233 = sadd.s32 %s231, %s232
        %s234 = smul.addr %s233, 4
        %s235 = scalar_lea.vmem %s0, %s234
        %s236 = smul.u32 8, %s20
      $region36: #{residual_block_forward.5} parent=31 // pred_fallthru
        _
      // Predicated region
      $region37: #{residual_block_forward.5} parent=31 // pred_check
        %p237 = pneg %p74
      $region38: #{residual_block_forward.5} parent=31 // pred_check_branch
        %239 = sbr.rel (%p237) target = $region40
      $region39: #{residual_block_forward.5} parent=31 // pred_region
        %s240 = smul.u32 8, %s20
        %p241 = scmp.lt.s32.totalorder %s19, 1
        %s242 = scalar_select %p241, %s19, 1
        %p243 = scmp.lt.s32.totalorder %s240, 15
        %s244 = scalar_select %p243, %s240, 15
        %s245 = smul.addr %s244, 2
        %s246 = smul.addr %s242, 32
        %s247 = sadd.s32 %s245, %s246
        %s248 = smul.addr %s247, 4
        %s249 = scalar_lea.vmem %s1, %s248
        %s250 = smul.u32 8, %s20
      $region40: #{residual_block_forward.5} parent=31 // pred_fallthru
        _
    $region32: #{residual_block_forward.5} parent=5 // pred_fallthru
      _
    %p251 = scmp.le.s32.totalorder 1, %s12
    %p252 = scmp.lt.s32.totalorder %s12, 5
    %p253 = pnand %p251, %p252
    %p254 = pneg %p253
    // Predicated region
    $region41: #{residual_block_forward.5} parent=5 // pred_check
      _
    $region42: #{residual_block_forward.5} parent=5 // pred_check_branch
      %256 = sbr.rel (%p253) target = $region44
    $region43: #{residual_block_forward.5} parent=5 // pred_region
      %s257 = ssub.s32 %s12, 1
      %s258 = smul.u32 8, %s22
      %p259 = scmp.lt.s32.totalorder %s21, 1
      %s260 = scalar_select %p259, %s21, 1
      %p261 = scmp.lt.s32.totalorder %s258, 15
      %s262 = scalar_select %p261, %s258, 15
      %s263 = smul.addr %s262, 2
      %s264 = smul.addr %s260, 32
      %s265 = sadd.s32 %s263, %s264
      %s266 = smul.addr %s265, 4
      %s267 = scalar_lea.vmem %s0, %s266
      %p268 = pneg %p52
      %p269 = pneg %p49
      %s270 = smul.u32 8, %s22
      %p271 = scmp.lt.s32.totalorder %s21, 1
      %s272 = scalar_select %p271, %s21, 1
      %p273 = scmp.lt.s32.totalorder %s270, 15
      %s274 = scalar_select %p273, %s270, 15
      %s275 = smul.addr %s274, 2
      %s276 = smul.addr %s272, 32
      %s277 = sadd.s32 %s275, %s276
      %s278 = smul.addr %s277, 4
      %s279 = scalar_lea.vmem %s1, %s278
      %p280 = pneg %p80
      %p281 = pneg %p77
      %p282 = pneg %p101
      %p283 = pneg %p98
      %p284 = pneg %p122
      %p285 = pneg %p119
      %p286 = pneg %p143
      %p287 = pneg %p140
      %p288 = pneg %p164
      %p289 = pneg %p161
      %p290 = pneg %p192
      %p291 = pneg %p189
      %s292 = smul.u32 8, %s22
      %p293 = scmp.lt.s32.totalorder %s21, 1
      %s294 = scalar_select %p293, %s21, 1
      %p295 = scmp.lt.s32.totalorder %s292, 15
      %s296 = scalar_select %p295, %s292, 15
      %s297 = smul.addr %s296, 2
      %s298 = smul.addr %s294, 32
      %s299 = sadd.s32 %s297, %s298
      %s300 = smul.addr %s299, 8
      %s301 = scalar_lea.vmem %s6, %s300
      %s302 = smul.u32 8, %s22
      %p303 = scmp.lt.s32.totalorder %s21, 1
      %s304 = scalar_select %p303, %s21, 1
      %p305 = scmp.lt.s32.totalorder %s302, 15
      %s306 = scalar_select %p305, %s302, 15
      %s307 = smul.addr %s306, 2
      %s308 = smul.addr %s304, 32
      %s309 = sadd.s32 %s307, %s308
      %s310 = smul.addr %s309, 4
      %s311 = scalar_lea.vmem %s0, %s310
      %s312 = smul.u32 8, %s22
      %s313 = smul.u32 8, %s22
      %p314 = scmp.lt.s32.totalorder %s21, 1
      %s315 = scalar_select %p314, %s21, 1
      %p316 = scmp.lt.s32.totalorder %s313, 15
      %s317 = scalar_select %p316, %s313, 15
      %s318 = smul.addr %s317, 2
      %s319 = smul.addr %s315, 32
      %s320 = sadd.s32 %s318, %s319
      %s321 = smul.addr %s320, 4
      %s322 = scalar_lea.vmem %s1, %s321
      %s323 = smul.u32 8, %s22
      %s324 = smul.u32 8, %s22
      %p325 = scmp.lt.s32.totalorder %s21, 1
      %s326 = scalar_select %p325, %s21, 1
      %p327 = scmp.lt.s32.totalorder %s324, 15
      %s328 = scalar_select %p327, %s324, 15
      %s329 = smul.addr %s328, 2
      %s330 = smul.addr %s326, 32
      %s331 = sadd.s32 %s329, %s330
      %s332 = smul.addr %s331, 8
      %s333 = scalar_lea.vmem %s6, %s332
      %s334 = smul.u32 8, %s22
      %v335 = vld [vmem:[%s4] sm:$0x1]
      %v336 = vld [vmem:[%s5] sm:$0x1]
      %v337 = vld [vmem:[%s311] sm:$0xf]
      %v338 = vld [vmem:[%s311 + $0x4] sm:$0xf]
      %v339 = vld [vmem:[%s311 + $0x8] sm:$0xf]
      %v340 = vld [vmem:[%s311 + $0xc] sm:$0xf]
      %v341 = vld [vmem:[%s311 + $0x10] sm:$0xf]
      %v342 = vld [vmem:[%s311 + $0x14] sm:$0xf]
      %v343 = vld [vmem:[%s311 + $0x18] sm:$0xf]
      %v344 = vld [vmem:[%s311 + $0x1c] sm:$0xf]
      %v345 = vld [vmem:[%s311 + $0x20] sm:$0xf]
      %v346 = vld [vmem:[%s311 + $0x24] sm:$0xf]
      %v347 = vld [vmem:[%s311 + $0x28] sm:$0xf]
      %v348 = vld [vmem:[%s311 + $0x2c] sm:$0xf]
      %v349 = vld [vmem:[%s311 + $0x30] sm:$0xf]
      %v350 = vld [vmem:[%s311 + $0x34] sm:$0xf]
      %v351 = vld [vmem:[%s311 + $0x38] sm:$0xf]
      %v352 = vld [vmem:[%s311 + $0x3c] sm:$0xf]
      %v353 = vunpack.c.l.bf16 %v337
      %v354 = vunpack.c.l.bf16 %v338
      %v355 = vunpack.c.l.bf16 %v339
      %v356 = vunpack.c.l.bf16 %v340
      %v357 = vunpack.c.l.bf16 %v341
      %v358 = vunpack.c.l.bf16 %v342
      %v359 = vunpack.c.l.bf16 %v343
      %v360 = vunpack.c.l.bf16 %v344
      %v361 = vunpack.c.l.bf16 %v345
      %v362 = vunpack.c.l.bf16 %v346
      %v363 = vunpack.c.l.bf16 %v347
      %v364 = vunpack.c.l.bf16 %v348
      %v365 = vunpack.c.l.bf16 %v349
      %v366 = vunpack.c.l.bf16 %v350
      %v367 = vunpack.c.l.bf16 %v351
      %v368 = vunpack.c.l.bf16 %v352
      %v369 = vld [vmem:[%s322] sm:$0xf]
      %v370 = vld [vmem:[%s322 + $0x4] sm:$0xf]
      %v371 = vld [vmem:[%s322 + $0x8] sm:$0xf]
      %v372 = vld [vmem:[%s322 + $0xc] sm:$0xf]
      %v373 = vld [vmem:[%s322 + $0x10] sm:$0xf]
      %v374 = vld [vmem:[%s322 + $0x14] sm:$0xf]
      %v375 = vld [vmem:[%s322 + $0x18] sm:$0xf]
      %v376 = vld [vmem:[%s322 + $0x1c] sm:$0xf]
      %v377 = vld [vmem:[%s322 + $0x20] sm:$0xf]
      %v378 = vld [vmem:[%s322 + $0x24] sm:$0xf]
      %v379 = vld [vmem:[%s322 + $0x28] sm:$0xf]
      %v380 = vld [vmem:[%s322 + $0x2c] sm:$0xf]
      %v381 = vld [vmem:[%s322 + $0x30] sm:$0xf]
      %v382 = vld [vmem:[%s322 + $0x34] sm:$0xf]
      %v383 = vld [vmem:[%s322 + $0x38] sm:$0xf]
      %v384 = vld [vmem:[%s322 + $0x3c] sm:$0xf]
      %v385 = vld [vmem:[%s2] sm:$0xf]
      %v386 = vld [vmem:[%s2 + $0x4] sm:$0xf]
      %v387 = vld [vmem:[%s2 + $0x8] sm:$0xf]
      %v388 = vld [vmem:[%s2 + $0xc] sm:$0xf]
      %v389 = vld [vmem:[%s2 + $0x10] sm:$0xf]
      %v390 = vld [vmem:[%s2 + $0x14] sm:$0xf]
      %v391 = vld [vmem:[%s2 + $0x18] sm:$0xf]
      %v392 = vld [vmem:[%s2 + $0x1c] sm:$0xf]
      %v393 = vld [vmem:[%s2 + $0x20] sm:$0xf]
      %v394 = vld [vmem:[%s2 + $0x24] sm:$0xf]
      %v395 = vld [vmem:[%s2 + $0x28] sm:$0xf]
      %v396 = vld [vmem:[%s2 + $0x2c] sm:$0xf]
      %v397 = vld [vmem:[%s2 + $0x30] sm:$0xf]
      %v398 = vld [vmem:[%s2 + $0x34] sm:$0xf]
      %v399 = vld [vmem:[%s2 + $0x38] sm:$0xf]
      %v400 = vld [vmem:[%s2 + $0x3c] sm:$0xf]
      %v401 = vld [vmem:[%s3] sm:$0x1]
      %v403 = vperm.slane %v401, 0
      %v421 = vunpack.c.l.b16 %v369
      %v422 = vunpack.c.l.b16 %v370
      %v423 = vunpack.c.l.b16 %v371
      %v424 = vunpack.c.l.b16 %v372
      %v425 = vunpack.c.l.b16 %v373
      %v426 = vunpack.c.l.b16 %v374
      %v427 = vunpack.c.l.b16 %v375
      %v428 = vunpack.c.l.b16 %v376
      %v429 = vunpack.c.l.b16 %v377
      %v430 = vunpack.c.l.b16 %v378
      %v431 = vunpack.c.l.b16 %v379
      %v432 = vunpack.c.l.b16 %v380
      %v433 = vunpack.c.l.b16 %v381
      %v434 = vunpack.c.l.b16 %v382
      %v435 = vunpack.c.l.b16 %v383
      %v436 = vunpack.c.l.b16 %v384
      %v437 = vpack.c.b16 %v422, %v421
      %v438 = vpack.c.b16 %v424, %v423
      %v439 = vpack.c.b16 %v426, %v425
      %v440 = vpack.c.b16 %v428, %v427
      %v441 = vpack.c.b16 %v430, %v429
      %v442 = vpack.c.b16 %v432, %v431
      %v443 = vpack.c.b16 %v434, %v433
      %v444 = vpack.c.b16 %v436, %v435
      %v469 = vunpack.c.l.b16 %v385
      %v470 = vunpack.c.l.b16 %v386
      %v471 = vunpack.c.l.b16 %v387
      %v472 = vunpack.c.l.b16 %v388
      %v473 = vunpack.c.l.b16 %v389
      %v474 = vunpack.c.l.b16 %v390
      %v475 = vunpack.c.l.b16 %v391
      %v476 = vunpack.c.l.b16 %v392
      %v477 = vunpack.c.l.b16 %v393
      %v478 = vunpack.c.l.b16 %v394
      %v479 = vunpack.c.l.b16 %v395
      %v480 = vunpack.c.l.b16 %v396
      %v481 = vunpack.c.l.b16 %v397
      %v482 = vunpack.c.l.b16 %v398
      %v483 = vunpack.c.l.b16 %v399
      %v484 = vunpack.c.l.b16 %v400
      %v485 = vpack.c.b16 %v470, %v469
      %v486 = vpack.c.b16 %v472, %v471
      %v487 = vpack.c.b16 %v474, %v473
      %v488 = vpack.c.b16 %v476, %v475
      %v489 = vpack.c.b16 %v478, %v477
      %v490 = vpack.c.b16 %v480, %v479
      %v491 = vpack.c.b16 %v482, %v481
      %v492 = vpack.c.b16 %v484, %v483
      %501 = vmatpush.bf16.msra.mxu0 %v492
      %502 = vmatpush.bf16.msra.mxu0 %v491
      %503 = vmatpush.bf16.msra.mxu0 %v490
      %504 = vmatpush.bf16.msra.mxu0 %v489
      %505 = vmatpush.bf16.msra.mxu0 %v488
      %506 = vmatpush.bf16.msra.mxu0 %v487
      %507 = vmatpush.bf16.msra.mxu0 %v486
      %508 = vmatpush.bf16.msra.mxu0 %v485
      %509 = vmatmul.bf16.gmra.mxu0 %v437
      %v510 = vpop.f32.mrf.mxu0
      %v511 = vadd.f32 %v403, %v510
      %v512 = vpop.f32.mrf.mxu0
      %v513 = vadd.f32 %v403, %v512
      %514 = vmatmul.bf16.gmra.mxu0 %v438
      %v515 = vpop.f32.mrf.mxu0
      %v516 = vadd.f32 %v403, %v515
      %v517 = vpop.f32.mrf.mxu0
      %v518 = vadd.f32 %v403, %v517
      %519 = vmatmul.bf16.gmra.mxu0 %v439
      %v520 = vpop.f32.mrf.mxu0
      %v521 = vadd.f32 %v403, %v520
      %v522 = vpop.f32.mrf.mxu0
      %v523 = vadd.f32 %v403, %v522
      %524 = vmatmul.bf16.gmra.mxu0 %v440
      %v525 = vpop.f32.mrf.mxu0
      %v526 = vadd.f32 %v403, %v525
      %v527 = vpop.f32.mrf.mxu0
      %v528 = vadd.f32 %v403, %v527
      %529 = vmatmul.bf16.gmra.mxu0 %v441
      %v530 = vpop.f32.mrf.mxu0
      %v531 = vadd.f32 %v403, %v530
      %v532 = vpop.f32.mrf.mxu0
      %v533 = vadd.f32 %v403, %v532
      %534 = vmatmul.bf16.gmra.mxu0 %v442
      %v535 = vpop.f32.mrf.mxu0
      %v536 = vadd.f32 %v403, %v535
      %v537 = vpop.f32.mrf.mxu0
      %v538 = vadd.f32 %v403, %v537
      %539 = vmatmul.bf16.gmra.mxu0 %v443
      %v540 = vpop.f32.mrf.mxu0
      %v541 = vadd.f32 %v403, %v540
      %v542 = vpop.f32.mrf.mxu0
      %v543 = vadd.f32 %v403, %v542
      %544 = vmatmul.bf16.gmra.mxu0 %v444
      %v545 = vpop.f32.mrf.mxu0
      %v546 = vadd.f32 %v403, %v545
      %v547 = vpop.f32.mrf.mxu0
      %v548 = vadd.f32 %v403, %v547
      %549 = vdwg.mxu0
      %v551 = vperm.slane %v335, 0
      %v553 = vmul.f32 %v353, %v551
      %v554 = vmul.f32 %v354, %v551
      %v555 = vmul.f32 %v355, %v551
      %v556 = vmul.f32 %v356, %v551
      %v557 = vmul.f32 %v357, %v551
      %v558 = vmul.f32 %v358, %v551
      %v559 = vmul.f32 %v359, %v551
      %v560 = vmul.f32 %v360, %v551
      %v561 = vmul.f32 %v361, %v551
      %v562 = vmul.f32 %v362, %v551
      %v563 = vmul.f32 %v363, %v551
      %v564 = vmul.f32 %v364, %v551
      %v565 = vmul.f32 %v365, %v551
      %v566 = vmul.f32 %v366, %v551
      %v567 = vmul.f32 %v367, %v551
      %v568 = vmul.f32 %v368, %v551
      %v570 = vperm.slane %v336, 0
      %v572 = vadd.f32 %v553, %v570
      %v573 = vadd.f32 %v554, %v570
      %v574 = vadd.f32 %v555, %v570
      %v575 = vadd.f32 %v556, %v570
      %v576 = vadd.f32 %v557, %v570
      %v577 = vadd.f32 %v558, %v570
      %v578 = vadd.f32 %v559, %v570
      %v579 = vadd.f32 %v560, %v570
      %v580 = vadd.f32 %v561, %v570
      %v581 = vadd.f32 %v562, %v570
      %v582 = vadd.f32 %v563, %v570
      %v583 = vadd.f32 %v564, %v570
      %v584 = vadd.f32 %v565, %v570
      %v585 = vadd.f32 %v566, %v570
      %v586 = vadd.f32 %v567, %v570
      %v587 = vadd.f32 %v568, %v570
      %v588 = vadd.f32 %v572, %v511
      %v589 = vadd.f32 %v573, %v513
      %v590 = vadd.f32 %v574, %v516
      %v591 = vadd.f32 %v575, %v518
      %v592 = vadd.f32 %v576, %v521
      %v593 = vadd.f32 %v577, %v523
      %v594 = vadd.f32 %v578, %v526
      %v595 = vadd.f32 %v579, %v528
      %v596 = vadd.f32 %v580, %v531
      %v597 = vadd.f32 %v581, %v533
      %v598 = vadd.f32 %v582, %v536
      %v599 = vadd.f32 %v583, %v538
      %v600 = vadd.f32 %v584, %v541
      %v601 = vadd.f32 %v585, %v543
      %v602 = vadd.f32 %v586, %v546
      %v603 = vadd.f32 %v587, %v548
      %v604 = vmax.f32 %v588, 0.0
      %v605 = vmax.f32 %v589, 0.0
      %v606 = vmax.f32 %v590, 0.0
      %v607 = vmax.f32 %v591, 0.0
      %v608 = vmax.f32 %v592, 0.0
      %v609 = vmax.f32 %v593, 0.0
      %v610 = vmax.f32 %v594, 0.0
      %v611 = vmax.f32 %v595, 0.0
      %v612 = vmax.f32 %v596, 0.0
      %v613 = vmax.f32 %v597, 0.0
      %v614 = vmax.f32 %v598, 0.0
      %v615 = vmax.f32 %v599, 0.0
      %v616 = vmax.f32 %v600, 0.0
      %v617 = vmax.f32 %v601, 0.0
      %v618 = vmax.f32 %v602, 0.0
      %v619 = vmax.f32 %v603, 0.0
      %620 = vst [vmem:[%s333] sm:$0xff] %v604
      %621 = vst [vmem:[%s333 + $0x8] sm:$0xff] %v605
      %622 = vst [vmem:[%s333 + $0x10] sm:$0xff] %v606
      %623 = vst [vmem:[%s333 + $0x18] sm:$0xff] %v607
      %624 = vst [vmem:[%s333 + $0x20] sm:$0xff] %v608
      %625 = vst [vmem:[%s333 + $0x28] sm:$0xff] %v609
      %626 = vst [vmem:[%s333 + $0x30] sm:$0xff] %v610
      %627 = vst [vmem:[%s333 + $0x38] sm:$0xff] %v611
      %628 = vst [vmem:[%s333 + $0x40] sm:$0xff] %v612
      %629 = vst [vmem:[%s333 + $0x48] sm:$0xff] %v613
      %630 = vst [vmem:[%s333 + $0x50] sm:$0xff] %v614
      %631 = vst [vmem:[%s333 + $0x58] sm:$0xff] %v615
      %632 = vst [vmem:[%s333 + $0x60] sm:$0xff] %v616
      %633 = vst [vmem:[%s333 + $0x68] sm:$0xff] %v617
      %634 = vst [vmem:[%s333 + $0x70] sm:$0xff] %v618
      %635 = vst [vmem:[%s333 + $0x78] sm:$0xff] %v619
      %s636 = smul.u32 8, %s22
      %p637 = scmp.lt.s32.totalorder %s21, 1
      %s638 = scalar_select %p637, %s21, 1
      %p639 = scmp.lt.s32.totalorder %s636, 15
      %s640 = scalar_select %p639, %s636, 15
      %s641 = smul.addr %s640, 2
      %s642 = smul.addr %s638, 32
      %s643 = sadd.s32 %s641, %s642
      %s644 = smul.addr %s643, 8
      %s645 = scalar_lea.vmem %s6, %s644
      // Predicated region
      $region45: #{residual_block_forward.5} parent=43 // pred_check
        %p646 = pneg %p189
      $region46: #{residual_block_forward.5} parent=43 // pred_check_branch
        %648 = sbr.rel (%p646) target = $region48
      $region47: #{residual_block_forward.5} parent=43 // pred_region
        %s649 = smul.u32 8, %s22
      $region48: #{residual_block_forward.5} parent=43 // pred_fallthru
        _
    $region44: #{residual_block_forward.5} parent=5 // pred_fallthru
      _
    %p650 = scmp.le.s32.totalorder 2, %s12
    // Predicated region
    $region49: #{residual_block_forward.5} parent=5 // pred_check
      %p651 = pneg %p650
    $region50: #{residual_block_forward.5} parent=5 // pred_check_branch
      %653 = sbr.rel (%p651) target = $region52
    $region51: #{residual_block_forward.5} parent=5 // pred_region
      %s654 = ssub.s32 %s12, 2
      // Predicated region
      $region53: #{residual_block_forward.5} parent=51 // pred_check
        %p655 = pneg %p195
      $region54: #{residual_block_forward.5} parent=51 // pred_check_branch
        %657 = sbr.rel (%p655) target = $region56
      $region55: #{residual_block_forward.5} parent=51 // pred_region
        %s658 = smul.u32 8, %s24
        %p659 = scmp.lt.s32.totalorder %s23, 1
        %s660 = scalar_select %p659, %s23, 1
        %p661 = scmp.lt.s32.totalorder %s658, 15
        %s662 = scalar_select %p661, %s658, 15
        %s663 = smul.addr %s662, 2
        %s664 = smul.addr %s660, 32
        %s665 = sadd.s32 %s663, %s664
        %s666 = smul.addr %s665, 8
        %s667 = scalar_lea.vmem %s6, %s666
      $region56: #{residual_block_forward.5} parent=51 // pred_fallthru
        _
    $region52: #{residual_block_forward.5} parent=5 // pred_fallthru
      _
  $region6: #{residual_block_forward.5} parent=0 // loop_footer
    %s16 = sadd.s32 1, %s12
  $region7: #{residual_block_forward.5} parent=0 // loop_footer_branch
    %11 = sbr.rel target = $region3
  $region8: #{residual_block_forward.5} parent=0 // loop_exit
    _

// kernel: residual_block_forward.3
$region0: #{residual_block_forward.3}
  #allocation0 [shape = 'u32[]', space=smem, size = 0x4, offset = 0x4, fixed_abs, tag = 'smem constant byte address 0x4 - core index']
  #allocation1 [shape = 'u32[72,128]{1,0:T(1,128)}', space=vmem, size = 0x9000, scoped, tag = 'internal scratch']
  %s0 = inlined_call_operand.vmem [shape: bf16[2,16,16,128], index: 0, kind: input, shape index: {}]
  %s1 = inlined_call_operand.vmem [shape: bf16[9,128,128], index: 1, kind: input, shape index: {}]
  %s2 = inlined_call_operand.vmem [shape: bf16[2,16,16,128], index: 2, kind: output, shape index: {0}]
  %s3 = inlined_call_operand.vmem [shape: f32[2,2,1,128], index: 3, kind: output, shape index: {1}]
  %s4 = inlined_call_operand.vmem [shape: f32[2,2,1,128], index: 4, kind: output, shape index: {2}]
  %5 = xla_tuple %s2, %s3, %s4
  %s6 = sld [smem:[#allocation0]]
  $region57: #{residual_block_forward.3} parent=0
    _
  %s8 = ssub.s32 1, %s6
  %s9 = scalar_select 0, %s8, %s6
  loop: start=0, step=1, limit=6
  $region2: #{residual_block_forward.3} parent=0 // loop_pre_header
    _
  $region3: #{residual_block_forward.3} parent=0 // loop_header
    %s11 = sphi 0, %s15
    %p12 = scmp.ge.s32.totalorder %s11, 6
    %s18 = sphi 0, %s30
    %s19 = sphi 0, %s26
    %s20 = sphi 0, %s18
    %s21 = sphi 0, %s19
    %s22 = sphi 0, %s20
    %s23 = sphi 0, %s21
    %s33 = sphi 0, %s35
    %s36 = sphi 0, %s33
    %s37 = sphi 0, %s36
    %s53 = sphi 0, %s37
    %s57 = sphi 0, %s57
    %s59 = sphi 0, %s57
    %s60 = sphi 0, %s59
    %s74 = sphi 0, %s60
    %s82 = sphi 0, %s84
    %s85 = sphi 0, %s82
    %s86 = sphi 0, %s85
    %s102 = sphi 0, %s86
    %s110 = sphi 0, %s112
    %s113 = sphi 0, %s110
    %s114 = sphi 0, %s113
    %s130 = sphi 0, %s114
    %s138 = sphi 0, %s140
    %s141 = sphi 0, %s138
    %s142 = sphi 0, %s141
    %s158 = sphi 0, %s142
  $region4: #{residual_block_forward.3} parent=0 // loop_header_branch
    %14 = sbr.rel (%p12) target = $region8
  $region5: #{residual_block_forward.3} parent=0 // loop_body
    %s16 = ssub.s32 %s11, 1
    %s17 = ssub.s32 %s11, 2
    %s24 = sadd.s32 1, %s19
    %p25 = scmp.ge.s32.totalorder %s24, 2
    %s26 = scalar_select %p25, 0, %s24
    %s27 = sadd.s32 1, %s18
    %s28 = scalar_select %p25, %s27, %s18
    %p29 = scmp.ge.s32.totalorder %s28, 2
    %s30 = scalar_select %p29, 0, %s28
    %s31 = ssub.s32 %s18, %s30
    %p32 = scmp.eq.s32.totalorder %s31, 0
    %s34 = sadd.s32 %s33, 1
    %s35 = scalar_select %p32, %s33, %s34
    %p38 = pneg %p32
    %p39 = scmp.eq.s32.totalorder %s11, 3
    %p40 = por %p38, %p39
    %p41 = scmp.ne.s32.totalorder %s33, %s36
    %p42 = scmp.eq.s32.totalorder %s11, 0
    %p43 = por %p41, %p42
    %p44 = scmp.ne.s32.totalorder %s33, %s36
    %p45 = scmp.eq.s32.totalorder %s16, 3
    %p46 = por %p44, %p45
    %p47 = scmp.ne.s32.totalorder %s36, %s37
    %p48 = scmp.eq.s32.totalorder %s16, 0
    %p49 = por %p47, %p48
    %p50 = scmp.ne.s32.totalorder %s36, %s37
    %p51 = scmp.eq.s32.totalorder %s17, 3
    %p52 = por %p50, %p51
    %p54 = scmp.ne.s32.totalorder %s37, %s53
    %p55 = scmp.eq.s32.totalorder %s17, 0
    %p56 = por %p54, %p55
    %s58 = sadd.s32 %s57, 1
    %p61 = scmp.eq.s32.totalorder %s11, 3
    %p62 = scmp.ne.s32.totalorder %s57, %s59
    %p63 = scmp.eq.s32.totalorder %s11, 0
    %p64 = por %p62, %p63
    %p65 = scmp.ne.s32.totalorder %s57, %s59
    %p66 = scmp.eq.s32.totalorder %s16, 3
    %p67 = por %p65, %p66
    %p68 = scmp.ne.s32.totalorder %s59, %s60
    %p69 = scmp.eq.s32.totalorder %s16, 0
    %p70 = por %p68, %p69
    %p71 = scmp.ne.s32.totalorder %s59, %s60
    %p72 = scmp.eq.s32.totalorder %s17, 3
    %p73 = por %p71, %p72
    %p75 = scmp.ne.s32.totalorder %s60, %s74
    %p76 = scmp.eq.s32.totalorder %s17, 0
    %p77 = por %p75, %p76
    %s78 = ssub.s32 %s18, %s30
    %s79 = ssub.s32 %s19, %s26
    %s80 = sor.u32 %s78, %s79
    %p81 = scmp.eq.s32.totalorder %s80, 0
    %s83 = sadd.s32 %s82, 1
    %s84 = scalar_select %p81, %s82, %s83
    %p87 = pneg %p81
    %p88 = scmp.eq.s32.totalorder %s11, 3
    %p89 = por %p87, %p88
    %p90 = scmp.ne.s32.totalorder %s82, %s85
    %p91 = scmp.eq.s32.totalorder %s11, 0
    %p92 = por %p90, %p91
    %p93 = scmp.ne.s32.totalorder %s82, %s85
    %p94 = scmp.eq.s32.totalorder %s16, 3
    %p95 = por %p93, %p94
    %p96 = scmp.ne.s32.totalorder %s85, %s86
    %p97 = scmp.eq.s32.totalorder %s16, 0
    %p98 = por %p96, %p97
    %p99 = scmp.ne.s32.totalorder %s85, %s86
    %p100 = scmp.eq.s32.totalorder %s17, 3
    %p101 = por %p99, %p100
    %p103 = scmp.ne.s32.totalorder %s86, %s102
    %p104 = scmp.eq.s32.totalorder %s17, 0
    %p105 = por %p103, %p104
    %s106 = ssub.s32 %s18, %s30
    %s107 = ssub.s32 %s19, %s26
    %s108 = sor.u32 %s106, %s107
    %p109 = scmp.eq.s32.totalorder %s108, 0
    %s111 = sadd.s32 %s110, 1
    %s112 = scalar_select %p109, %s110, %s111
    %p115 = pneg %p109
    %p116 = scmp.eq.s32.totalorder %s11, 3
    %p117 = por %p115, %p116
    %p118 = scmp.ne.s32.totalorder %s110, %s113
    %p119 = scmp.eq.s32.totalorder %s11, 0
    %p120 = por %p118, %p119
    %p121 = scmp.ne.s32.totalorder %s110, %s113
    %p122 = scmp.eq.s32.totalorder %s16, 3
    %p123 = por %p121, %p122
    %p124 = scmp.ne.s32.totalorder %s113, %s114
    %p125 = scmp.eq.s32.totalorder %s16, 0
    %p126 = por %p124, %p125
    %p127 = scmp.ne.s32.totalorder %s113, %s114
    %p128 = scmp.eq.s32.totalorder %s17, 3
    %p129 = por %p127, %p128
    %p131 = scmp.ne.s32.totalorder %s114, %s130
    %p132 = scmp.eq.s32.totalorder %s17, 0
    %p133 = por %p131, %p132
    %s134 = ssub.s32 %s18, %s30
    %s135 = ssub.s32 %s19, %s26
    %s136 = sor.u32 %s134, %s135
    %p137 = scmp.eq.s32.totalorder %s136, 0
    %s139 = sadd.s32 %s138, 1
    %s140 = scalar_select %p137, %s138, %s139
    %p143 = pneg %p137
    %p144 = scmp.eq.s32.totalorder %s11, 3
    %p145 = por %p143, %p144
    %p146 = scmp.ne.s32.totalorder %s138, %s141
    %p147 = scmp.eq.s32.totalorder %s11, 0
    %p148 = por %p146, %p147
    %p149 = scmp.ne.s32.totalorder %s138, %s141
    %p150 = scmp.eq.s32.totalorder %s16, 3
    %p151 = por %p149, %p150
    %p152 = scmp.ne.s32.totalorder %s141, %s142
    %p153 = scmp.eq.s32.totalorder %s16, 0
    %p154 = por %p152, %p153
    %p155 = scmp.ne.s32.totalorder %s141, %s142
    %p156 = scmp.eq.s32.totalorder %s17, 3
    %p157 = por %p155, %p156
    %p159 = scmp.ne.s32.totalorder %s142, %s158
    %p160 = scmp.eq.s32.totalorder %s17, 0
    %p161 = por %p159, %p160
    %p162 = scmp.le.s32.totalorder 1, %s11
    %p163 = scmp.lt.s32.totalorder %s11, 5
    %p164 = pnand %p162, %p163
    %p165 = pneg %p164
    // Predicated region
    $region9: #{residual_block_forward.3} parent=5 // pred_check
      _
    $region10: #{residual_block_forward.3} parent=5 // pred_check_branch
      %167 = sbr.rel (%p164) target = $region12
    $region11: #{residual_block_forward.3} parent=5 // pred_region
      %s168 = ssub.s32 %s11, 1
      // Predicated region
      $region13: #{residual_block_forward.3} parent=11 // pred_check
        %p169 = pneg %p70
      $region14: #{residual_block_forward.3} parent=11 // pred_check_branch
        %171 = sbr.rel (%p169) target = $region16
      $region15: #{residual_block_forward.3} parent=11 // pred_region
        _
      $region16: #{residual_block_forward.3} parent=11 // pred_fallthru
        _
    $region12: #{residual_block_forward.3} parent=5 // pred_fallthru
      _
    %p172 = scmp.lt.s32.totalorder %s11, 4
    // Predicated region
    $region17: #{residual_block_forward.3} parent=5 // pred_check
      %p173 = pneg %p172
    $region18: #{residual_block_forward.3} parent=5 // pred_check_branch
      %175 = sbr.rel (%p173) target = $region20
    $region19: #{residual_block_forward.3} parent=5 // pred_region
      // Predicated region
      $region21: #{residual_block_forward.3} parent=19 // pred_check
        %p176 = pneg %p43
      $region22: #{residual_block_forward.3} parent=19 // pred_check_branch
        %178 = sbr.rel (%p176) target = $region24
      $region23: #{residual_block_forward.3} parent=19 // pred_region
        %p179 = scmp.lt.s32.totalorder %s18, 1
        %s180 = scalar_select %p179, %s18, 1
        %s181 = smul.addr %s180, 32
        %s182 = smul.addr %s181, 4
        %s183 = scalar_lea.vmem %s0, %s182
      $region24: #{residual_block_forward.3} parent=19 // pred_fallthru
        _
    $region20: #{residual_block_forward.3} parent=5 // pred_fallthru
      _
    %p184 = scmp.le.s32.totalorder 1, %s11
    %p185 = scmp.lt.s32.totalorder %s11, 5
    %p186 = pnand %p184, %p185
    %p187 = pneg %p186
    // Predicated region
    $region25: #{residual_block_forward.3} parent=5 // pred_check
      _
    $region26: #{residual_block_forward.3} parent=5 // pred_check_branch
      %189 = sbr.rel (%p186) target = $region28
    $region27: #{residual_block_forward.3} parent=5 // pred_region
      %s190 = ssub.s32 %s11, 1
      %p191 = scmp.lt.s32.totalorder %s20, 1
      %s192 = scalar_select %p191, %s20, 1
      %s193 = smul.addr %s192, 32
      %s194 = smul.addr %s193, 4
      %s195 = scalar_lea.vmem %s0, %s194
      %p196 = pneg %p49
      %p197 = pneg %p46
      %p198 = pneg %p70
      %p199 = pneg %p67
      %p200 = pneg %p98
      %p201 = pneg %p95
      %s202 = smul.u32 8, %s21
      %p203 = scmp.lt.s32.totalorder %s20, 1
      %s204 = scalar_select %p203, %s20, 1
      %p205 = scmp.lt.s32.totalorder %s202, 15
      %s206 = scalar_select %p205, %s202, 15
      %s207 = smul.addr %s206, 2
      %s208 = smul.addr %s204, 32
      %s209 = sadd.s32 %s207, %s208
      %s210 = smul.addr %s209, 4
      %s211 = scalar_lea.vmem %s2, %s210
      %p212 = pneg %p126
      %p213 = pneg %p123
      %p214 = scmp.lt.s32.totalorder %s20, 1
      %s215 = scalar_select %p214, %s20, 1
      %p216 = scmp.lt.s32.totalorder %s21, 1
      %s217 = scalar_select %p216, %s21, 1
      %s218 = smul.addr %s215, 2
      %s219 = sadd.s32 %s217, %s218
      %s220 = scalar_lea.vmem %s3, %s219
      %p221 = pneg %p154
      %p222 = pneg %p151
      %p223 = scmp.lt.s32.totalorder %s20, 1
      %s224 = scalar_select %p223, %s20, 1
      %p225 = scmp.lt.s32.totalorder %s21, 1
      %s226 = scalar_select %p225, %s21, 1
      %s227 = smul.addr %s224, 2
      %s228 = sadd.s32 %s226, %s227
      %s229 = scalar_lea.vmem %s4, %s228
      %p230 = scmp.lt.s32.totalorder %s20, 1
      %s231 = scalar_select %p230, %s20, 1
      %s232 = smul.addr %s231, 32
      %s233 = smul.addr %s232, 4
      %s234 = scalar_lea.vmem %s0, %s233
      %s235 = smul.u32 8, %s21
      %p236 = scmp.lt.s32.totalorder %s20, 1
      %s237 = scalar_select %p236, %s20, 1
      %p238 = scmp.lt.s32.totalorder %s235, 15
      %s239 = scalar_select %p238, %s235, 15
      %s240 = smul.addr %s239, 2
      %s241 = smul.addr %s237, 32
      %s242 = sadd.s32 %s240, %s241
      %s243 = smul.addr %s242, 4
      %s244 = scalar_lea.vmem %s2, %s243
      %s245 = smul.u32 8, %s21
      %p246 = scmp.lt.s32.totalorder %s20, 1
      %s247 = scalar_select %p246, %s20, 1
      %p248 = scmp.lt.s32.totalorder %s21, 1
      %s249 = scalar_select %p248, %s21, 1
      %s250 = smul.addr %s247, 2
      %s251 = sadd.s32 %s249, %s250
      %s252 = scalar_lea.vmem %s3, %s251
      %p253 = scmp.lt.s32.totalorder %s20, 1
      %s254 = scalar_select %p253, %s20, 1
      %p255 = scmp.lt.s32.totalorder %s21, 1
      %s256 = scalar_select %p255, %s21, 1
      %s257 = smul.addr %s254, 2
      %s258 = sadd.s32 %s256, %s257
      %s259 = scalar_lea.vmem %s4, %s258
      %s261 = smul.u32 %s21, 8
      %s262 = ssub.s32 %s261, 1
      %p263 = scmp.gt.s32.totalorder %s262, 0
      %s264 = scalar_select %p263, %s262, 0
      %s265 = smul.u32 %s264, 2
      %s266 = smul.addr %s265, 4
      %s267 = scalar_lea.vmem %s234, %s266
      %v268 = vld [vmem:[%s267] sm:$0xf]
      %v269 = vld [vmem:[%s267 + $0x4] sm:$0xf]
      %s270 = smul.u32 %s261, 2
      %s271 = smul.addr %s270, 4
      %s272 = scalar_lea.vmem %s234, %s271
      %v273 = vld [vmem:[%s272] sm:$0xf]
      %v274 = vld [vmem:[%s272 + $0x4] sm:$0xf]
      %v275 = vld [vmem:[%s272 + $0x8] sm:$0xf]
      %v276 = vld [vmem:[%s272 + $0xc] sm:$0xf]
      %v277 = vld [vmem:[%s272 + $0x10] sm:$0xf]
      %v278 = vld [vmem:[%s272 + $0x14] sm:$0xf]
      %v279 = vld [vmem:[%s272 + $0x18] sm:$0xf]
      %v280 = vld [vmem:[%s272 + $0x1c] sm:$0xf]
      %v281 = vld [vmem:[%s272 + $0x20] sm:$0xf]
      %v282 = vld [vmem:[%s272 + $0x24] sm:$0xf]
      %v283 = vld [vmem:[%s272 + $0x28] sm:$0xf]
      %v284 = vld [vmem:[%s272 + $0x2c] sm:$0xf]
      %v285 = vld [vmem:[%s272 + $0x30] sm:$0xf]
      %v286 = vld [vmem:[%s272 + $0x34] sm:$0xf]
      %v287 = vld [vmem:[%s272 + $0x38] sm:$0xf]
      %v288 = vld [vmem:[%s272 + $0x3c] sm:$0xf]
      %s289 = sadd.s32 %s261, 8
      %p290 = scmp.lt.s32.totalorder %s289, 15
      %s291 = scalar_select %p290, %s289, 15
      %s292 = smul.u32 %s291, 2
      %s293 = smul.addr %s292, 4
      %s294 = scalar_lea.vmem %s234, %s293
      %v295 = vld [vmem:[%s294] sm:$0xf]
      %v296 = vld [vmem:[%s294 + $0x4] sm:$0xf]
      %v297 = vstv %s262
      %v298 = vadd.s32 %v297, 1
      %v299 = vadd.s32 %v297, 2
      %v300 = vadd.s32 %v297, 3
      %v301 = vadd.s32 %v297, 4
      %v302 = vadd.s32 %v297, 5
      %v303 = vadd.s32 %v297, 6
      %v304 = vadd.s32 %v297, 7
      %v305 = vadd.s32 %v297, 8
      %v306 = vadd.s32 %v297, 9
      %vm307 = vcmp.ge.s32.totalorder %v297, 0
      %vm308 = vcmp.ge.s32.totalorder %v298, 0
      %vm309 = vcmp.ge.s32.totalorder %v299, 0
      %vm310 = vcmp.ge.s32.totalorder %v300, 0
      %vm311 = vcmp.ge.s32.totalorder %v301, 0
      %vm312 = vcmp.ge.s32.totalorder %v302, 0
      %vm313 = vcmp.ge.s32.totalorder %v303, 0
      %vm314 = vcmp.ge.s32.totalorder %v304, 0
      %vm315 = vcmp.ge.s32.totalorder %v305, 0
      %vm316 = vcmp.ge.s32.totalorder %v306, 0
      %vm317 = vcmp.le.s32.totalorder %v297, 15
      %vm318 = vcmp.le.s32.totalorder %v298, 15
      %vm319 = vcmp.le.s32.totalorder %v299, 15
      %vm320 = vcmp.le.s32.totalorder %v300, 15
      %vm321 = vcmp.le.s32.totalorder %v301, 15
      %vm322 = vcmp.le.s32.totalorder %v302, 15
      %vm323 = vcmp.le.s32.totalorder %v303, 15
      %vm324 = vcmp.le.s32.totalorder %v304, 15
      %vm325 = vcmp.le.s32.totalorder %v305, 15
      %vm326 = vcmp.le.s32.totalorder %v306, 15
      %vm327 = vmand %vm307, %vm317
      %vm328 = vmand %vm308, %vm318
      %vm329 = vmand %vm309, %vm319
      %vm330 = vmand %vm310, %vm320
      %vm331 = vmand %vm311, %vm321
      %vm332 = vmand %vm312, %vm322
      %vm333 = vmand %vm313, %vm323
      %vm334 = vmand %vm314, %vm324
      %vm335 = vmand %vm315, %vm325
      %vm336 = vmand %vm316, %vm326
      %v337 = vsel %vm327, 1, 0
      %v338 = vsel %vm328, 1, 0
      %v339 = vsel %vm329, 1, 0
      %v340 = vsel %vm330, 1, 0
      %v341 = vsel %vm331, 1, 0
      %v342 = vsel %vm332, 1, 0
      %v343 = vsel %vm333, 1, 0
      %v344 = vsel %vm334, 1, 0
      %v345 = vsel %vm335, 1, 0
      %v346 = vsel %vm336, 1, 0
      %vm347 = vcmp.eq.s32.totalorder %v337, 1
      %vm348 = vcmp.eq.s32.totalorder %v338, 1
      %vm349 = vcmp.eq.s32.totalorder %v339, 1
      %vm350 = vcmp.eq.s32.totalorder %v340, 1
      %vm351 = vcmp.eq.s32.totalorder %v341, 1
      %vm352 = vcmp.eq.s32.totalorder %v342, 1
      %vm353 = vcmp.eq.s32.totalorder %v343, 1
      %vm354 = vcmp.eq.s32.totalorder %v344, 1
      %vm355 = vcmp.eq.s32.totalorder %v345, 1
      %vm356 = vcmp.eq.s32.totalorder %v346, 1
      %v357 = vsel %vm347, %v268, 0
      %v358 = vsel %vm347, %v269, 0
      %v359 = vsel %vm348, %v273, 0
      %v360 = vsel %vm348, %v274, 0
      %v361 = vsel %vm349, %v275, 0
      %v362 = vsel %vm349, %v276, 0
      %v363 = vsel %vm350, %v277, 0
      %v364 = vsel %vm350, %v278, 0
      %v365 = vsel %vm351, %v279, 0
      %v366 = vsel %vm351, %v280, 0
      %v367 = vsel %vm352, %v281, 0
      %v368 = vsel %vm352, %v282, 0
      %v369 = vsel %vm353, %v283, 0
      %v370 = vsel %vm353, %v284, 0
      %v371 = vsel %vm354, %v285, 0
      %v372 = vsel %vm354, %v286, 0
      %v373 = vsel %vm355, %v287, 0
      %v374 = vsel %vm355, %v288, 0
      %v375 = vsel %vm356, %v295, 0
      %v376 = vsel %vm356, %v296, 0
      %v393 = vunpack.c.l.b16 %v357
      %v394 = vunpack.c.l.b16 %v358
      %v395 = vunpack.c.l.b16 %v359
      %v396 = vunpack.c.l.b16 %v360
      %v397 = vunpack.c.l.b16 %v361
      %v398 = vunpack.c.l.b16 %v362
      %v399 = vunpack.c.l.b16 %v363
      %v400 = vunpack.c.l.b16 %v364
      %v401 = vunpack.c.l.b16 %v365
      %v402 = vunpack.c.l.b16 %v366
      %v403 = vunpack.c.l.b16 %v367
      %v404 = vunpack.c.l.b16 %v368
      %v405 = vunpack.c.l.b16 %v369
      %v406 = vunpack.c.l.b16 %v370
      %v407 = vunpack.c.l.b16 %v371
      %v408 = vunpack.c.l.b16 %v372
      %v409 = vpack.c.b16 %v394, %v393
      %v410 = vpack.c.b16 %v396, %v395
      %v411 = vpack.c.b16 %v398, %v397
      %v412 = vpack.c.b16 %v400, %v399
      %v413 = vpack.c.b16 %v402, %v401
      %v414 = vpack.c.b16 %v404, %v403
      %v415 = vpack.c.b16 %v406, %v405
      %v416 = vpack.c.b16 %v408, %v407
      %v418 = vshrl.u32 %v409, 16
      %v420 = vrot.slane %v418, 7
      %v421 = vshll.u32 %v409, 16
      %v423 = vor.u32 %v420, %v421
      %v425 = vshrl.u32 %v410, 16
      %v427 = vrot.slane %v425, 7
      %v428 = vshll.u32 %v410, 16
      %v430 = vor.u32 %v427, %v428
      %v432 = vshrl.u32 %v411, 16
      %v434 = vrot.slane %v432, 7
      %v435 = vshll.u32 %v411, 16
      %v437 = vor.u32 %v434, %v435
      %v439 = vshrl.u32 %v412, 16
      %v441 = vrot.slane %v439, 7
      %v442 = vshll.u32 %v412, 16
      %v444 = vor.u32 %v441, %v442
      %v446 = vshrl.u32 %v413, 16
      %v448 = vrot.slane %v446, 7
      %v449 = vshll.u32 %v413, 16
      %v451 = vor.u32 %v448, %v449
      %v453 = vshrl.u32 %v414, 16
      %v455 = vrot.slane %v453, 7
      %v456 = vshll.u32 %v414, 16
      %v458 = vor.u32 %v455, %v456
      %v460 = vshrl.u32 %v415, 16
      %v462 = vrot.slane %v460, 7
      %v463 = vshll.u32 %v415, 16
      %v465 = vor.u32 %v462, %v463
      %v467 = vshrl.u32 %v416, 16
      %v469 = vrot.slane %v467, 7
      %v470 = vshll.u32 %v416, 16
      %v472 = vor.u32 %v469, %v470
      %vm481 = vcmask 1040384
      %vm482 = vsmask.f32 256
      %vm483 = vmand %vm481, %vm482
      %v484 = vsel %vm483, 0, %v423
      %v485 = vsel %vm483, 0, %v430
      %v486 = vsel %vm483, 0, %v437
      %v487 = vsel %vm483, 0, %v444
      %v488 = vsel %vm483, 0, %v451
      %v489 = vsel %vm483, 0, %v458
      %v490 = vsel %vm483, 0, %v465
      %v491 = vsel %vm483, 0, %v472
      %v492 = vld [vmem:[%s1] sm:$0xf]
      %v493 = vld [vmem:[%s1 + $0x4] sm:$0xf]
      %v494 = vld [vmem:[%s1 + $0x8] sm:$0xf]
      %v495 = vld [vmem:[%s1 + $0xc] sm:$0xf]
      %v496 = vld [vmem:[%s1 + $0x10] sm:$0xf]
      %v497 = vld [vmem:[%s1 + $0x14] sm:$0xf]
      %v498 = vld [vmem:[%s1 + $0x18] sm:$0xf]
      %v499 = vld [vmem:[%s1 + $0x1c] sm:$0xf]
      %v500 = vld [vmem:[%s1 + $0x20] sm:$0xf]
      %v501 = vld [vmem:[%s1 + $0x24] sm:$0xf]
      %v502 = vld [vmem:[%s1 + $0x28] sm:$0xf]
      %v503 = vld [vmem:[%s1 + $0x2c] sm:$0xf]
      %v504 = vld [vmem:[%s1 + $0x30] sm:$0xf]
      %v505 = vld [vmem:[%s1 + $0x34] sm:$0xf]
      %v506 = vld [vmem:[%s1 + $0x38] sm:$0xf]
      %v507 = vld [vmem:[%s1 + $0x3c] sm:$0xf]
      %s508 = scalar_lea.vmem %s1, 64
      %v509 = vld [vmem:[%s508] sm:$0xf]
      %v510 = vld [vmem:[%s508 + $0x4] sm:$0xf]
      %v511 = vld [vmem:[%s508 + $0x8] sm:$0xf]
      %v512 = vld [vmem:[%s508 + $0xc] sm:$0xf]
      %v513 = vld [vmem:[%s508 + $0x10] sm:$0xf]
      %v514 = vld [vmem:[%s508 + $0x14] sm:$0xf]
      %v515 = vld [vmem:[%s508 + $0x18] sm:$0xf]
      %v516 = vld [vmem:[%s508 + $0x1c] sm:$0xf]
      %v517 = vld [vmem:[%s508 + $0x20] sm:$0xf]
      %v518 = vld [vmem:[%s508 + $0x24] sm:$0xf]
      %v519 = vld [vmem:[%s508 + $0x28] sm:$0xf]
      %v520 = vld [vmem:[%s508 + $0x2c] sm:$0xf]
      %v521 = vld [vmem:[%s508 + $0x30] sm:$0xf]
      %v522 = vld [vmem:[%s508 + $0x34] sm:$0xf]
      %v523 = vld [vmem:[%s508 + $0x38] sm:$0xf]
      %v524 = vld [vmem:[%s508 + $0x3c] sm:$0xf]
      %v549 = vunpack.c.l.b16 %v509
      %v550 = vunpack.c.l.b16 %v510
      %v551 = vunpack.c.l.b16 %v511
      %v552 = vunpack.c.l.b16 %v512
      %v553 = vunpack.c.l.b16 %v513
      %v554 = vunpack.c.l.b16 %v514
      %v555 = vunpack.c.l.b16 %v515
      %v556 = vunpack.c.l.b16 %v516
      %v557 = vunpack.c.l.b16 %v517
      %v558 = vunpack.c.l.b16 %v518
      %v559 = vunpack.c.l.b16 %v519
      %v560 = vunpack.c.l.b16 %v520
      %v561 = vunpack.c.l.b16 %v521
      %v562 = vunpack.c.l.b16 %v522
      %v563 = vunpack.c.l.b16 %v523
      %v564 = vunpack.c.l.b16 %v524
      %v565 = vpack.c.b16 %v550, %v549
      %v566 = vpack.c.b16 %v552, %v551
      %v567 = vpack.c.b16 %v554, %v553
      %v568 = vpack.c.b16 %v556, %v555
      %v569 = vpack.c.b16 %v558, %v557
      %v570 = vpack.c.b16 %v560, %v559
      %v571 = vpack.c.b16 %v562, %v561
      %v572 = vpack.c.b16 %v564, %v563
      %581 = vmatpush.bf16.msra.mxu0 %v572
      %582 = vmatpush.bf16.msra.mxu0 %v571
      %583 = vmatpush.bf16.msra.mxu0 %v570
      %584 = vmatpush.bf16.msra.mxu0 %v569
      %585 = vmatpush.bf16.msra.mxu0 %v568
      %586 = vmatpush.bf16.msra.mxu0 %v567
      %587 = vmatpush.bf16.msra.mxu0 %v566
      %588 = vmatpush.bf16.msra.mxu0 %v565
      %589 = vmatmul.bf16.gmra.mxu0 %v409
      %v590 = vpop.f32.mrf.mxu0
      %v591 = vadd.f32 0.0, %v590
      %v592 = vpop.f32.mrf.mxu0
      %v593 = vadd.f32 0.0, %v592
      %594 = vmatmul.bf16.gmra.mxu0 %v410
      %v595 = vpop.f32.mrf.mxu0
      %v596 = vadd.f32 0.0, %v595
      %v597 = vpop.f32.mrf.mxu0
      %v598 = vadd.f32 0.0, %v597
      %599 = vmatmul.bf16.gmra.mxu0 %v411
      %v600 = vpop.f32.mrf.mxu0
      %v601 = vadd.f32 0.0, %v600
      %v602 = vpop.f32.mrf.mxu0
      %v603 = vadd.f32 0.0, %v602
      %604 = vmatmul.bf16.gmra.mxu0 %v412
      %v605 = vpop.f32.mrf.mxu0
      %v606 = vadd.f32 0.0, %v605
      %v607 = vpop.f32.mrf.mxu0
      %v608 = vadd.f32 0.0, %v607
      %609 = vmatmul.bf16.gmra.mxu0 %v413
      %v610 = vpop.f32.mrf.mxu0
      %v611 = vadd.f32 0.0, %v610
      %v612 = vpop.f32.mrf.mxu0
      %v613 = vadd.f32 0.0, %v612
      %614 = vmatmul.bf16.gmra.mxu0 %v414
      %v615 = vpop.f32.mrf.mxu0
      %v616 = vadd.f32 0.0, %v615
      %v617 = vpop.f32.mrf.mxu0
      %v618 = vadd.f32 0.0, %v617
      %619 = vmatmul.bf16.gmra.mxu0 %v415
      %v620 = vpop.f32.mrf.mxu0
      %v621 = vadd.f32 0.0, %v620
      %v622 = vpop.f32.mrf.mxu0
      %v623 = vadd.f32 0.0, %v622
      %624 = vmatmul.bf16.gmra.mxu0 %v416
      %v625 = vpop.f32.mrf.mxu0
      %v626 = vadd.f32 0.0, %v625
      %v627 = vpop.f32.mrf.mxu0
      %v628 = vadd.f32 0.0, %v627
      %629 = vdwg.mxu0
      %v646 = vunpack.c.l.b16 %v492
      %v647 = vunpack.c.l.b16 %v493
      %v648 = vunpack.c.l.b16 %v494
      %v649 = vunpack.c.l.b16 %v495
      %v650 = vunpack.c.l.b16 %v496
      %v651 = vunpack.c.l.b16 %v497
      %v652 = vunpack.c.l.b16 %v498
      %v653 = vunpack.c.l.b16 %v499
      %v654 = vunpack.c.l.b16 %v500
      %v655 = vunpack.c.l.b16 %v501
      %v656 = vunpack.c.l.b16 %v502
      %v657 = vunpack.c.l.b16 %v503
      %v658 = vunpack.c.l.b16 %v504
      %v659 = vunpack.c.l.b16 %v505
      %v660 = vunpack.c.l.b16 %v506
      %v661 = vunpack.c.l.b16 %v507
      %v662 = vpack.c.b16 %v647, %v646
      %v663 = vpack.c.b16 %v649, %v648
      %v664 = vpack.c.b16 %v651, %v650
      %v665 = vpack.c.b16 %v653, %v652
      %v666 = vpack.c.b16 %v655, %v654
      %v667 = vpack.c.b16 %v657, %v656
      %v668 = vpack.c.b16 %v659, %v658
      %v669 = vpack.c.b16 %v661, %v660
      %678 = vmatpush.bf16.msra.mxu0 %v669
      %679 = vmatpush.bf16.msra.mxu0 %v668
      %680 = vmatpush.bf16.msra.mxu0 %v667
      %681 = vmatpush.bf16.msra.mxu0 %v666
      %682 = vmatpush.bf16.msra.mxu0 %v665
      %683 = vmatpush.bf16.msra.mxu0 %v664
      %684 = vmatpush.bf16.msra.mxu0 %v663
      %685 = vmatpush.bf16.msra.mxu0 %v662
      %686 = vmatmul.bf16.gmra.mxu0 %v484
      %v687 = vpop.f32.mrf.mxu0
      %v688 = vadd.f32 %v591, %v687
      %v689 = vpop.f32.mrf.mxu0
      %v690 = vadd.f32 %v593, %v689
      %691 = vmatmul.bf16.gmra.mxu0 %v485
      %v692 = vpop.f32.mrf.mxu0
      %v693 = vadd.f32 %v596, %v692
      %v694 = vpop.f32.mrf.mxu0
      %v695 = vadd.f32 %v598, %v694
      %696 = vmatmul.bf16.gmra.mxu0 %v486
      %v697 = vpop.f32.mrf.mxu0
      %v698 = vadd.f32 %v601, %v697
      %v699 = vpop.f32.mrf.mxu0
      %v700 = vadd.f32 %v603, %v699
      %701 = vmatmul.bf16.gmra.mxu0 %v487
      %v702 = vpop.f32.mrf.mxu0
      %v703 = vadd.f32 %v606, %v702
      %v704 = vpop.f32.mrf.mxu0
      %v705 = vadd.f32 %v608, %v704
      %706 = vmatmul.bf16.gmra.mxu0 %v488
      %v707 = vpop.f32.mrf.mxu0
      %v708 = vadd.f32 %v611, %v707
      %v709 = vpop.f32.mrf.mxu0
      %v710 = vadd.f32 %v613, %v709
      %711 = vmatmul.bf16.gmra.mxu0 %v489
      %v712 = vpop.f32.mrf.mxu0
      %v713 = vadd.f32 %v616, %v712
      %v714 = vpop.f32.mrf.mxu0
      %v715 = vadd.f32 %v618, %v714
      %716 = vmatmul.bf16.gmra.mxu0 %v490
      %v717 = vpop.f32.mrf.mxu0
      %v718 = vadd.f32 %v621, %v717
      %v719 = vpop.f32.mrf.mxu0
      %v720 = vadd.f32 %v623, %v719
      %721 = vmatmul.bf16.gmra.mxu0 %v491
      %v722 = vpop.f32.mrf.mxu0
      %v723 = vadd.f32 %v626, %v722
      %v724 = vpop.f32.mrf.mxu0
      %v725 = vadd.f32 %v628, %v724
      %726 = vdwg.mxu0
      %v727 = vrot.slane %v421, 1
      %v728 = vor.u32 %v418, %v727
      %v729 = vrot.slane %v428, 1
      %v730 = vor.u32 %v425, %v729
      %v731 = vrot.slane %v435, 1
      %v732 = vor.u32 %v432, %v731
      %v733 = vrot.slane %v442, 1
      %v734 = vor.u32 %v439, %v733
      %v735 = vrot.slane %v449, 1
      %v736 = vor.u32 %v446, %v735
      %v737 = vrot.slane %v456, 1
      %v738 = vor.u32 %v453, %v737
      %v739 = vrot.slane %v463, 1
      %v740 = vor.u32 %v460, %v739
      %v741 = vrot.slane %v470, 1
      %v742 = vor.u32 %v467, %v741
      %vm751 = vcmask 1047552
      %vm752 = vsmask.f32 7424
      %vm753 = vmand %vm751, %vm752
      %v754 = vsel %vm753, %v728, 0
      %v755 = vsel %vm753, %v730, 0
      %v756 = vsel %vm753, %v732, 0
      %v757 = vsel %vm753, %v734, 0
      %v758 = vsel %vm753, %v736, 0
      %v759 = vsel %vm753, %v738, 0
      %v760 = vsel %vm753, %v740, 0
      %v761 = vsel %vm753, %v742, 0
      %s762 = scalar_lea.vmem %s1, 128
      %v763 = vld [vmem:[%s762] sm:$0xf]
      %v764 = vld [vmem:[%s762 + $0x4] sm:$0xf]
      %v765 = vld [vmem:[%s762 + $0x8] sm:$0xf]
      %v766 = vld [vmem:[%s762 + $0xc] sm:$0xf]
      %v767 = vld [vmem:[%s762 + $0x10] sm:$0xf]
      %v768 = vld [vmem:[%s762 + $0x14] sm:$0xf]
      %v769 = vld [vmem:[%s762 + $0x18] sm:$0xf]
      %v770 = vld [vmem:[%s762 + $0x1c] sm:$0xf]
      %v771 = vld [vmem:[%s762 + $0x20] sm:$0xf]
      %v772 = vld [vmem:[%s762 + $0x24] sm:$0xf]
      %v773 = vld [vmem:[%s762 + $0x28] sm:$0xf]
      %v774 = vld [vmem:[%s762 + $0x2c] sm:$0xf]
      %v775 = vld [vmem:[%s762 + $0x30] sm:$0xf]
      %v776 = vld [vmem:[%s762 + $0x34] sm:$0xf]
      %v777 = vld [vmem:[%s762 + $0x38] sm:$0xf]
      %v778 = vld [vmem:[%s762 + $0x3c] sm:$0xf]
      %v795 = vunpack.c.l.b16 %v763
      %v796 = vunpack.c.l.b16 %v764
      %v797 = vunpack.c.l.b16 %v765
      %v798 = vunpack.c.l.b16 %v766
      %v799 = vunpack.c.l.b16 %v767
      %v800 = vunpack.c.l.b16 %v768
      %v801 = vunpack.c.l.b16 %v769
      %v802 = vunpack.c.l.b16 %v770
      %v803 = vunpack.c.l.b16 %v771
      %v804 = vunpack.c.l.b16 %v772
      %v805 = vunpack.c.l.b16 %v773
      %v806 = vunpack.c.l.b16 %v774
      %v807 = vunpack.c.l.b16 %v775
      %v808 = vunpack.c.l.b16 %v776
      %v809 = vunpack.c.l.b16 %v777
      %v810 = vunpack.c.l.b16 %v778
      %v811 = vpack.c.b16 %v796, %v795
      %v812 = vpack.c.b16 %v798, %v797
      %v813 = vpack.c.b16 %v800, %v799
      %v814 = vpack.c.b16 %v802, %v801
      %v815 = vpack.c.b16 %v804, %v803
      %v816 = vpack.c.b16 %v806, %v805
      %v817 = vpack.c.b16 %v808, %v807
      %v818 = vpack.c.b16 %v810, %v809
      %827 = vmatpush.bf16.msra.mxu0 %v818
      %828 = vmatpush.bf16.msra.mxu0 %v817
      %829 = vmatpush.bf16.msra.mxu0 %v816
      %830 = vmatpush.bf16.msra.mxu0 %v815
      %831 = vmatpush.bf16.msra.mxu0 %v814
      %832 = vmatpush.bf16.msra.mxu0 %v813
      %833 = vmatpush.bf16.msra.mxu0 %v812
      %834 = vmatpush.bf16.msra.mxu0 %v811
      %835 = vmatmul.bf16.gmra.mxu0 %v754
      %v836 = vpop.f32.mrf.mxu0
      %v837 = vadd.f32 0.0, %v836
      %v838 = vpop.f32.mrf.mxu0
      %v839 = vadd.f32 0.0, %v838
      %840 = vmatmul.bf16.gmra.mxu0 %v755
      %v841 = vpop.f32.mrf.mxu0
      %v842 = vadd.f32 0.0, %v841
      %v843 = vpop.f32.mrf.mxu0
      %v844 = vadd.f32 0.0, %v843
      %845 = vmatmul.bf16.gmra.mxu0 %v756
      %v846 = vpop.f32.mrf.mxu0
      %v847 = vadd.f32 0.0, %v846
      %v848 = vpop.f32.mrf.mxu0
      %v849 = vadd.f32 0.0, %v848
      %850 = vmatmul.bf16.gmra.mxu0 %v757
      %v851 = vpop.f32.mrf.mxu0
      %v852 = vadd.f32 0.0, %v851
      %v853 = vpop.f32.mrf.mxu0
      %v854 = vadd.f32 0.0, %v853
      %855 = vmatmul.bf16.gmra.mxu0 %v758
      %v856 = vpop.f32.mrf.mxu0
      %v857 = vadd.f32 0.0, %v856
      %v858 = vpop.f32.mrf.mxu0
      %v859 = vadd.f32 0.0, %v858
      %860 = vmatmul.bf16.gmra.mxu0 %v759
      %v861 = vpop.f32.mrf.mxu0
      %v862 = vadd.f32 0.0, %v861
      %v863 = vpop.f32.mrf.mxu0
      %v864 = vadd.f32 0.0, %v863
      %865 = vmatmul.bf16.gmra.mxu0 %v760
      %v866 = vpop.f32.mrf.mxu0
      %v867 = vadd.f32 0.0, %v866
      %v868 = vpop.f32.mrf.mxu0
      %v869 = vadd.f32 0.0, %v868
      %870 = vmatmul.bf16.gmra.mxu0 %v761
      %v871 = vpop.f32.mrf.mxu0
      %v872 = vadd.f32 0.0, %v871
      %v873 = vpop.f32.mrf.mxu0
      %v874 = vadd.f32 0.0, %v873
      %875 = vdwg.mxu0
      %v876 = vadd.f32 %v688, %v837
      %v877 = vadd.f32 %v690, %v839
      %v878 = vadd.f32 %v693, %v842
      %v879 = vadd.f32 %v695, %v844
      %v880 = vadd.f32 %v698, %v847
      %v881 = vadd.f32 %v700, %v849
      %v882 = vadd.f32 %v703, %v852
      %v883 = vadd.f32 %v705, %v854
      %v884 = vadd.f32 %v708, %v857
      %v885 = vadd.f32 %v710, %v859
      %v886 = vadd.f32 %v713, %v862
      %v887 = vadd.f32 %v715, %v864
      %v888 = vadd.f32 %v718, %v867
      %v889 = vadd.f32 %v720, %v869
      %v890 = vadd.f32 %v723, %v872
      %v891 = vadd.f32 %v725, %v874
      %v894 = vunpack.c.l.b16 %v373
      %v895 = vunpack.c.l.b16 %v374
      %v896 = vpack.c.b16 %v895, %v894
      %v898 = vshrl.u32 %v896, 16
      %v900 = vrot.slane %v898, 7
      %v901 = vshll.u32 %v896, 16
      %v903 = vor.u32 %v900, %v901
      %v905 = vsel %vm483, 0, %v903
      %s906 = scalar_lea.vmem %s1, 192
      %v907 = vld [vmem:[%s906] sm:$0xf]
      %v908 = vld [vmem:[%s906 + $0x4] sm:$0xf]
      %v909 = vld [vmem:[%s906 + $0x8] sm:$0xf]
      %v910 = vld [vmem:[%s906 + $0xc] sm:$0xf]
      %v911 = vld [vmem:[%s906 + $0x10] sm:$0xf]
      %v912 = vld [vmem:[%s906 + $0x14] sm:$0xf]
      %v913 = vld [vmem:[%s906 + $0x18] sm:$0xf]
      %v914 = vld [vmem:[%s906 + $0x1c] sm:$0xf]
      %v915 = vld [vmem:[%s906 + $0x20] sm:$0xf]
      %v916 = vld [vmem:[%s906 + $0x24] sm:$0xf]
      %v917 = vld [vmem:[%s906 + $0x28] sm:$0xf]
      %v918 = vld [vmem:[%s906 + $0x2c] sm:$0xf]
      %v919 = vld [vmem:[%s906 + $0x30] sm:$0xf]
      %v920 = vld [vmem:[%s906 + $0x34] sm:$0xf]
      %v921 = vld [vmem:[%s906 + $0x38] sm:$0xf]
      %v922 = vld [vmem:[%s906 + $0x3c] sm:$0xf]
      %v939 = vunpack.c.l.b16 %v907
      %v940 = vunpack.c.l.b16 %v908
      %v941 = vunpack.c.l.b16 %v909
      %v942 = vunpack.c.l.b16 %v910
      %v943 = vunpack.c.l.b16 %v911
      %v944 = vunpack.c.l.b16 %v912
      %v945 = vunpack.c.l.b16 %v913
      %v946 = vunpack.c.l.b16 %v914
      %v947 = vunpack.c.l.b16 %v915
      %v948 = vunpack.c.l.b16 %v916
      %v949 = vunpack.c.l.b16 %v917
      %v950 = vunpack.c.l.b16 %v918
      %v951 = vunpack.c.l.b16 %v919
      %v952 = vunpack.c.l.b16 %v920
      %v953 = vunpack.c.l.b16 %v921
      %v954 = vunpack.c.l.b16 %v922
      %v955 = vpack.c.b16 %v940, %v939
      %v956 = vpack.c.b16 %v942, %v941
      %v957 = vpack.c.b16 %v944, %v943
      %v958 = vpack.c.b16 %v946, %v945
      %v959 = vpack.c.b16 %v948, %v947
      %v960 = vpack.c.b16 %v950, %v949
      %v961 = vpack.c.b16 %v952, %v951
      %v962 = vpack.c.b16 %v954, %v953
      %971 = vmatpush.bf16.msra.mxu0 %v962
      %972 = vmatpush.bf16.msra.mxu0 %v961
      %973 = vmatpush.bf16.msra.mxu0 %v960
      %974 = vmatpush.bf16.msra.mxu0 %v959
      %975 = vmatpush.bf16.msra.mxu0 %v958
      %976 = vmatpush.bf16.msra.mxu0 %v957
      %977 = vmatpush.bf16.msra.mxu0 %v956
      %978 = vmatpush.bf16.msra.mxu0 %v955
      %979 = vmatmul.bf16.gmra.mxu0 %v485
      %v980 = vpop.f32.mrf.mxu0
      %v981 = vadd.f32 0.0, %v980
      %v982 = vpop.f32.mrf.mxu0
      %v983 = vadd.f32 0.0, %v982
      %984 = vmatmul.bf16.gmra.mxu0 %v486
      %v985 = vpop.f32.mrf.mxu0
      %v986 = vadd.f32 0.0, %v985
      %v987 = vpop.f32.mrf.mxu0
      %v988 = vadd.f32 0.0, %v987
      %989 = vmatmul.bf16.gmra.mxu0 %v487
      %v990 = vpop.f32.mrf.mxu0
      %v991 = vadd.f32 0.0, %v990
      %v992 = vpop.f32.mrf.mxu0
      %v993 = vadd.f32 0.0, %v992
      %994 = vmatmul.bf16.gmra.mxu0 %v488
      %v995 = vpop.f32.mrf.mxu0
      %v996 = vadd.f32 0.0, %v995
      %v997 = vpop.f32.mrf.mxu0
      %v998 = vadd.f32 0.0, %v997
      %999 = vmatmul.bf16.gmra.mxu0 %v489
      %v1000 = vpop.f32.mrf.mxu0
      %v1001 = vadd.f32 0.0, %v1000
      %v1002 = vpop.f32.mrf.mxu0
      %v1003 = vadd.f32 0.0, %v1002
      %1004 = vmatmul.bf16.gmra.mxu0 %v490
      %v1005 = vpop.f32.mrf.mxu0
      %v1006 = vadd.f32 0.0, %v1005
      %v1007 = vpop.f32.mrf.mxu0
      %v1008 = vadd.f32 0.0, %v1007
      %1009 = vmatmul.bf16.gmra.mxu0 %v491
      %v1010 = vpop.f32.mrf.mxu0
      %v1011 = vadd.f32 0.0, %v1010
      %v1012 = vpop.f32.mrf.mxu0
      %v1013 = vadd.f32 0.0, %v1012
      %1014 = vmatmul.bf16.gmra.mxu0 %v905
      %v1015 = vpop.f32.mrf.mxu0
      %v1016 = vadd.f32 0.0, %v1015
      %v1017 = vpop.f32.mrf.mxu0
      %v1018 = vadd.f32 0.0, %v1017
      %1019 = vdwg.mxu0
      %v1020 = vadd.f32 %v876, %v981
      %v1021 = vadd.f32 %v877, %v983
      %v1022 = vadd.f32 %v878, %v986
      %v1023 = vadd.f32 %v879, %v988
      %v1024 = vadd.f32 %v880, %v991
      %v1025 = vadd.f32 %v881, %v993
      %v1026 = vadd.f32 %v882, %v996
      %v1027 = vadd.f32 %v883, %v998
      %v1028 = vadd.f32 %v884, %v1001
      %v1029 = vadd.f32 %v885, %v1003
      %v1030 = vadd.f32 %v886, %v1006
      %v1031 = vadd.f32 %v887, %v1008
      %v1032 = vadd.f32 %v888, %v1011
      %v1033 = vadd.f32 %v889, %v1013
      %v1034 = vadd.f32 %v890, %v1016
      %v1035 = vadd.f32 %v891, %v1018
      %s1036 = scalar_lea.vmem %s1, 256
      %v1037 = vld [vmem:[%s1036] sm:$0xf]
      %v1038 = vld [vmem:[%s1036 + $0x4] sm:$0xf]
      %v1039 = vld [vmem:[%s1036 + $0x8] sm:$0xf]
      %v1040 = vld [vmem:[%s1036 + $0xc] sm:$0xf]
      %v1041 = vld [vmem:[%s1036 + $0x10] sm:$0xf]
      %v1042 = vld [vmem:[%s1036 + $0x14] sm:$0xf]
      %v1043 = vld [vmem:[%s1036 + $0x18] sm:$0xf]
      %v1044 = vld [vmem:[%s1036 + $0x1c] sm:$0xf]
      %v1045 = vld [vmem:[%s1036 + $0x20] sm:$0xf]
      %v1046 = vld [vmem:[%s1036 + $0x24] sm:$0xf]
      %v1047 = vld [vmem:[%s1036 + $0x28] sm:$0xf]
      %v1048 = vld [vmem:[%s1036 + $0x2c] sm:$0xf]
      %v1049 = vld [vmem:[%s1036 + $0x30] sm:$0xf]
      %v1050 = vld [vmem:[%s1036 + $0x34] sm:$0xf]
      %v1051 = vld [vmem:[%s1036 + $0x38] sm:$0xf]
      %v1052 = vld [vmem:[%s1036 + $0x3c] sm:$0xf]
      %v1070 = vunpack.c.l.b16 %v1037
      %v1071 = vunpack.c.l.b16 %v1038
      %v1072 = vunpack.c.l.b16 %v1039
      %v1073 = vunpack.c.l.b16 %v1040
      %v1074 = vunpack.c.l.b16 %v1041
      %v1075 = vunpack.c.l.b16 %v1042
      %v1076 = vunpack.c.l.b16 %v1043
      %v1077 = vunpack.c.l.b16 %v1044
      %v1078 = vunpack.c.l.b16 %v1045
      %v1079 = vunpack.c.l.b16 %v1046
      %v1080 = vunpack.c.l.b16 %v1047
      %v1081 = vunpack.c.l.b16 %v1048
      %v1082 = vunpack.c.l.b16 %v1049
      %v1083 = vunpack.c.l.b16 %v1050
      %v1084 = vunpack.c.l.b16 %v1051
      %v1085 = vunpack.c.l.b16 %v1052
      %v1086 = vpack.c.b16 %v1071, %v1070
      %v1087 = vpack.c.b16 %v1073, %v1072
      %v1088 = vpack.c.b16 %v1075, %v1074
      %v1089 = vpack.c.b16 %v1077, %v1076
      %v1090 = vpack.c.b16 %v1079, %v1078
      %v1091 = vpack.c.b16 %v1081, %v1080
      %v1092 = vpack.c.b16 %v1083, %v1082
      %v1093 = vpack.c.b16 %v1085, %v1084
      %1102 = vmatpush.bf16.msra.mxu0 %v1093
      %1103 = vmatpush.bf16.msra.mxu0 %v1092
      %1104 = vmatpush.bf16.msra.mxu0 %v1091
      %1105 = vmatpush.bf16.msra.mxu0 %v1090
      %1106 = vmatpush.bf16.msra.mxu0 %v1089
      %1107 = vmatpush.bf16.msra.mxu0 %v1088
      %1108 = vmatpush.bf16.msra.mxu0 %v1087
      %1109 = vmatpush.bf16.msra.mxu0 %v1086
      %1110 = vmatmul.bf16.gmra.mxu0 %v410
      %v1111 = vpop.f32.mrf.mxu0
      %v1112 = vadd.f32 0.0, %v1111
      %v1113 = vpop.f32.mrf.mxu0
      %v1114 = vadd.f32 0.0, %v1113
      %1115 = vmatmul.bf16.gmra.mxu0 %v411
      %v1116 = vpop.f32.mrf.mxu0
      %v1117 = vadd.f32 0.0, %v1116
      %v1118 = vpop.f32.mrf.mxu0
      %v1119 = vadd.f32 0.0, %v1118
      %1120 = vmatmul.bf16.gmra.mxu0 %v412
      %v1121 = vpop.f32.mrf.mxu0
      %v1122 = vadd.f32 0.0, %v1121
      %v1123 = vpop.f32.mrf.mxu0
      %v1124 = vadd.f32 0.0, %v1123
      %1125 = vmatmul.bf16.gmra.mxu0 %v413
      %v1126 = vpop.f32.mrf.mxu0
      %v1127 = vadd.f32 0.0, %v1126
      %v1128 = vpop.f32.mrf.mxu0
      %v1129 = vadd.f32 0.0, %v1128
      %1130 = vmatmul.bf16.gmra.mxu0 %v414
      %v1131 = vpop.f32.mrf.mxu0
      %v1132 = vadd.f32 0.0, %v1131
      %v1133 = vpop.f32.mrf.mxu0
      %v1134 = vadd.f32 0.0, %v1133
      %1135 = vmatmul.bf16.gmra.mxu0 %v415
      %v1136 = vpop.f32.mrf.mxu0
      %v1137 = vadd.f32 0.0, %v1136
      %v1138 = vpop.f32.mrf.mxu0
      %v1139 = vadd.f32 0.0, %v1138
      %1140 = vmatmul.bf16.gmra.mxu0 %v416
      %v1141 = vpop.f32.mrf.mxu0
      %v1142 = vadd.f32 0.0, %v1141
      %v1143 = vpop.f32.mrf.mxu0
      %v1144 = vadd.f32 0.0, %v1143
      %1145 = vmatmul.bf16.gmra.mxu0 %v896
      %v1146 = vpop.f32.mrf.mxu0
      %v1147 = vadd.f32 0.0, %v1146
      %v1148 = vpop.f32.mrf.mxu0
      %v1149 = vadd.f32 0.0, %v1148
      %1150 = vdwg.mxu0
      %v1151 = vadd.f32 %v1020, %v1112
      %v1152 = vadd.f32 %v1021, %v1114
      %v1153 = vadd.f32 %v1022, %v1117
      %v1154 = vadd.f32 %v1023, %v1119
      %v1155 = vadd.f32 %v1024, %v1122
      %v1156 = vadd.f32 %v1025, %v1124
      %v1157 = vadd.f32 %v1026, %v1127
      %v1158 = vadd.f32 %v1027, %v1129
      %v1159 = vadd.f32 %v1028, %v1132
      %v1160 = vadd.f32 %v1029, %v1134
      %v1161 = vadd.f32 %v1030, %v1137
      %v1162 = vadd.f32 %v1031, %v1139
      %v1163 = vadd.f32 %v1032, %v1142
      %v1164 = vadd.f32 %v1033, %v1144
      %v1165 = vadd.f32 %v1034, %v1147
      %v1166 = vadd.f32 %v1035, %v1149
      %v1167 = vrot.slane %v901, 1
      %v1168 = vor.u32 %v898, %v1167
      %v1170 = vsel %vm753, %v1168, 0
      %s1171 = scalar_lea.vmem %s1, 320
      %v1172 = vld [vmem:[%s1171] sm:$0xf]
      %v1173 = vld [vmem:[%s1171 + $0x4] sm:$0xf]
      %v1174 = vld [vmem:[%s1171 + $0x8] sm:$0xf]
      %v1175 = vld [vmem:[%s1171 + $0xc] sm:$0xf]
      %v1176 = vld [vmem:[%s1171 + $0x10] sm:$0xf]
      %v1177 = vld [vmem:[%s1171 + $0x14] sm:$0xf]
      %v1178 = vld [vmem:[%s1171 + $0x18] sm:$0xf]
      %v1179 = vld [vmem:[%s1171 + $0x1c] sm:$0xf]
      %v1180 = vld [vmem:[%s1171 + $0x20] sm:$0xf]
      %v1181 = vld [vmem:[%s1171 + $0x24] sm:$0xf]
      %v1182 = vld [vmem:[%s1171 + $0x28] sm:$0xf]
      %v1183 = vld [vmem:[%s1171 + $0x2c] sm:$0xf]
      %v1184 = vld [vmem:[%s1171 + $0x30] sm:$0xf]
      %v1185 = vld [vmem:[%s1171 + $0x34] sm:$0xf]
      %v1186 = vld [vmem:[%s1171 + $0x38] sm:$0xf]
      %v1187 = vld [vmem:[%s1171 + $0x3c] sm:$0xf]
      %v1204 = vunpack.c.l.b16 %v1172
      %v1205 = vunpack.c.l.b16 %v1173
      %v1206 = vunpack.c.l.b16 %v1174
      %v1207 = vunpack.c.l.b16 %v1175
      %v1208 = vunpack.c.l.b16 %v1176
      %v1209 = vunpack.c.l.b16 %v1177
      %v1210 = vunpack.c.l.b16 %v1178
      %v1211 = vunpack.c.l.b16 %v1179
      %v1212 = vunpack.c.l.b16 %v1180
      %v1213 = vunpack.c.l.b16 %v1181
      %v1214 = vunpack.c.l.b16 %v1182
      %v1215 = vunpack.c.l.b16 %v1183
      %v1216 = vunpack.c.l.b16 %v1184
      %v1217 = vunpack.c.l.b16 %v1185
      %v1218 = vunpack.c.l.b16 %v1186
      %v1219 = vunpack.c.l.b16 %v1187
      %v1220 = vpack.c.b16 %v1205, %v1204
      %v1221 = vpack.c.b16 %v1207, %v1206
      %v1222 = vpack.c.b16 %v1209, %v1208
      %v1223 = vpack.c.b16 %v1211, %v1210
      %v1224 = vpack.c.b16 %v1213, %v1212
      %v1225 = vpack.c.b16 %v1215, %v1214
      %v1226 = vpack.c.b16 %v1217, %v1216
      %v1227 = vpack.c.b16 %v1219, %v1218
      %1236 = vmatpush.bf16.msra.mxu0 %v1227
      %1237 = vmatpush.bf16.msra.mxu0 %v1226
      %1238 = vmatpush.bf16.msra.mxu0 %v1225
      %1239 = vmatpush.bf16.msra.mxu0 %v1224
      %1240 = vmatpush.bf16.msra.mxu0 %v1223
      %1241 = vmatpush.bf16.msra.mxu0 %v1222
      %1242 = vmatpush.bf16.msra.mxu0 %v1221
      %1243 = vmatpush.bf16.msra.mxu0 %v1220
      %1244 = vmatmul.bf16.gmra.mxu0 %v755
      %v1245 = vpop.f32.mrf.mxu0
      %v1246 = vadd.f32 0.0, %v1245
      %v1247 = vpop.f32.mrf.mxu0
      %v1248 = vadd.f32 0.0, %v1247
      %1249 = vmatmul.bf16.gmra.mxu0 %v756
      %v1250 = vpop.f32.mrf.mxu0
      %v1251 = vadd.f32 0.0, %v1250
      %v1252 = vpop.f32.mrf.mxu0
      %v1253 = vadd.f32 0.0, %v1252
      %1254 = vmatmul.bf16.gmra.mxu0 %v757
      %v1255 = vpop.f32.mrf.mxu0
      %v1256 = vadd.f32 0.0, %v1255
      %v1257 = vpop.f32.mrf.mxu0
      %v1258 = vadd.f32 0.0, %v1257
      %1259 = vmatmul.bf16.gmra.mxu0 %v758
      %v1260 = vpop.f32.mrf.mxu0
      %v1261 = vadd.f32 0.0, %v1260
      %v1262 = vpop.f32.mrf.mxu0
      %v1263 = vadd.f32 0.0, %v1262
      %1264 = vmatmul.bf16.gmra.mxu0 %v759
      %v1265 = vpop.f32.mrf.mxu0
      %v1266 = vadd.f32 0.0, %v1265
      %v1267 = vpop.f32.mrf.mxu0
      %v1268 = vadd.f32 0.0, %v1267
      %1269 = vmatmul.bf16.gmra.mxu0 %v760
      %v1270 = vpop.f32.mrf.mxu0
      %v1271 = vadd.f32 0.0, %v1270
      %v1272 = vpop.f32.mrf.mxu0
      %v1273 = vadd.f32 0.0, %v1272
      %1274 = vmatmul.bf16.gmra.mxu0 %v761
      %v1275 = vpop.f32.mrf.mxu0
      %v1276 = vadd.f32 0.0, %v1275
      %v1277 = vpop.f32.mrf.mxu0
      %v1278 = vadd.f32 0.0, %v1277
      %1279 = vmatmul.bf16.gmra.mxu0 %v1170
      %v1280 = vpop.f32.mrf.mxu0
      %v1281 = vadd.f32 0.0, %v1280
      %v1282 = vpop.f32.mrf.mxu0
      %v1283 = vadd.f32 0.0, %v1282
      %1284 = vdwg.mxu0
      %v1285 = vadd.f32 %v1151, %v1246
      %v1286 = vadd.f32 %v1152, %v1248
      %v1287 = vadd.f32 %v1153, %v1251
      %v1288 = vadd.f32 %v1154, %v1253
      %v1289 = vadd.f32 %v1155, %v1256
      %v1290 = vadd.f32 %v1156, %v1258
      %v1291 = vadd.f32 %v1157, %v1261
      %v1292 = vadd.f32 %v1158, %v1263
      %v1293 = vadd.f32 %v1159, %v1266
      %v1294 = vadd.f32 %v1160, %v1268
      %v1295 = vadd.f32 %v1161, %v1271
      %v1296 = vadd.f32 %v1162, %v1273
      %v1297 = vadd.f32 %v1163, %v1276
      %v1298 = vadd.f32 %v1164, %v1278
      %v1299 = vadd.f32 %v1165, %v1281
      %v1300 = vadd.f32 %v1166, %v1283
      %v1303 = vunpack.c.l.b16 %v375
      %v1304 = vunpack.c.l.b16 %v376
      %v1305 = vpack.c.b16 %v1304, %v1303
      %v1307 = vshrl.u32 %v1305, 16
      %v1309 = vrot.slane %v1307, 7
      %v1310 = vshll.u32 %v1305, 16
      %v1312 = vor.u32 %v1309, %v1310
      %v1314 = vsel %vm483, 0, %v1312
      %s1315 = scalar_lea.vmem %s1, 384
      %v1316 = vld [vmem:[%s1315] sm:$0xf]
      %v1317 = vld [vmem:[%s1315 + $0x4] sm:$0xf]
      %v1318 = vld [vmem:[%s1315 + $0x8] sm:$0xf]
      %v1319 = vld [vmem:[%s1315 + $0xc] sm:$0xf]
      %v1320 = vld [vmem:[%s1315 + $0x10] sm:$0xf]
      %v1321 = vld [vmem:[%s1315 + $0x14] sm:$0xf]
      %v1322 = vld [vmem:[%s1315 + $0x18] sm:$0xf]
      %v1323 = vld [vmem:[%s1315 + $0x1c] sm:$0xf]
      %v1324 = vld [vmem:[%s1315 + $0x20] sm:$0xf]
      %v1325 = vld [vmem:[%s1315 + $0x24] sm:$0xf]
      %v1326 = vld [vmem:[%s1315 + $0x28] sm:$0xf]
      %v1327 = vld [vmem:[%s1315 + $0x2c] sm:$0xf]
      %v1328 = vld [vmem:[%s1315 + $0x30] sm:$0xf]
      %v1329 = vld [vmem:[%s1315 + $0x34] sm:$0xf]
      %v1330 = vld [vmem:[%s1315 + $0x38] sm:$0xf]
      %v1331 = vld [vmem:[%s1315 + $0x3c] sm:$0xf]
      %v1348 = vunpack.c.l.b16 %v1316
      %v1349 = vunpack.c.l.b16 %v1317
      %v1350 = vunpack.c.l.b16 %v1318
      %v1351 = vunpack.c.l.b16 %v1319
      %v1352 = vunpack.c.l.b16 %v1320
      %v1353 = vunpack.c.l.b16 %v1321
      %v1354 = vunpack.c.l.b16 %v1322
      %v1355 = vunpack.c.l.b16 %v1323
      %v1356 = vunpack.c.l.b16 %v1324
      %v1357 = vunpack.c.l.b16 %v1325
      %v1358 = vunpack.c.l.b16 %v1326
      %v1359 = vunpack.c.l.b16 %v1327
      %v1360 = vunpack.c.l.b16 %v1328
      %v1361 = vunpack.c.l.b16 %v1329
      %v1362 = vunpack.c.l.b16 %v1330
      %v1363 = vunpack.c.l.b16 %v1331
      %v1364 = vpack.c.b16 %v1349, %v1348
      %v1365 = vpack.c.b16 %v1351, %v1350
      %v1366 = vpack.c.b16 %v1353, %v1352
      %v1367 = vpack.c.b16 %v1355, %v1354
      %v1368 = vpack.c.b16 %v1357, %v1356
      %v1369 = vpack.c.b16 %v1359, %v1358
      %v1370 = vpack.c.b16 %v1361, %v1360
      %v1371 = vpack.c.b16 %v1363, %v1362
      %1380 = vmatpush.bf16.msra.mxu0 %v1371
      %1381 = vmatpush.bf16.msra.mxu0 %v1370
      %1382 = vmatpush.bf16.msra.mxu0 %v1369
      %1383 = vmatpush.bf16.msra.mxu0 %v1368
      %1384 = vmatpush.bf16.msra.mxu0 %v1367
      %1385 = vmatpush.bf16.msra.mxu0 %v1366
      %1386 = vmatpush.bf16.msra.mxu0 %v1365
      %1387 = vmatpush.bf16.msra.mxu0 %v1364
      %1388 = vmatmul.bf16.gmra.mxu0 %v486
      %v1389 = vpop.f32.mrf.mxu0
      %v1390 = vadd.f32 0.0, %v1389
      %v1391 = vpop.f32.mrf.mxu0
      %v1392 = vadd.f32 0.0, %v1391
      %1393 = vmatmul.bf16.gmra.mxu0 %v487
      %v1394 = vpop.f32.mrf.mxu0
      %v1395 = vadd.f32 0.0, %v1394
      %v1396 = vpop.f32.mrf.mxu0
      %v1397 = vadd.f32 0.0, %v1396
      %1398 = vmatmul.bf16.gmra.mxu0 %v488
      %v1399 = vpop.f32.mrf.mxu0
      %v1400 = vadd.f32 0.0, %v1399
      %v1401 = vpop.f32.mrf.mxu0
      %v1402 = vadd.f32 0.0, %v1401
      %1403 = vmatmul.bf16.gmra.mxu0 %v489
      %v1404 = vpop.f32.mrf.mxu0
      %v1405 = vadd.f32 0.0, %v1404
      %v1406 = vpop.f32.mrf.mxu0
      %v1407 = vadd.f32 0.0, %v1406
      %1408 = vmatmul.bf16.gmra.mxu0 %v490
      %v1409 = vpop.f32.mrf.mxu0
      %v1410 = vadd.f32 0.0, %v1409
      %v1411 = vpop.f32.mrf.mxu0
      %v1412 = vadd.f32 0.0, %v1411
      %1413 = vmatmul.bf16.gmra.mxu0 %v491
      %v1414 = vpop.f32.mrf.mxu0
      %v1415 = vadd.f32 0.0, %v1414
      %v1416 = vpop.f32.mrf.mxu0
      %v1417 = vadd.f32 0.0, %v1416
      %1418 = vmatmul.bf16.gmra.mxu0 %v905
      %v1419 = vpop.f32.mrf.mxu0
      %v1420 = vadd.f32 0.0, %v1419
      %v1421 = vpop.f32.mrf.mxu0
      %v1422 = vadd.f32 0.0, %v1421
      %1423 = vmatmul.bf16.gmra.mxu0 %v1314
      %v1424 = vpop.f32.mrf.mxu0
      %v1425 = vadd.f32 0.0, %v1424
      %v1426 = vpop.f32.mrf.mxu0
      %v1427 = vadd.f32 0.0, %v1426
      %1428 = vdwg.mxu0
      %v1429 = vadd.f32 %v1285, %v1390
      %v1430 = vadd.f32 %v1286, %v1392
      %v1431 = vadd.f32 %v1287, %v1395
      %v1432 = vadd.f32 %v1288, %v1397
      %v1433 = vadd.f32 %v1289, %v1400
      %v1434 = vadd.f32 %v1290, %v1402
      %v1435 = vadd.f32 %v1291, %v1405
      %v1436 = vadd.f32 %v1292, %v1407
      %v1437 = vadd.f32 %v1293, %v1410
      %v1438 = vadd.f32 %v1294, %v1412
      %v1439 = vadd.f32 %v1295, %v1415
      %v1440 = vadd.f32 %v1296, %v1417
      %v1441 = vadd.f32 %v1297, %v1420
      %v1442 = vadd.f32 %v1298, %v1422
      %v1443 = vadd.f32 %v1299, %v1425
      %v1444 = vadd.f32 %v1300, %v1427
      %s1445 = scalar_lea.vmem %s1, 448
      %v1446 = vld [vmem:[%s1445] sm:$0xf]
      %v1447 = vld [vmem:[%s1445 + $0x4] sm:$0xf]
      %v1448 = vld [vmem:[%s1445 + $0x8] sm:$0xf]
      %v1449 = vld [vmem:[%s1445 + $0xc] sm:$0xf]
      %v1450 = vld [vmem:[%s1445 + $0x10] sm:$0xf]
      %v1451 = vld [vmem:[%s1445 + $0x14] sm:$0xf]
      %v1452 = vld [vmem:[%s1445 + $0x18] sm:$0xf]
      %v1453 = vld [vmem:[%s1445 + $0x1c] sm:$0xf]
      %v1454 = vld [vmem:[%s1445 + $0x20] sm:$0xf]
      %v1455 = vld [vmem:[%s1445 + $0x24] sm:$0xf]
      %v1456 = vld [vmem:[%s1445 + $0x28] sm:$0xf]
      %v1457 = vld [vmem:[%s1445 + $0x2c] sm:$0xf]
      %v1458 = vld [vmem:[%s1445 + $0x30] sm:$0xf]
      %v1459 = vld [vmem:[%s1445 + $0x34] sm:$0xf]
      %v1460 = vld [vmem:[%s1445 + $0x38] sm:$0xf]
      %v1461 = vld [vmem:[%s1445 + $0x3c] sm:$0xf]
      %v1479 = vunpack.c.l.b16 %v1446
      %v1480 = vunpack.c.l.b16 %v1447
      %v1481 = vunpack.c.l.b16 %v1448
      %v1482 = vunpack.c.l.b16 %v1449
      %v1483 = vunpack.c.l.b16 %v1450
      %v1484 = vunpack.c.l.b16 %v1451
      %v1485 = vunpack.c.l.b16 %v1452
      %v1486 = vunpack.c.l.b16 %v1453
      %v1487 = vunpack.c.l.b16 %v1454
      %v1488 = vunpack.c.l.b16 %v1455
      %v1489 = vunpack.c.l.b16 %v1456
      %v1490 = vunpack.c.l.b16 %v1457
      %v1491 = vunpack.c.l.b16 %v1458
      %v1492 = vunpack.c.l.b16 %v1459
      %v1493 = vunpack.c.l.b16 %v1460
      %v1494 = vunpack.c.l.b16 %v1461
      %v1495 = vpack.c.b16 %v1480, %v1479
      %v1496 = vpack.c.b16 %v1482, %v1481
      %v1497 = vpack.c.b16 %v1484, %v1483
      %v1498 = vpack.c.b16 %v1486, %v1485
      %v1499 = vpack.c.b16 %v1488, %v1487
      %v1500 = vpack.c.b16 %v1490, %v1489
      %v1501 = vpack.c.b16 %v1492, %v1491
      %v1502 = vpack.c.b16 %v1494, %v1493
      %1511 = vmatpush.bf16.msra.mxu0 %v1502
      %1512 = vmatpush.bf16.msra.mxu0 %v1501
      %1513 = vmatpush.bf16.msra.mxu0 %v1500
      %1514 = vmatpush.bf16.msra.mxu0 %v1499
      %1515 = vmatpush.bf16.msra.mxu0 %v1498
      %1516 = vmatpush.bf16.msra.mxu0 %v1497
      %1517 = vmatpush.bf16.msra.mxu0 %v1496
      %1518 = vmatpush.bf16.msra.mxu0 %v1495
      %1519 = vmatmul.bf16.gmra.mxu0 %v411
      %v1520 = vpop.f32.mrf.mxu0
      %v1521 = vadd.f32 0.0, %v1520
      %v1522 = vpop.f32.mrf.mxu0
      %v1523 = vadd.f32 0.0, %v1522
      %1524 = vmatmul.bf16.gmra.mxu0 %v412
      %v1525 = vpop.f32.mrf.mxu0
      %v1526 = vadd.f32 0.0, %v1525
      %v1527 = vpop.f32.mrf.mxu0
      %v1528 = vadd.f32 0.0, %v1527
      %1529 = vmatmul.bf16.gmra.mxu0 %v413
      %v1530 = vpop.f32.mrf.mxu0
      %v1531 = vadd.f32 0.0, %v1530
      %v1532 = vpop.f32.mrf.mxu0
      %v1533 = vadd.f32 0.0, %v1532
      %1534 = vmatmul.bf16.gmra.mxu0 %v414
      %v1535 = vpop.f32.mrf.mxu0
      %v1536 = vadd.f32 0.0, %v1535
      %v1537 = vpop.f32.mrf.mxu0
      %v1538 = vadd.f32 0.0, %v1537
      %1539 = vmatmul.bf16.gmra.mxu0 %v415
      %v1540 = vpop.f32.mrf.mxu0
      %v1541 = vadd.f32 0.0, %v1540
      %v1542 = vpop.f32.mrf.mxu0
      %v1543 = vadd.f32 0.0, %v1542
      %1544 = vmatmul.bf16.gmra.mxu0 %v416
      %v1545 = vpop.f32.mrf.mxu0
      %v1546 = vadd.f32 0.0, %v1545
      %v1547 = vpop.f32.mrf.mxu0
      %v1548 = vadd.f32 0.0, %v1547
      %1549 = vmatmul.bf16.gmra.mxu0 %v896
      %v1550 = vpop.f32.mrf.mxu0
      %v1551 = vadd.f32 0.0, %v1550
      %v1552 = vpop.f32.mrf.mxu0
      %v1553 = vadd.f32 0.0, %v1552
      %1554 = vmatmul.bf16.gmra.mxu0 %v1305
      %v1555 = vpop.f32.mrf.mxu0
      %v1556 = vadd.f32 0.0, %v1555
      %v1557 = vpop.f32.mrf.mxu0
      %v1558 = vadd.f32 0.0, %v1557
      %1559 = vdwg.mxu0
      %v1560 = vadd.f32 %v1429, %v1521
      %v1561 = vadd.f32 %v1430, %v1523
      %v1562 = vadd.f32 %v1431, %v1526
      %v1563 = vadd.f32 %v1432, %v1528
      %v1564 = vadd.f32 %v1433, %v1531
      %v1565 = vadd.f32 %v1434, %v1533
      %v1566 = vadd.f32 %v1435, %v1536
      %v1567 = vadd.f32 %v1436, %v1538
      %v1568 = vadd.f32 %v1437, %v1541
      %v1569 = vadd.f32 %v1438, %v1543
      %v1570 = vadd.f32 %v1439, %v1546
      %v1571 = vadd.f32 %v1440, %v1548
      %v1572 = vadd.f32 %v1441, %v1551
      %v1573 = vadd.f32 %v1442, %v1553
      %v1574 = vadd.f32 %v1443, %v1556
      %v1575 = vadd.f32 %v1444, %v1558
      %v1576 = vrot.slane %v1310, 1
      %v1577 = vor.u32 %v1307, %v1576
      %v1579 = vsel %vm753, %v1577, 0
      %s1580 = scalar_lea.vmem %s1, 512
      %v1581 = vld [vmem:[%s1580] sm:$0xf]
      %v1582 = vld [vmem:[%s1580 + $0x4] sm:$0xf]
      %v1583 = vld [vmem:[%s1580 + $0x8] sm:$0xf]
      %v1584 = vld [vmem:[%s1580 + $0xc] sm:$0xf]
      %v1585 = vld [vmem:[%s1580 + $0x10] sm:$0xf]
      %v1586 = vld [vmem:[%s1580 + $0x14] sm:$0xf]
      %v1587 = vld [vmem:[%s1580 + $0x18] sm:$0xf]
      %v1588 = vld [vmem:[%s1580 + $0x1c] sm:$0xf]
      %v1589 = vld [vmem:[%s1580 + $0x20] sm:$0xf]
      %v1590 = vld [vmem:[%s1580 + $0x24] sm:$0xf]
      %v1591 = vld [vmem:[%s1580 + $0x28] sm:$0xf]
      %v1592 = vld [vmem:[%s1580 + $0x2c] sm:$0xf]
      %v1593 = vld [vmem:[%s1580 + $0x30] sm:$0xf]
      %v1594 = vld [vmem:[%s1580 + $0x34] sm:$0xf]
      %v1595 = vld [vmem:[%s1580 + $0x38] sm:$0xf]
      %v1596 = vld [vmem:[%s1580 + $0x3c] sm:$0xf]
      %v1613 = vunpack.c.l.b16 %v1581
      %v1614 = vunpack.c.l.b16 %v1582
      %v1615 = vunpack.c.l.b16 %v1583
      %v1616 = vunpack.c.l.b16 %v1584
      %v1617 = vunpack.c.l.b16 %v1585
      %v1618 = vunpack.c.l.b16 %v1586
      %v1619 = vunpack.c.l.b16 %v1587
      %v1620 = vunpack.c.l.b16 %v1588
      %v1621 = vunpack.c.l.b16 %v1589
      %v1622 = vunpack.c.l.b16 %v1590
      %v1623 = vunpack.c.l.b16 %v1591
      %v1624 = vunpack.c.l.b16 %v1592
      %v1625 = vunpack.c.l.b16 %v1593
      %v1626 = vunpack.c.l.b16 %v1594
      %v1627 = vunpack.c.l.b16 %v1595
      %v1628 = vunpack.c.l.b16 %v1596
      %v1629 = vpack.c.b16 %v1614, %v1613
      %v1630 = vpack.c.b16 %v1616, %v1615
      %v1631 = vpack.c.b16 %v1618, %v1617
      %v1632 = vpack.c.b16 %v1620, %v1619
      %v1633 = vpack.c.b16 %v1622, %v1621
      %v1634 = vpack.c.b16 %v1624, %v1623
      %v1635 = vpack.c.b16 %v1626, %v1625
      %v1636 = vpack.c.b16 %v1628, %v1627
      %1645 = vmatpush.bf16.msra.mxu0 %v1636
      %1646 = vmatpush.bf16.msra.mxu0 %v1635
      %1647 = vmatpush.bf16.msra.mxu0 %v1634
      %1648 = vmatpush.bf16.msra.mxu0 %v1633
      %1649 = vmatpush.bf16.msra.mxu0 %v1632
      %1650 = vmatpush.bf16.msra.mxu0 %v1631
      %1651 = vmatpush.bf16.msra.mxu0 %v1630
      %1652 = vmatpush.bf16.msra.mxu0 %v1629
      %1653 = vmatmul.bf16.gmra.mxu0 %v756
      %v1654 = vpop.f32.mrf.mxu0
      %v1655 = vadd.f32 0.0, %v1654
      %v1656 = vpop.f32.mrf.mxu0
      %v1657 = vadd.f32 0.0, %v1656
      %1658 = vmatmul.bf16.gmra.mxu0 %v757
      %v1659 = vpop.f32.mrf.mxu0
      %v1660 = vadd.f32 0.0, %v1659
      %v1661 = vpop.f32.mrf.mxu0
      %v1662 = vadd.f32 0.0, %v1661
      %1663 = vmatmul.bf16.gmra.mxu0 %v758
      %v1664 = vpop.f32.mrf.mxu0
      %v1665 = vadd.f32 0.0, %v1664
      %v1666 = vpop.f32.mrf.mxu0
      %v1667 = vadd.f32 0.0, %v1666
      %1668 = vmatmul.bf16.gmra.mxu0 %v759
      %v1669 = vpop.f32.mrf.mxu0
      %v1670 = vadd.f32 0.0, %v1669
      %v1671 = vpop.f32.mrf.mxu0
      %v1672 = vadd.f32 0.0, %v1671
      %1673 = vmatmul.bf16.gmra.mxu0 %v760
      %v1674 = vpop.f32.mrf.mxu0
      %v1675 = vadd.f32 0.0, %v1674
      %v1676 = vpop.f32.mrf.mxu0
      %v1677 = vadd.f32 0.0, %v1676
      %1678 = vmatmul.bf16.gmra.mxu0 %v761
      %v1679 = vpop.f32.mrf.mxu0
      %v1680 = vadd.f32 0.0, %v1679
      %v1681 = vpop.f32.mrf.mxu0
      %v1682 = vadd.f32 0.0, %v1681
      %1683 = vmatmul.bf16.gmra.mxu0 %v1170
      %v1684 = vpop.f32.mrf.mxu0
      %v1685 = vadd.f32 0.0, %v1684
      %v1686 = vpop.f32.mrf.mxu0
      %v1687 = vadd.f32 0.0, %v1686
      %1688 = vmatmul.bf16.gmra.mxu0 %v1579
      %v1689 = vpop.f32.mrf.mxu0
      %v1690 = vadd.f32 0.0, %v1689
      %v1691 = vpop.f32.mrf.mxu0
      %v1692 = vadd.f32 0.0, %v1691
      %1693 = vdwg.mxu0
      %v1694 = vadd.f32 %v1560, %v1655
      %v1695 = vadd.f32 %v1561, %v1657
      %v1696 = vadd.f32 %v1562, %v1660
      %v1697 = vadd.f32 %v1563, %v1662
      %v1698 = vadd.f32 %v1564, %v1665
      %v1699 = vadd.f32 %v1565, %v1667
      %v1700 = vadd.f32 %v1566, %v1670
      %v1701 = vadd.f32 %v1567, %v1672
      %v1702 = vadd.f32 %v1568, %v1675
      %v1703 = vadd.f32 %v1569, %v1677
      %v1704 = vadd.f32 %v1570, %v1680
      %v1705 = vadd.f32 %v1571, %v1682
      %v1706 = vadd.f32 %v1572, %v1685
      %v1707 = vadd.f32 %v1573, %v1687
      %v1708 = vadd.f32 %v1574, %v1690
      %v1709 = vadd.f32 %v1575, %v1692
      %v1710 = vpack.c.bf16 %v1694, %v1694
      %v1711 = vpack.c.bf16 %v1695, %v1695
      %v1712 = vpack.c.bf16 %v1696, %v1696
      %v1713 = vpack.c.bf16 %v1697, %v1697
      %v1714 = vpack.c.bf16 %v1698, %v1698
      %v1715 = vpack.c.bf16 %v1699, %v1699
      %v1716 = vpack.c.bf16 %v1700, %v1700
      %v1717 = vpack.c.bf16 %v1701, %v1701
      %v1718 = vpack.c.bf16 %v1702, %v1702
      %v1719 = vpack.c.bf16 %v1703, %v1703
      %v1720 = vpack.c.bf16 %v1704, %v1704
      %v1721 = vpack.c.bf16 %v1705, %v1705
      %v1722 = vpack.c.bf16 %v1706, %v1706
      %v1723 = vpack.c.bf16 %v1707, %v1707
      %v1724 = vpack.c.bf16 %v1708, %v1708
      %v1725 = vpack.c.bf16 %v1709, %v1709
      %1726 = vst [vmem:[%s244] sm:$0xf] %v1710
      %1727 = vst [vmem:[%s244 + $0x4] sm:$0xf] %v1711
      %1728 = vst [vmem:[%s244 + $0x8] sm:$0xf] %v1712
      %1729 = vst [vmem:[%s244 + $0xc] sm:$0xf] %v1713
      %1730 = vst [vmem:[%s244 + $0x10] sm:$0xf] %v1714
      %1731 = vst [vmem:[%s244 + $0x14] sm:$0xf] %v1715
      %1732 = vst [vmem:[%s244 + $0x18] sm:$0xf] %v1716
      %1733 = vst [vmem:[%s244 + $0x1c] sm:$0xf] %v1717
      %1734 = vst [vmem:[%s244 + $0x20] sm:$0xf] %v1718
      %1735 = vst [vmem:[%s244 + $0x24] sm:$0xf] %v1719
      %1736 = vst [vmem:[%s244 + $0x28] sm:$0xf] %v1720
      %1737 = vst [vmem:[%s244 + $0x2c] sm:$0xf] %v1721
      %1738 = vst [vmem:[%s244 + $0x30] sm:$0xf] %v1722
      %1739 = vst [vmem:[%s244 + $0x34] sm:$0xf] %v1723
      %1740 = vst [vmem:[%s244 + $0x38] sm:$0xf] %v1724
      %1741 = vst [vmem:[%s244 + $0x3c] sm:$0xf] %v1725
      %v1742 = vadd.f32 %v1694, %v1695
      %v1743 = vadd.f32 %v1742, %v1696
      %v1744 = vadd.f32 %v1743, %v1697
      %v1745 = vadd.f32 %v1744, %v1698
      %v1746 = vadd.f32 %v1745, %v1699
      %v1747 = vadd.f32 %v1746, %v1700
      %v1748 = vadd.f32 %v1747, %v1701
      %v1749 = vadd.f32 %v1748, %v1702
      %v1750 = vadd.f32 %v1749, %v1703
      %v1751 = vadd.f32 %v1750, %v1704
      %v1752 = vadd.f32 %v1751, %v1705
      %v1753 = vadd.f32 %v1752, %v1706
      %v1754 = vadd.f32 %v1753, %v1707
      %v1755 = vadd.f32 %v1754, %v1708
      %v1756 = vadd.f32 %v1755, %v1709
      %v1757 = vrot.slane %v1756, 4
      %v1758 = vadd.f32 %v1756, %v1757
      %v1759 = vrot.slane %v1758, 2
      %v1760 = vadd.f32 %v1758, %v1759
      %v1761 = vrot.slane %v1760, 1
      %v1762 = vadd.f32 %v1760, %v1761
      %1763 = vst [vmem:[%s252] sm:$0x1] %v1762
      %v1764 = vmul.f32 %v1694, %v1694
      %v1765 = vmul.f32 %v1695, %v1695
      %v1766 = vmul.f32 %v1696, %v1696
      %v1767 = vmul.f32 %v1697, %v1697
      %v1768 = vmul.f32 %v1698, %v1698
      %v1769 = vmul.f32 %v1699, %v1699
      %v1770 = vmul.f32 %v1700, %v1700
      %v1771 = vmul.f32 %v1701, %v1701
      %v1772 = vmul.f32 %v1702, %v1702
      %v1773 = vmul.f32 %v1703, %v1703
      %v1774 = vmul.f32 %v1704, %v1704
      %v1775 = vmul.f32 %v1705, %v1705
      %v1776 = vmul.f32 %v1706, %v1706
      %v1777 = vmul.f32 %v1707, %v1707
      %v1778 = vmul.f32 %v1708, %v1708
      %v1779 = vmul.f32 %v1709, %v1709
      %v1780 = vadd.f32 %v1764, %v1765
      %v1781 = vadd.f32 %v1780, %v1766
      %v1782 = vadd.f32 %v1781, %v1767
      %v1783 = vadd.f32 %v1782, %v1768
      %v1784 = vadd.f32 %v1783, %v1769
      %v1785 = vadd.f32 %v1784, %v1770
      %v1786 = vadd.f32 %v1785, %v1771
      %v1787 = vadd.f32 %v1786, %v1772
      %v1788 = vadd.f32 %v1787, %v1773
      %v1789 = vadd.f32 %v1788, %v1774
      %v1790 = vadd.f32 %v1789, %v1775
      %v1791 = vadd.f32 %v1790, %v1776
      %v1792 = vadd.f32 %v1791, %v1777
      %v1793 = vadd.f32 %v1792, %v1778
      %v1794 = vadd.f32 %v1793, %v1779
      %v1795 = vrot.slane %v1794, 4
      %v1796 = vadd.f32 %v1794, %v1795
      %v1797 = vrot.slane %v1796, 2
      %v1798 = vadd.f32 %v1796, %v1797
      %v1799 = vrot.slane %v1798, 1
      %v1800 = vadd.f32 %v1798, %v1799
      %1801 = vst [vmem:[%s259] sm:$0x1] %v1800
      %s1802 = smul.u32 8, %s21
      %p1803 = scmp.lt.s32.totalorder %s20, 1
      %s1804 = scalar_select %p1803, %s20, 1
      %p1805 = scmp.lt.s32.totalorder %s1802, 15
      %s1806 = scalar_select %p1805, %s1802, 15
      %s1807 = smul.addr %s1806, 2
      %s1808 = smul.addr %s1804, 32
      %s1809 = sadd.s32 %s1807, %s1808
      %s1810 = smul.addr %s1809, 4
      %s1811 = scalar_lea.vmem %s2, %s1810
      %p1812 = scmp.lt.s32.totalorder %s20, 1
      %s1813 = scalar_select %p1812, %s20, 1
      %p1814 = scmp.lt.s32.totalorder %s21, 1
      %s1815 = scalar_select %p1814, %s21, 1
      %s1816 = smul.addr %s1813, 2
      %s1817 = sadd.s32 %s1815, %s1816
      %s1818 = scalar_lea.vmem %s3, %s1817
      %p1819 = scmp.lt.s32.totalorder %s20, 1
      %s1820 = scalar_select %p1819, %s20, 1
      %p1821 = scmp.lt.s32.totalorder %s21, 1
      %s1822 = scalar_select %p1821, %s21, 1
      %s1823 = smul.addr %s1820, 2
      %s1824 = sadd.s32 %s1822, %s1823
      %s1825 = scalar_lea.vmem %s4, %s1824
      // Predicated region
      $region29: #{residual_block_forward.3} parent=27 // pred_check
        %p1826 = pneg %p95
      $region30: #{residual_block_forward.3} parent=27 // pred_check_branch
        %1828 = sbr.rel (%p1826) target = $region32
      $region31: #{residual_block_forward.3} parent=27 // pred_region
        %s1829 = smul.u32 8, %s21
      $region32: #{residual_block_forward.3} parent=27 // pred_fallthru
        _
      // Predicated region
      $region33: #{residual_block_forward.3} parent=27 // pred_check
        %p1830 = pneg %p123
      $region34: #{residual_block_forward.3} parent=27 // pred_check_branch
        %1832 = sbr.rel (%p1830) target = $region36
      $region35: #{residual_block_forward.3} parent=27 // pred_region
        _
      $region36: #{residual_block_forward.3} parent=27 // pred_fallthru
        _
      // Predicated region
      $region37: #{residual_block_forward.3} parent=27 // pred_check
        %p1833 = pneg %p151
      $region38: #{residual_block_forward.3} parent=27 // pred_check_branch
        %1835 = sbr.rel (%p1833) target = $region40
      $region39: #{residual_block_forward.3} parent=27 // pred_region
        _
      $region40: #{residual_block_forward.3} parent=27 // pred_fallthru
        _
    $region28: #{residual_block_forward.3} parent=5 // pred_fallthru
      _
    %p1836 = scmp.le.s32.totalorder 2, %s11
    // Predicated region
    $region41: #{residual_block_forward.3} parent=5 // pred_check
      %p1837 = pneg %p1836
    $region42: #{residual_block_forward.3} parent=5 // pred_check_branch
      %1839 = sbr.rel (%p1837) target = $region44
    $region43: #{residual_block_forward.3} parent=5 // pred_region
      %s1840 = ssub.s32 %s11, 2
      // Predicated region
      $region45: #{residual_block_forward.3} parent=43 // pred_check
        %p1841 = pneg %p101
      $region46: #{residual_block_forward.3} parent=43 // pred_check_branch
        %1843 = sbr.rel (%p1841) target = $region48
      $region47: #{residual_block_forward.3} parent=43 // pred_region
        %s1844 = smul.u32 8, %s23
        %p1845 = scmp.lt.s32.totalorder %s22, 1
        %s1846 = scalar_select %p1845, %s22, 1
        %p1847 = scmp.lt.s32.totalorder %s1844, 15
        %s1848 = scalar_select %p1847, %s1844, 15
        %s1849 = smul.addr %s1848, 2
        %s1850 = smul.addr %s1846, 32
        %s1851 = sadd.s32 %s1849, %s1850
        %s1852 = smul.addr %s1851, 4
        %s1853 = scalar_lea.vmem %s2, %s1852
      $region48: #{residual_block_forward.3} parent=43 // pred_fallthru
        _
      // Predicated region
      $region49: #{residual_block_forward.3} parent=43 // pred_check
        %p1854 = pneg %p129
      $region50: #{residual_block_forward.3} parent=43 // pred_check_branch
        %1856 = sbr.rel (%p1854) target = $region52
      $region51: #{residual_block_forward.3} parent=43 // pred_region
        %p1857 = scmp.lt.s32.totalorder %s22, 1
        %s1858 = scalar_select %p1857, %s22, 1
        %p1859 = scmp.lt.s32.totalorder %s23, 1
        %s1860 = scalar_select %p1859, %s23, 1
        %s1861 = smul.addr %s1858, 2
        %s1862 = sadd.s32 %s1860, %s1861
        %s1863 = scalar_lea.vmem %s3, %s1862
      $region52: #{residual_block_forward.3} parent=43 // pred_fallthru
        _
      // Predicated region
      $region53: #{residual_block_forward.3} parent=43 // pred_check
        %p1864 = pneg %p157
      $region54: #{residual_block_forward.3} parent=43 // pred_check_branch
        %1866 = sbr.rel (%p1864) target = $region56
      $region55: #{residual_block_forward.3} parent=43 // pred_region
        %p1867 = scmp.lt.s32.totalorder %s22, 1
        %s1868 = scalar_select %p1867, %s22, 1
        %p1869 = scmp.lt.s32.totalorder %s23, 1
        %s1870 = scalar_select %p1869, %s23, 1
        %s1871 = smul.addr %s1868, 2
        %s1872 = sadd.s32 %s1870, %s1871
        %s1873 = scalar_lea.vmem %s4, %s1872
      $region56: #{residual_block_forward.3} parent=43 // pred_fallthru
        _
    $region44: #{residual_block_forward.3} parent=5 // pred_fallthru
      _
  $region6: #{residual_block_forward.3} parent=0 // loop_footer
    %s15 = sadd.s32 1, %s11
  $region7: #{residual_block_forward.3} parent=0 // loop_footer_branch
    %10 = sbr.rel target = $region3
  $region8: #{residual_block_forward.3} parent=0 // loop_exit
    _

// kernel: residual_block_forward.4
$region0: #{residual_block_forward.4}
  #allocation0 [shape = 'u32[]', space=smem, size = 0x4, offset = 0x4, fixed_abs, tag = 'smem constant byte address 0x4 - core index']
  #allocation1 [shape = 'u32[72,128]{1,0:T(1,128)}', space=vmem, size = 0x9000, scoped, tag = 'internal scratch']
  %s0 = inlined_call_operand.vmem [shape: bf16[2,16,16,128], index: 0, kind: input, shape index: {}]
  %s1 = inlined_call_operand.vmem [shape: bf16[9,128,128], index: 1, kind: input, shape index: {}]
  %s2 = inlined_call_operand.vmem [shape: f32[1,128], index: 2, kind: input, shape index: {}]
  %s3 = inlined_call_operand.vmem [shape: f32[1,128], index: 3, kind: input, shape index: {}]
  %s4 = inlined_call_operand.vmem [shape: bf16[2,16,16,128], index: 4, kind: output, shape index: {0}]
  %s5 = inlined_call_operand.vmem [shape: f32[2,2,1,128], index: 5, kind: output, shape index: {1}]
  %s6 = inlined_call_operand.vmem [shape: f32[2,2,1,128], index: 6, kind: output, shape index: {2}]
  %7 = xla_tuple %s4, %s5, %s6
  %s8 = sld [smem:[#allocation0]]
  $region65: #{residual_block_forward.4} parent=0
    _
  %s10 = ssub.s32 1, %s8
  %s11 = scalar_select 0, %s10, %s8
  loop: start=0, step=1, limit=6
  $region2: #{residual_block_forward.4} parent=0 // loop_pre_header
    _
  $region3: #{residual_block_forward.4} parent=0 // loop_header
    %s13 = sphi 0, %s17
    %p14 = scmp.ge.s32.totalorder %s13, 6
    %s20 = sphi 0, %s32
    %s21 = sphi 0, %s28
    %s22 = sphi 0, %s20
    %s23 = sphi 0, %s21
    %s24 = sphi 0, %s22
    %s25 = sphi 0, %s23
    %s35 = sphi 0, %s37
    %s38 = sphi 0, %s35
    %s39 = sphi 0, %s38
    %s55 = sphi 0, %s39
    %s59 = sphi 0, %s59
    %s61 = sphi 0, %s59
    %s62 = sphi 0, %s61
    %s76 = sphi 0, %s62
    %s80 = sphi 0, %s80
    %s82 = sphi 0, %s80
    %s83 = sphi 0, %s82
    %s97 = sphi 0, %s83
    %s101 = sphi 0, %s101
    %s103 = sphi 0, %s101
    %s104 = sphi 0, %s103
    %s118 = sphi 0, %s104
    %s126 = sphi 0, %s128
    %s129 = sphi 0, %s126
    %s130 = sphi 0, %s129
    %s146 = sphi 0, %s130
    %s154 = sphi 0, %s156
    %s157 = sphi 0, %s154
    %s158 = sphi 0, %s157
    %s174 = sphi 0, %s158
    %s182 = sphi 0, %s184
    %s185 = sphi 0, %s182
    %s186 = sphi 0, %s185
    %s202 = sphi 0, %s186
  $region4: #{residual_block_forward.4} parent=0 // loop_header_branch
    %16 = sbr.rel (%p14) target = $region8
  $region5: #{residual_block_forward.4} parent=0 // loop_body
    %s18 = ssub.s32 %s13, 1
    %s19 = ssub.s32 %s13, 2
    %s26 = sadd.s32 1, %s21
    %p27 = scmp.ge.s32.totalorder %s26, 2
    %s28 = scalar_select %p27, 0, %s26
    %s29 = sadd.s32 1, %s20
    %s30 = scalar_select %p27, %s29, %s20
    %p31 = scmp.ge.s32.totalorder %s30, 2
    %s32 = scalar_select %p31, 0, %s30
    %s33 = ssub.s32 %s20, %s32
    %p34 = scmp.eq.s32.totalorder %s33, 0
    %s36 = sadd.s32 %s35, 1
    %s37 = scalar_select %p34, %s35, %s36
    %p40 = pneg %p34
    %p41 = scmp.eq.s32.totalorder %s13, 3
    %p42 = por %p40, %p41
    %p43 = scmp.ne.s32.totalorder %s35, %s38
    %p44 = scmp.eq.s32.totalorder %s13, 0
    %p45 = por %p43, %p44
    %p46 = scmp.ne.s32.totalorder %s35, %s38
    %p47 = scmp.eq.s32.totalorder %s18, 3
    %p48 = por %p46, %p47
    %p49 = scmp.ne.s32.totalorder %s38, %s39
    %p50 = scmp.eq.s32.totalorder %s18, 0
    %p51 = por %p49, %p50
    %p52 = scmp.ne.s32.totalorder %s38, %s39
    %p53 = scmp.eq.s32.totalorder %s19, 3
    %p54 = por %p52, %p53
    %p56 = scmp.ne.s32.totalorder %s39, %s55
    %p57 = scmp.eq.s32.totalorder %s19, 0
    %p58 = por %p56, %p57
    %s60 = sadd.s32 %s59, 1
    %p63 = scmp.eq.s32.totalorder %s13, 3
    %p64 = scmp.ne.s32.totalorder %s59, %s61
    %p65 = scmp.eq.s32.totalorder %s13, 0
    %p66 = por %p64, %p65
    %p67 = scmp.ne.s32.totalorder %s59, %s61
    %p68 = scmp.eq.s32.totalorder %s18, 3
    %p69 = por %p67, %p68
    %p70 = scmp.ne.s32.totalorder %s61, %s62
    %p71 = scmp.eq.s32.totalorder %s18, 0
    %p72 = por %p70, %p71
    %p73 = scmp.ne.s32.totalorder %s61, %s62
    %p74 = scmp.eq.s32.totalorder %s19, 3
    %p75 = por %p73, %p74
    %p77 = scmp.ne.s32.totalorder %s62, %s76
    %p78 = scmp.eq.s32.totalorder %s19, 0
    %p79 = por %p77, %p78
    %s81 = sadd.s32 %s80, 1
    %p84 = scmp.eq.s32.totalorder %s13, 3
    %p85 = scmp.ne.s32.totalorder %s80, %s82
    %p86 = scmp.eq.s32.totalorder %s13, 0
    %p87 = por %p85, %p86
    %p88 = scmp.ne.s32.totalorder %s80, %s82
    %p89 = scmp.eq.s32.totalorder %s18, 3
    %p90 = por %p88, %p89
    %p91 = scmp.ne.s32.totalorder %s82, %s83
    %p92 = scmp.eq.s32.totalorder %s18, 0
    %p93 = por %p91, %p92
    %p94 = scmp.ne.s32.totalorder %s82, %s83
    %p95 = scmp.eq.s32.totalorder %s19, 3
    %p96 = por %p94, %p95
    %p98 = scmp.ne.s32.totalorder %s83, %s97
    %p99 = scmp.eq.s32.totalorder %s19, 0
    %p100 = por %p98, %p99
    %s102 = sadd.s32 %s101, 1
    %p105 = scmp.eq.s32.totalorder %s13, 3
    %p106 = scmp.ne.s32.totalorder %s101, %s103
    %p107 = scmp.eq.s32.totalorder %s13, 0
    %p108 = por %p106, %p107
    %p109 = scmp.ne.s32.totalorder %s101, %s103
    %p110 = scmp.eq.s32.totalorder %s18, 3
    %p111 = por %p109, %p110
    %p112 = scmp.ne.s32.totalorder %s103, %s104
    %p113 = scmp.eq.s32.totalorder %s18, 0
    %p114 = por %p112, %p113
    %p115 = scmp.ne.s32.totalorder %s103, %s104
    %p116 = scmp.eq.s32.totalorder %s19, 3
    %p117 = por %p115, %p116
    %p119 = scmp.ne.s32.totalorder %s104, %s118
    %p120 = scmp.eq.s32.totalorder %s19, 0
    %p121 = por %p119, %p120
    %s122 = ssub.s32 %s20, %s32
    %s123 = ssub.s32 %s21, %s28
    %s124 = sor.u32 %s122, %s123
    %p125 = scmp.eq.s32.totalorder %s124, 0
    %s127 = sadd.s32 %s126, 1
    %s128 = scalar_select %p125, %s126, %s127
    %p131 = pneg %p125
    %p132 = scmp.eq.s32.totalorder %s13, 3
    %p133 = por %p131, %p132
    %p134 = scmp.ne.s32.totalorder %s126, %s129
    %p135 = scmp.eq.s32.totalorder %s13, 0
    %p136 = por %p134, %p135
    %p137 = scmp.ne.s32.totalorder %s126, %s129
    %p138 = scmp.eq.s32.totalorder %s18, 3
    %p139 = por %p137, %p138
    %p140 = scmp.ne.s32.totalorder %s129, %s130
    %p141 = scmp.eq.s32.totalorder %s18, 0
    %p142 = por %p140, %p141
    %p143 = scmp.ne.s32.totalorder %s129, %s130
    %p144 = scmp.eq.s32.totalorder %s19, 3
    %p145 = por %p143, %p144
    %p147 = scmp.ne.s32.totalorder %s130, %s146
    %p148 = scmp.eq.s32.totalorder %s19, 0
    %p149 = por %p147, %p148
    %s150 = ssub.s32 %s20, %s32
    %s151 = ssub.s32 %s21, %s28
    %s152 = sor.u32 %s150, %s151
    %p153 = scmp.eq.s32.totalorder %s152, 0
    %s155 = sadd.s32 %s154, 1
    %s156 = scalar_select %p153, %s154, %s155
    %p159 = pneg %p153
    %p160 = scmp.eq.s32.totalorder %s13, 3
    %p161 = por %p159, %p160
    %p162 = scmp.ne.s32.totalorder %s154, %s157
    %p163 = scmp.eq.s32.totalorder %s13, 0
    %p164 = por %p162, %p163
    %p165 = scmp.ne.s32.totalorder %s154, %s157
    %p166 = scmp.eq.s32.totalorder %s18, 3
    %p167 = por %p165, %p166
    %p168 = scmp.ne.s32.totalorder %s157, %s158
    %p169 = scmp.eq.s32.totalorder %s18, 0
    %p170 = por %p168, %p169
    %p171 = scmp.ne.s32.totalorder %s157, %s158
    %p172 = scmp.eq.s32.totalorder %s19, 3
    %p173 = por %p171, %p172
    %p175 = scmp.ne.s32.totalorder %s158, %s174
    %p176 = scmp.eq.s32.totalorder %s19, 0
    %p177 = por %p175, %p176
    %s178 = ssub.s32 %s20, %s32
    %s179 = ssub.s32 %s21, %s28
    %s180 = sor.u32 %s178, %s179
    %p181 = scmp.eq.s32.totalorder %s180, 0
    %s183 = sadd.s32 %s182, 1
    %s184 = scalar_select %p181, %s182, %s183
    %p187 = pneg %p181
    %p188 = scmp.eq.s32.totalorder %s13, 3
    %p189 = por %p187, %p188
    %p190 = scmp.ne.s32.totalorder %s182, %s185
    %p191 = scmp.eq.s32.totalorder %s13, 0
    %p192 = por %p190, %p191
    %p193 = scmp.ne.s32.totalorder %s182, %s185
    %p194 = scmp.eq.s32.totalorder %s18, 3
    %p195 = por %p193, %p194
    %p196 = scmp.ne.s32.totalorder %s185, %s186
    %p197 = scmp.eq.s32.totalorder %s18, 0
    %p198 = por %p196, %p197
    %p199 = scmp.ne.s32.totalorder %s185, %s186
    %p200 = scmp.eq.s32.totalorder %s19, 3
    %p201 = por %p199, %p200
    %p203 = scmp.ne.s32.totalorder %s186, %s202
    %p204 = scmp.eq.s32.totalorder %s19, 0
    %p205 = por %p203, %p204
    %p206 = scmp.le.s32.totalorder 1, %s13
    %p207 = scmp.lt.s32.totalorder %s13, 5
    %p208 = pnand %p206, %p207
    %p209 = pneg %p208
    // Predicated region
    $region9: #{residual_block_forward.4} parent=5 // pred_check
      _
    $region10: #{residual_block_forward.4} parent=5 // pred_check_branch
      %211 = sbr.rel (%p208) target = $region12
    $region11: #{residual_block_forward.4} parent=5 // pred_region
      %s212 = ssub.s32 %s13, 1
      // Predicated region
      $region13: #{residual_block_forward.4} parent=11 // pred_check
        %p213 = pneg %p72
      $region14: #{residual_block_forward.4} parent=11 // pred_check_branch
        %215 = sbr.rel (%p213) target = $region16
      $region15: #{residual_block_forward.4} parent=11 // pred_region
        _
      $region16: #{residual_block_forward.4} parent=11 // pred_fallthru
        _
      // Predicated region
      $region17: #{residual_block_forward.4} parent=11 // pred_check
        %p216 = pneg %p93
      $region18: #{residual_block_forward.4} parent=11 // pred_check_branch
        %218 = sbr.rel (%p216) target = $region20
      $region19: #{residual_block_forward.4} parent=11 // pred_region
        _
      $region20: #{residual_block_forward.4} parent=11 // pred_fallthru
        _
      // Predicated region
      $region21: #{residual_block_forward.4} parent=11 // pred_check
        %p219 = pneg %p114
      $region22: #{residual_block_forward.4} parent=11 // pred_check_branch
        %221 = sbr.rel (%p219) target = $region24
      $region23: #{residual_block_forward.4} parent=11 // pred_region
        _
      $region24: #{residual_block_forward.4} parent=11 // pred_fallthru
        _
    $region12: #{residual_block_forward.4} parent=5 // pred_fallthru
      _
    %p222 = scmp.lt.s32.totalorder %s13, 4
    // Predicated region
    $region25: #{residual_block_forward.4} parent=5 // pred_check
      %p223 = pneg %p222
    $region26: #{residual_block_forward.4} parent=5 // pred_check_branch
      %225 = sbr.rel (%p223) target = $region28
    $region27: #{residual_block_forward.4} parent=5 // pred_region
      // Predicated region
      $region29: #{residual_block_forward.4} parent=27 // pred_check
        %p226 = pneg %p45
      $region30: #{residual_block_forward.4} parent=27 // pred_check_branch
        %228 = sbr.rel (%p226) target = $region32
      $region31: #{residual_block_forward.4} parent=27 // pred_region
        %p229 = scmp.lt.s32.totalorder %s20, 1
        %s230 = scalar_select %p229, %s20, 1
        %s231 = smul.addr %s230, 32
        %s232 = smul.addr %s231, 4
        %s233 = scalar_lea.vmem %s0, %s232
      $region32: #{residual_block_forward.4} parent=27 // pred_fallthru
        _
    $region28: #{residual_block_forward.4} parent=5 // pred_fallthru
      _
    %p234 = scmp.le.s32.totalorder 1, %s13
    %p235 = scmp.lt.s32.totalorder %s13, 5
    %p236 = pnand %p234, %p235
    %p237 = pneg %p236
    // Predicated region
    $region33: #{residual_block_forward.4} parent=5 // pred_check
      _
    $region34: #{residual_block_forward.4} parent=5 // pred_check_branch
      %239 = sbr.rel (%p236) target = $region36
    $region35: #{residual_block_forward.4} parent=5 // pred_region
      %s240 = ssub.s32 %s13, 1
      %p241 = scmp.lt.s32.totalorder %s22, 1
      %s242 = scalar_select %p241, %s22, 1
      %s243 = smul.addr %s242, 32
      %s244 = smul.addr %s243, 4
      %s245 = scalar_lea.vmem %s0, %s244
      %p246 = pneg %p51
      %p247 = pneg %p48
      %p248 = pneg %p72
      %p249 = pneg %p69
      %p250 = pneg %p93
      %p251 = pneg %p90
      %p252 = pneg %p114
      %p253 = pneg %p111
      %p254 = pneg %p142
      %p255 = pneg %p139
      %s256 = smul.u32 8, %s23
      %p257 = scmp.lt.s32.totalorder %s22, 1
      %s258 = scalar_select %p257, %s22, 1
      %p259 = scmp.lt.s32.totalorder %s256, 15
      %s260 = scalar_select %p259, %s256, 15
      %s261 = smul.addr %s260, 2
      %s262 = smul.addr %s258, 32
      %s263 = sadd.s32 %s261, %s262
      %s264 = smul.addr %s263, 4
      %s265 = scalar_lea.vmem %s4, %s264
      %p266 = pneg %p170
      %p267 = pneg %p167
      %p268 = scmp.lt.s32.totalorder %s22, 1
      %s269 = scalar_select %p268, %s22, 1
      %p270 = scmp.lt.s32.totalorder %s23, 1
      %s271 = scalar_select %p270, %s23, 1
      %s272 = smul.addr %s269, 2
      %s273 = sadd.s32 %s271, %s272
      %s274 = scalar_lea.vmem %s5, %s273
      %p275 = pneg %p198
      %p276 = pneg %p195
      %p277 = scmp.lt.s32.totalorder %s22, 1
      %s278 = scalar_select %p277, %s22, 1
      %p279 = scmp.lt.s32.totalorder %s23, 1
      %s280 = scalar_select %p279, %s23, 1
      %s281 = smul.addr %s278, 2
      %s282 = sadd.s32 %s280, %s281
      %s283 = scalar_lea.vmem %s6, %s282
      %p284 = scmp.lt.s32.totalorder %s22, 1
      %s285 = scalar_select %p284, %s22, 1
      %s286 = smul.addr %s285, 32
      %s287 = smul.addr %s286, 4
      %s288 = scalar_lea.vmem %s0, %s287
      %s289 = smul.u32 8, %s23
      %p290 = scmp.lt.s32.totalorder %s22, 1
      %s291 = scalar_select %p290, %s22, 1
      %p292 = scmp.lt.s32.totalorder %s289, 15
      %s293 = scalar_select %p292, %s289, 15
      %s294 = smul.addr %s293, 2
      %s295 = smul.addr %s291, 32
      %s296 = sadd.s32 %s294, %s295
      %s297 = smul.addr %s296, 4
      %s298 = scalar_lea.vmem %s4, %s297
      %s299 = smul.u32 8, %s23
      %p300 = scmp.lt.s32.totalorder %s22, 1
      %s301 = scalar_select %p300, %s22, 1
      %p302 = scmp.lt.s32.totalorder %s23, 1
      %s303 = scalar_select %p302, %s23, 1
      %s304 = smul.addr %s301, 2
      %s305 = sadd.s32 %s303, %s304
      %s306 = scalar_lea.vmem %s5, %s305
      %p307 = scmp.lt.s32.totalorder %s22, 1
      %s308 = scalar_select %p307, %s22, 1
      %p309 = scmp.lt.s32.totalorder %s23, 1
      %s310 = scalar_select %p309, %s23, 1
      %s311 = smul.addr %s308, 2
      %s312 = sadd.s32 %s310, %s311
      %s313 = scalar_lea.vmem %s6, %s312
      %s315 = smul.u32 %s23, 8
      %s316 = ssub.s32 %s315, 1
      %p317 = scmp.gt.s32.totalorder %s316, 0
      %s318 = scalar_select %p317, %s316, 0
      %s319 = smul.u32 %s318, 2
      %s320 = smul.addr %s319, 4
      %s321 = scalar_lea.vmem %s288, %s320
      %v322 = vld [vmem:[%s321] sm:$0xf]
      %v323 = vld [vmem:[%s321 + $0x4] sm:$0xf]
      %s324 = smul.u32 %s315, 2
      %s325 = smul.addr %s324, 4
      %s326 = scalar_lea.vmem %s288, %s325
      %v327 = vld [vmem:[%s326] sm:$0xf]
      %v328 = vld [vmem:[%s326 + $0x4] sm:$0xf]
      %v329 = vld [vmem:[%s326 + $0x8] sm:$0xf]
      %v330 = vld [vmem:[%s326 + $0xc] sm:$0xf]
      %v331 = vld [vmem:[%s326 + $0x10] sm:$0xf]
      %v332 = vld [vmem:[%s326 + $0x14] sm:$0xf]
      %v333 = vld [vmem:[%s326 + $0x18] sm:$0xf]
      %v334 = vld [vmem:[%s326 + $0x1c] sm:$0xf]
      %v335 = vld [vmem:[%s326 + $0x20] sm:$0xf]
      %v336 = vld [vmem:[%s326 + $0x24] sm:$0xf]
      %v337 = vld [vmem:[%s326 + $0x28] sm:$0xf]
      %v338 = vld [vmem:[%s326 + $0x2c] sm:$0xf]
      %v339 = vld [vmem:[%s326 + $0x30] sm:$0xf]
      %v340 = vld [vmem:[%s326 + $0x34] sm:$0xf]
      %v341 = vld [vmem:[%s326 + $0x38] sm:$0xf]
      %v342 = vld [vmem:[%s326 + $0x3c] sm:$0xf]
      %s343 = sadd.s32 %s315, 8
      %p344 = scmp.lt.s32.totalorder %s343, 15
      %s345 = scalar_select %p344, %s343, 15
      %s346 = smul.u32 %s345, 2
      %s347 = smul.addr %s346, 4
      %s348 = scalar_lea.vmem %s288, %s347
      %v349 = vld [vmem:[%s348] sm:$0xf]
      %v350 = vld [vmem:[%s348 + $0x4] sm:$0xf]
      %v351 = vunpack.c.l.bf16 %v322
      %v352 = vunpack.c.l.bf16 %v323
      %v353 = vunpack.c.l.bf16 %v327
      %v354 = vunpack.c.l.bf16 %v328
      %v355 = vunpack.c.l.bf16 %v329
      %v356 = vunpack.c.l.bf16 %v330
      %v357 = vunpack.c.l.bf16 %v331
      %v358 = vunpack.c.l.bf16 %v332
      %v359 = vunpack.c.l.bf16 %v333
      %v360 = vunpack.c.l.bf16 %v334
      %v361 = vunpack.c.l.bf16 %v335
      %v362 = vunpack.c.l.bf16 %v336
      %v363 = vunpack.c.l.bf16 %v337
      %v364 = vunpack.c.l.bf16 %v338
      %v365 = vunpack.c.l.bf16 %v339
      %v366 = vunpack.c.l.bf16 %v340
      %v367 = vunpack.c.l.bf16 %v341
      %v368 = vunpack.c.l.bf16 %v342
      %v369 = vunpack.c.l.bf16 %v349
      %v370 = vunpack.c.l.bf16 %v350
      %v371 = vld [vmem:[%s2] sm:$0x1]
      %v372 = vld [vmem:[%s3] sm:$0x1]
      %v374 = vperm.slane %v371, 0
      %v376 = vmul.f32 %v351, %v374
      %v377 = vmul.f32 %v352, %v374
      %v378 = vmul.f32 %v353, %v374
      %v379 = vmul.f32 %v354, %v374
      %v380 = vmul.f32 %v355, %v374
      %v381 = vmul.f32 %v356, %v374
      %v382 = vmul.f32 %v357, %v374
      %v383 = vmul.f32 %v358, %v374
      %v384 = vmul.f32 %v359, %v374
      %v385 = vmul.f32 %v360, %v374
      %v386 = vmul.f32 %v361, %v374
      %v387 = vmul.f32 %v362, %v374
      %v388 = vmul.f32 %v363, %v374
      %v389 = vmul.f32 %v364, %v374
      %v390 = vmul.f32 %v365, %v374
      %v391 = vmul.f32 %v366, %v374
      %v392 = vmul.f32 %v367, %v374
      %v393 = vmul.f32 %v368, %v374
      %v394 = vmul.f32 %v369, %v374
      %v395 = vmul.f32 %v370, %v374
      %v397 = vperm.slane %v372, 0
      %v399 = vadd.f32 %v376, %v397
      %v400 = vadd.f32 %v377, %v397
      %v401 = vadd.f32 %v378, %v397
      %v402 = vadd.f32 %v379, %v397
      %v403 = vadd.f32 %v380, %v397
      %v404 = vadd.f32 %v381, %v397
      %v405 = vadd.f32 %v382, %v397
      %v406 = vadd.f32 %v383, %v397
      %v407 = vadd.f32 %v384, %v397
      %v408 = vadd.f32 %v385, %v397
      %v409 = vadd.f32 %v386, %v397
      %v410 = vadd.f32 %v387, %v397
      %v411 = vadd.f32 %v388, %v397
      %v412 = vadd.f32 %v389, %v397
      %v413 = vadd.f32 %v390, %v397
      %v414 = vadd.f32 %v391, %v397
      %v415 = vadd.f32 %v392, %v397
      %v416 = vadd.f32 %v393, %v397
      %v417 = vadd.f32 %v394, %v397
      %v418 = vadd.f32 %v395, %v397
      %v419 = vmax.f32 %v399, 0.0
      %v420 = vmax.f32 %v400, 0.0
      %v421 = vmax.f32 %v401, 0.0
      %v422 = vmax.f32 %v402, 0.0
      %v423 = vmax.f32 %v403, 0.0
      %v424 = vmax.f32 %v404, 0.0
      %v425 = vmax.f32 %v405, 0.0
      %v426 = vmax.f32 %v406, 0.0
      %v427 = vmax.f32 %v407, 0.0
      %v428 = vmax.f32 %v408, 0.0
      %v429 = vmax.f32 %v409, 0.0
      %v430 = vmax.f32 %v410, 0.0
      %v431 = vmax.f32 %v411, 0.0
      %v432 = vmax.f32 %v412, 0.0
      %v433 = vmax.f32 %v413, 0.0
      %v434 = vmax.f32 %v414, 0.0
      %v435 = vmax.f32 %v415, 0.0
      %v436 = vmax.f32 %v416, 0.0
      %v437 = vmax.f32 %v417, 0.0
      %v438 = vmax.f32 %v418, 0.0
      %v439 = vstv %s316
      %v440 = vadd.s32 %v439, 1
      %v441 = vadd.s32 %v439, 2
      %v442 = vadd.s32 %v439, 3
      %v443 = vadd.s32 %v439, 4
      %v444 = vadd.s32 %v439, 5
      %v445 = vadd.s32 %v439, 6
      %v446 = vadd.s32 %v439, 7
      %v447 = vadd.s32 %v439, 8
      %v448 = vadd.s32 %v439, 9
      %vm449 = vcmp.ge.s32.totalorder %v439, 0
      %vm450 = vcmp.ge.s32.totalorder %v440, 0
      %vm451 = vcmp.ge.s32.totalorder %v441, 0
      %vm452 = vcmp.ge.s32.totalorder %v442, 0
      %vm453 = vcmp.ge.s32.totalorder %v443, 0
      %vm454 = vcmp.ge.s32.totalorder %v444, 0
      %vm455 = vcmp.ge.s32.totalorder %v445, 0
      %vm456 = vcmp.ge.s32.totalorder %v446, 0
      %vm457 = vcmp.ge.s32.totalorder %v447, 0
      %vm458 = vcmp.ge.s32.totalorder %v448, 0
      %vm459 = vcmp.le.s32.totalorder %v439, 15
      %vm460 = vcmp.le.s32.totalorder %v440, 15
      %vm461 = vcmp.le.s32.totalorder %v441, 15
      %vm462 = vcmp.le.s32.totalorder %v442, 15
      %vm463 = vcmp.le.s32.totalorder %v443, 15
      %vm464 = vcmp.le.s32.totalorder %v444, 15
      %vm465 = vcmp.le.s32.totalorder %v445, 15
      %vm466 = vcmp.le.s32.totalorder %v446, 15
      %vm467 = vcmp.le.s32.totalorder %v447, 15
      %vm468 = vcmp.le.s32.totalorder %v448, 15
      %vm469 = vmand %vm449, %vm459
      %vm470 = vmand %vm450, %vm460
      %vm471 = vmand %vm451, %vm461
      %vm472 = vmand %vm452, %vm462
      %vm473 = vmand %vm453, %vm463
      %vm474 = vmand %vm454, %vm464
      %vm475 = vmand %vm455, %vm465
      %vm476 = vmand %vm456, %vm466
      %vm477 = vmand %vm457, %vm467
      %vm478 = vmand %vm458, %vm468
      %v479 = vsel %vm469, 1, 0
      %v480 = vsel %vm470, 1, 0
      %v481 = vsel %vm471, 1, 0
      %v482 = vsel %vm472, 1, 0
      %v483 = vsel %vm473, 1, 0
      %v484 = vsel %vm474, 1, 0
      %v485 = vsel %vm475, 1, 0
      %v486 = vsel %vm476, 1, 0
      %v487 = vsel %vm477, 1, 0
      %v488 = vsel %vm478, 1, 0
      %vm489 = vcmp.eq.s32.totalorder %v479, 1
      %vm490 = vcmp.eq.s32.totalorder %v480, 1
      %vm491 = vcmp.eq.s32.totalorder %v481, 1
      %vm492 = vcmp.eq.s32.totalorder %v482, 1
      %vm493 = vcmp.eq.s32.totalorder %v483, 1
      %vm494 = vcmp.eq.s32.totalorder %v484, 1
      %vm495 = vcmp.eq.s32.totalorder %v485, 1
      %vm496 = vcmp.eq.s32.totalorder %v486, 1
      %vm497 = vcmp.eq.s32.totalorder %v487, 1
      %vm498 = vcmp.eq.s32.totalorder %v488, 1
      %v499 = vsel %vm489, %v419, 0.0
      %v500 = vsel %vm489, %v420, 0.0
      %v501 = vsel %vm490, %v421, 0.0
      %v502 = vsel %vm490, %v422, 0.0
      %v503 = vsel %vm491, %v423, 0.0
      %v504 = vsel %vm491, %v424, 0.0
      %v505 = vsel %vm492, %v425, 0.0
      %v506 = vsel %vm492, %v426, 0.0
      %v507 = vsel %vm493, %v427, 0.0
      %v508 = vsel %vm493, %v428, 0.0
      %v509 = vsel %vm494, %v429, 0.0
      %v510 = vsel %vm494, %v430, 0.0
      %v511 = vsel %vm495, %v431, 0.0
      %v512 = vsel %vm495, %v432, 0.0
      %v513 = vsel %vm496, %v433, 0.0
      %v514 = vsel %vm496, %v434, 0.0
      %v515 = vsel %vm497, %v435, 0.0
      %v516 = vsel %vm497, %v436, 0.0
      %v517 = vsel %vm498, %v437, 0.0
      %v518 = vsel %vm498, %v438, 0.0
      %v519 = vpack.c.bf16 %v499, %v499
      %v520 = vpack.c.bf16 %v500, %v500
      %v521 = vpack.c.bf16 %v501, %v501
      %v522 = vpack.c.bf16 %v502, %v502
      %v523 = vpack.c.bf16 %v503, %v503
      %v524 = vpack.c.bf16 %v504, %v504
      %v525 = vpack.c.bf16 %v505, %v505
      %v526 = vpack.c.bf16 %v506, %v506
      %v527 = vpack.c.bf16 %v507, %v507
      %v528 = vpack.c.bf16 %v508, %v508
      %v529 = vpack.c.bf16 %v509, %v509
      %v530 = vpack.c.bf16 %v510, %v510
      %v531 = vpack.c.bf16 %v511, %v511
      %v532 = vpack.c.bf16 %v512, %v512
      %v533 = vpack.c.bf16 %v513, %v513
      %v534 = vpack.c.bf16 %v514, %v514
      %v535 = vpack.c.bf16 %v515, %v515
      %v536 = vpack.c.bf16 %v516, %v516
      %v537 = vpack.c.bf16 %v517, %v517
      %v538 = vpack.c.bf16 %v518, %v518
      %v555 = vunpack.c.l.b16 %v519
      %v556 = vunpack.c.l.b16 %v520
      %v557 = vunpack.c.l.b16 %v521
      %v558 = vunpack.c.l.b16 %v522
      %v559 = vunpack.c.l.b16 %v523
      %v560 = vunpack.c.l.b16 %v524
      %v561 = vunpack.c.l.b16 %v525
      %v562 = vunpack.c.l.b16 %v526
      %v563 = vunpack.c.l.b16 %v527
      %v564 = vunpack.c.l.b16 %v528
      %v565 = vunpack.c.l.b16 %v529
      %v566 = vunpack.c.l.b16 %v530
      %v567 = vunpack.c.l.b16 %v531
      %v568 = vunpack.c.l.b16 %v532
      %v569 = vunpack.c.l.b16 %v533
      %v570 = vunpack.c.l.b16 %v534
      %v571 = vpack.c.b16 %v556, %v555
      %v572 = vpack.c.b16 %v558, %v557
      %v573 = vpack.c.b16 %v560, %v559
      %v574 = vpack.c.b16 %v562, %v561
      %v575 = vpack.c.b16 %v564, %v563
      %v576 = vpack.c.b16 %v566, %v565
      %v577 = vpack.c.b16 %v568, %v567
      %v578 = vpack.c.b16 %v570, %v569
      %v580 = vshrl.u32 %v571, 16
      %v582 = vrot.slane %v580, 7
      %v583 = vshll.u32 %v571, 16
      %v585 = vor.u32 %v582, %v583
      %v587 = vshrl.u32 %v572, 16
      %v589 = vrot.slane %v587, 7
      %v590 = vshll.u32 %v572, 16
      %v592 = vor.u32 %v589, %v590
      %v594 = vshrl.u32 %v573, 16
      %v596 = vrot.slane %v594, 7
      %v597 = vshll.u32 %v573, 16
      %v599 = vor.u32 %v596, %v597
      %v601 = vshrl.u32 %v574, 16
      %v603 = vrot.slane %v601, 7
      %v604 = vshll.u32 %v574, 16
      %v606 = vor.u32 %v603, %v604
      %v608 = vshrl.u32 %v575, 16
      %v610 = vrot.slane %v608, 7
      %v611 = vshll.u32 %v575, 16
      %v613 = vor.u32 %v610, %v611
      %v615 = vshrl.u32 %v576, 16
      %v617 = vrot.slane %v615, 7
      %v618 = vshll.u32 %v576, 16
      %v620 = vor.u32 %v617, %v618
      %v622 = vshrl.u32 %v577, 16
      %v624 = vrot.slane %v622, 7
      %v625 = vshll.u32 %v577, 16
      %v627 = vor.u32 %v624, %v625
      %v629 = vshrl.u32 %v578, 16
      %v631 = vrot.slane %v629, 7
      %v632 = vshll.u32 %v578, 16
      %v634 = vor.u32 %v631, %v632
      %vm643 = vcmask 1040384
      %vm644 = vsmask.f32 256
      %vm645 = vmand %vm643, %vm644
      %v646 = vsel %vm645, 0, %v585
      %v647 = vsel %vm645, 0, %v592
      %v648 = vsel %vm645, 0, %v599
      %v649 = vsel %vm645, 0, %v606
      %v650 = vsel %vm645, 0, %v613
      %v651 = vsel %vm645, 0, %v620
      %v652 = vsel %vm645, 0, %v627
      %v653 = vsel %vm645, 0, %v634
      %v654 = vld [vmem:[%s1] sm:$0xf]
      %v655 = vld [vmem:[%s1 + $0x4] sm:$0xf]
      %v656 = vld [vmem:[%s1 + $0x8] sm:$0xf]
      %v657 = vld [vmem:[%s1 + $0xc] sm:$0xf]
      %v658 = vld [vmem:[%s1 + $0x10] sm:$0xf]
      %v659 = vld [vmem:[%s1 + $0x14] sm:$0xf]
      %v660 = vld [vmem:[%s1 + $0x18] sm:$0xf]
      %v661 = vld [vmem:[%s1 + $0x1c] sm:$0xf]
      %v662 = vld [vmem:[%s1 + $0x20] sm:$0xf]
      %v663 = vld [vmem:[%s1 + $0x24] sm:$0xf]
      %v664 = vld [vmem:[%s1 + $0x28] sm:$0xf]
      %v665 = vld [vmem:[%s1 + $0x2c] sm:$0xf]
      %v666 = vld [vmem:[%s1 + $0x30] sm:$0xf]
      %v667 = vld [vmem:[%s1 + $0x34] sm:$0xf]
      %v668 = vld [vmem:[%s1 + $0x38] sm:$0xf]
      %v669 = vld [vmem:[%s1 + $0x3c] sm:$0xf]
      %s670 = scalar_lea.vmem %s1, 64
      %v671 = vld [vmem:[%s670] sm:$0xf]
      %v672 = vld [vmem:[%s670 + $0x4] sm:$0xf]
      %v673 = vld [vmem:[%s670 + $0x8] sm:$0xf]
      %v674 = vld [vmem:[%s670 + $0xc] sm:$0xf]
      %v675 = vld [vmem:[%s670 + $0x10] sm:$0xf]
      %v676 = vld [vmem:[%s670 + $0x14] sm:$0xf]
      %v677 = vld [vmem:[%s670 + $0x18] sm:$0xf]
      %v678 = vld [vmem:[%s670 + $0x1c] sm:$0xf]
      %v679 = vld [vmem:[%s670 + $0x20] sm:$0xf]
      %v680 = vld [vmem:[%s670 + $0x24] sm:$0xf]
      %v681 = vld [vmem:[%s670 + $0x28] sm:$0xf]
      %v682 = vld [vmem:[%s670 + $0x2c] sm:$0xf]
      %v683 = vld [vmem:[%s670 + $0x30] sm:$0xf]
      %v684 = vld [vmem:[%s670 + $0x34] sm:$0xf]
      %v685 = vld [vmem:[%s670 + $0x38] sm:$0xf]
      %v686 = vld [vmem:[%s670 + $0x3c] sm:$0xf]
      %v711 = vunpack.c.l.b16 %v671
      %v712 = vunpack.c.l.b16 %v672
      %v713 = vunpack.c.l.b16 %v673
      %v714 = vunpack.c.l.b16 %v674
      %v715 = vunpack.c.l.b16 %v675
      %v716 = vunpack.c.l.b16 %v676
      %v717 = vunpack.c.l.b16 %v677
      %v718 = vunpack.c.l.b16 %v678
      %v719 = vunpack.c.l.b16 %v679
      %v720 = vunpack.c.l.b16 %v680
      %v721 = vunpack.c.l.b16 %v681
      %v722 = vunpack.c.l.b16 %v682
      %v723 = vunpack.c.l.b16 %v683
      %v724 = vunpack.c.l.b16 %v684
      %v725 = vunpack.c.l.b16 %v685
      %v726 = vunpack.c.l.b16 %v686
      %v727 = vpack.c.b16 %v712, %v711
      %v728 = vpack.c.b16 %v714, %v713
      %v729 = vpack.c.b16 %v716, %v715
      %v730 = vpack.c.b16 %v718, %v717
      %v731 = vpack.c.b16 %v720, %v719
      %v732 = vpack.c.b16 %v722, %v721
      %v733 = vpack.c.b16 %v724, %v723
      %v734 = vpack.c.b16 %v726, %v725
      %743 = vmatpush.bf16.msra.mxu0 %v734
      %744 = vmatpush.bf16.msra.mxu0 %v733
      %745 = vmatpush.bf16.msra.mxu0 %v732
      %746 = vmatpush.bf16.msra.mxu0 %v731
      %747 = vmatpush.bf16.msra.mxu0 %v730
      %748 = vmatpush.bf16.msra.mxu0 %v729
      %749 = vmatpush.bf16.msra.mxu0 %v728
      %750 = vmatpush.bf16.msra.mxu0 %v727
      %751 = vmatmul.bf16.gmra.mxu0 %v571
      %v752 = vpop.f32.mrf.mxu0
      %v753 = vadd.f32 0.0, %v752
      %v754 = vpop.f32.mrf.mxu0
      %v755 = vadd.f32 0.0, %v754
      %756 = vmatmul.bf16.gmra.mxu0 %v572
      %v757 = vpop.f32.mrf.mxu0
      %v758 = vadd.f32 0.0, %v757
      %v759 = vpop.f32.mrf.mxu0
      %v760 = vadd.f32 0.0, %v759
      %761 = vmatmul.bf16.gmra.mxu0 %v573
      %v762 = vpop.f32.mrf.mxu0
      %v763 = vadd.f32 0.0, %v762
      %v764 = vpop.f32.mrf.mxu0
      %v765 = vadd.f32 0.0, %v764
      %766 = vmatmul.bf16.gmra.mxu0 %v574
      %v767 = vpop.f32.mrf.mxu0
      %v768 = vadd.f32 0.0, %v767
      %v769 = vpop.f32.mrf.mxu0
      %v770 = vadd.f32 0.0, %v769
      %771 = vmatmul.bf16.gmra.mxu0 %v575
      %v772 = vpop.f32.mrf.mxu0
      %v773 = vadd.f32 0.0, %v772
      %v774 = vpop.f32.mrf.mxu0
      %v775 = vadd.f32 0.0, %v774
      %776 = vmatmul.bf16.gmra.mxu0 %v576
      %v777 = vpop.f32.mrf.mxu0
      %v778 = vadd.f32 0.0, %v777
      %v779 = vpop.f32.mrf.mxu0
      %v780 = vadd.f32 0.0, %v779
      %781 = vmatmul.bf16.gmra.mxu0 %v577
      %v782 = vpop.f32.mrf.mxu0
      %v783 = vadd.f32 0.0, %v782
      %v784 = vpop.f32.mrf.mxu0
      %v785 = vadd.f32 0.0, %v784
      %786 = vmatmul.bf16.gmra.mxu0 %v578
      %v787 = vpop.f32.mrf.mxu0
      %v788 = vadd.f32 0.0, %v787
      %v789 = vpop.f32.mrf.mxu0
      %v790 = vadd.f32 0.0, %v789
      %791 = vdwg.mxu0
      %v808 = vunpack.c.l.b16 %v654
      %v809 = vunpack.c.l.b16 %v655
      %v810 = vunpack.c.l.b16 %v656
      %v811 = vunpack.c.l.b16 %v657
      %v812 = vunpack.c.l.b16 %v658
      %v813 = vunpack.c.l.b16 %v659
      %v814 = vunpack.c.l.b16 %v660
      %v815 = vunpack.c.l.b16 %v661
      %v816 = vunpack.c.l.b16 %v662
      %v817 = vunpack.c.l.b16 %v663
      %v818 = vunpack.c.l.b16 %v664
      %v819 = vunpack.c.l.b16 %v665
      %v820 = vunpack.c.l.b16 %v666
      %v821 = vunpack.c.l.b16 %v667
      %v822 = vunpack.c.l.b16 %v668
      %v823 = vunpack.c.l.b16 %v669
      %v824 = vpack.c.b16 %v809, %v808
      %v825 = vpack.c.b16 %v811, %v810
      %v826 = vpack.c.b16 %v813, %v812
      %v827 = vpack.c.b16 %v815, %v814
      %v828 = vpack.c.b16 %v817, %v816
      %v829 = vpack.c.b16 %v819, %v818
      %v830 = vpack.c.b16 %v821, %v820
      %v831 = vpack.c.b16 %v823, %v822
      %840 = vmatpush.bf16.msra.mxu0 %v831
      %841 = vmatpush.bf16.msra.mxu0 %v830
      %842 = vmatpush.bf16.msra.mxu0 %v829
      %843 = vmatpush.bf16.msra.mxu0 %v828
      %844 = vmatpush.bf16.msra.mxu0 %v827
      %845 = vmatpush.bf16.msra.mxu0 %v826
      %846 = vmatpush.bf16.msra.mxu0 %v825
      %847 = vmatpush.bf16.msra.mxu0 %v824
      %848 = vmatmul.bf16.gmra.mxu0 %v646
      %v849 = vpop.f32.mrf.mxu0
      %v850 = vadd.f32 %v753, %v849
      %v851 = vpop.f32.mrf.mxu0
      %v852 = vadd.f32 %v755, %v851
      %853 = vmatmul.bf16.gmra.mxu0 %v647
      %v854 = vpop.f32.mrf.mxu0
      %v855 = vadd.f32 %v758, %v854
      %v856 = vpop.f32.mrf.mxu0
      %v857 = vadd.f32 %v760, %v856
      %858 = vmatmul.bf16.gmra.mxu0 %v648
      %v859 = vpop.f32.mrf.mxu0
      %v860 = vadd.f32 %v763, %v859
      %v861 = vpop.f32.mrf.mxu0
      %v862 = vadd.f32 %v765, %v861
      %863 = vmatmul.bf16.gmra.mxu0 %v649
      %v864 = vpop.f32.mrf.mxu0
      %v865 = vadd.f32 %v768, %v864
      %v866 = vpop.f32.mrf.mxu0
      %v867 = vadd.f32 %v770, %v866
      %868 = vmatmul.bf16.gmra.mxu0 %v650
      %v869 = vpop.f32.mrf.mxu0
      %v870 = vadd.f32 %v773, %v869
      %v871 = vpop.f32.mrf.mxu0
      %v872 = vadd.f32 %v775, %v871
      %873 = vmatmul.bf16.gmra.mxu0 %v651
      %v874 = vpop.f32.mrf.mxu0
      %v875 = vadd.f32 %v778, %v874
      %v876 = vpop.f32.mrf.mxu0
      %v877 = vadd.f32 %v780, %v876
      %878 = vmatmul.bf16.gmra.mxu0 %v652
      %v879 = vpop.f32.mrf.mxu0
      %v880 = vadd.f32 %v783, %v879
      %v881 = vpop.f32.mrf.mxu0
      %v882 = vadd.f32 %v785, %v881
      %883 = vmatmul.bf16.gmra.mxu0 %v653
      %v884 = vpop.f32.mrf.mxu0
      %v885 = vadd.f32 %v788, %v884
      %v886 = vpop.f32.mrf.mxu0
      %v887 = vadd.f32 %v790, %v886
      %888 = vdwg.mxu0
      %v889 = vrot.slane %v583, 1
      %v890 = vor.u32 %v580, %v889
      %v891 = vrot.slane %v590, 1
      %v892 = vor.u32 %v587, %v891
      %v893 = vrot.slane %v597, 1
      %v894 = vor.u32 %v594, %v893
      %v895 = vrot.slane %v604, 1
      %v896 = vor.u32 %v601, %v895
      %v897 = vrot.slane %v611, 1
      %v898 = vor.u32 %v608, %v897
      %v899 = vrot.slane %v618, 1
      %v900 = vor.u32 %v615, %v899
      %v901 = vrot.slane %v625, 1
      %v902 = vor.u32 %v622, %v901
      %v903 = vrot.slane %v632, 1
      %v904 = vor.u32 %v629, %v903
      %vm913 = vcmask 1047552
      %vm914 = vsmask.f32 7424
      %vm915 = vmand %vm913, %vm914
      %v916 = vsel %vm915, %v890, 0
      %v917 = vsel %vm915, %v892, 0
      %v918 = vsel %vm915, %v894, 0
      %v919 = vsel %vm915, %v896, 0
      %v920 = vsel %vm915, %v898, 0
      %v921 = vsel %vm915, %v900, 0
      %v922 = vsel %vm915, %v902, 0
      %v923 = vsel %vm915, %v904, 0
      %s924 = scalar_lea.vmem %s1, 128
      %v925 = vld [vmem:[%s924] sm:$0xf]
      %v926 = vld [vmem:[%s924 + $0x4] sm:$0xf]
      %v927 = vld [vmem:[%s924 + $0x8] sm:$0xf]
      %v928 = vld [vmem:[%s924 + $0xc] sm:$0xf]
      %v929 = vld [vmem:[%s924 + $0x10] sm:$0xf]
      %v930 = vld [vmem:[%s924 + $0x14] sm:$0xf]
      %v931 = vld [vmem:[%s924 + $0x18] sm:$0xf]
      %v932 = vld [vmem:[%s924 + $0x1c] sm:$0xf]
      %v933 = vld [vmem:[%s924 + $0x20] sm:$0xf]
      %v934 = vld [vmem:[%s924 + $0x24] sm:$0xf]
      %v935 = vld [vmem:[%s924 + $0x28] sm:$0xf]
      %v936 = vld [vmem:[%s924 + $0x2c] sm:$0xf]
      %v937 = vld [vmem:[%s924 + $0x30] sm:$0xf]
      %v938 = vld [vmem:[%s924 + $0x34] sm:$0xf]
      %v939 = vld [vmem:[%s924 + $0x38] sm:$0xf]
      %v940 = vld [vmem:[%s924 + $0x3c] sm:$0xf]
      %v957 = vunpack.c.l.b16 %v925
      %v958 = vunpack.c.l.b16 %v926
      %v959 = vunpack.c.l.b16 %v927
      %v960 = vunpack.c.l.b16 %v928
      %v961 = vunpack.c.l.b16 %v929
      %v962 = vunpack.c.l.b16 %v930
      %v963 = vunpack.c.l.b16 %v931
      %v964 = vunpack.c.l.b16 %v932
      %v965 = vunpack.c.l.b16 %v933
      %v966 = vunpack.c.l.b16 %v934
      %v967 = vunpack.c.l.b16 %v935
      %v968 = vunpack.c.l.b16 %v936
      %v969 = vunpack.c.l.b16 %v937
      %v970 = vunpack.c.l.b16 %v938
      %v971 = vunpack.c.l.b16 %v939
      %v972 = vunpack.c.l.b16 %v940
      %v973 = vpack.c.b16 %v958, %v957
      %v974 = vpack.c.b16 %v960, %v959
      %v975 = vpack.c.b16 %v962, %v961
      %v976 = vpack.c.b16 %v964, %v963
      %v977 = vpack.c.b16 %v966, %v965
      %v978 = vpack.c.b16 %v968, %v967
      %v979 = vpack.c.b16 %v970, %v969
      %v980 = vpack.c.b16 %v972, %v971
      %989 = vmatpush.bf16.msra.mxu0 %v980
      %990 = vmatpush.bf16.msra.mxu0 %v979
      %991 = vmatpush.bf16.msra.mxu0 %v978
      %992 = vmatpush.bf16.msra.mxu0 %v977
      %993 = vmatpush.bf16.msra.mxu0 %v976
      %994 = vmatpush.bf16.msra.mxu0 %v975
      %995 = vmatpush.bf16.msra.mxu0 %v974
      %996 = vmatpush.bf16.msra.mxu0 %v973
      %997 = vmatmul.bf16.gmra.mxu0 %v916
      %v998 = vpop.f32.mrf.mxu0
      %v999 = vadd.f32 0.0, %v998
      %v1000 = vpop.f32.mrf.mxu0
      %v1001 = vadd.f32 0.0, %v1000
      %1002 = vmatmul.bf16.gmra.mxu0 %v917
      %v1003 = vpop.f32.mrf.mxu0
      %v1004 = vadd.f32 0.0, %v1003
      %v1005 = vpop.f32.mrf.mxu0
      %v1006 = vadd.f32 0.0, %v1005
      %1007 = vmatmul.bf16.gmra.mxu0 %v918
      %v1008 = vpop.f32.mrf.mxu0
      %v1009 = vadd.f32 0.0, %v1008
      %v1010 = vpop.f32.mrf.mxu0
      %v1011 = vadd.f32 0.0, %v1010
      %1012 = vmatmul.bf16.gmra.mxu0 %v919
      %v1013 = vpop.f32.mrf.mxu0
      %v1014 = vadd.f32 0.0, %v1013
      %v1015 = vpop.f32.mrf.mxu0
      %v1016 = vadd.f32 0.0, %v1015
      %1017 = vmatmul.bf16.gmra.mxu0 %v920
      %v1018 = vpop.f32.mrf.mxu0
      %v1019 = vadd.f32 0.0, %v1018
      %v1020 = vpop.f32.mrf.mxu0
      %v1021 = vadd.f32 0.0, %v1020
      %1022 = vmatmul.bf16.gmra.mxu0 %v921
      %v1023 = vpop.f32.mrf.mxu0
      %v1024 = vadd.f32 0.0, %v1023
      %v1025 = vpop.f32.mrf.mxu0
      %v1026 = vadd.f32 0.0, %v1025
      %1027 = vmatmul.bf16.gmra.mxu0 %v922
      %v1028 = vpop.f32.mrf.mxu0
      %v1029 = vadd.f32 0.0, %v1028
      %v1030 = vpop.f32.mrf.mxu0
      %v1031 = vadd.f32 0.0, %v1030
      %1032 = vmatmul.bf16.gmra.mxu0 %v923
      %v1033 = vpop.f32.mrf.mxu0
      %v1034 = vadd.f32 0.0, %v1033
      %v1035 = vpop.f32.mrf.mxu0
      %v1036 = vadd.f32 0.0, %v1035
      %1037 = vdwg.mxu0
      %v1038 = vadd.f32 %v850, %v999
      %v1039 = vadd.f32 %v852, %v1001
      %v1040 = vadd.f32 %v855, %v1004
      %v1041 = vadd.f32 %v857, %v1006
      %v1042 = vadd.f32 %v860, %v1009
      %v1043 = vadd.f32 %v862, %v1011
      %v1044 = vadd.f32 %v865, %v1014
      %v1045 = vadd.f32 %v867, %v1016
      %v1046 = vadd.f32 %v870, %v1019
      %v1047 = vadd.f32 %v872, %v1021
      %v1048 = vadd.f32 %v875, %v1024
      %v1049 = vadd.f32 %v877, %v1026
      %v1050 = vadd.f32 %v880, %v1029
      %v1051 = vadd.f32 %v882, %v1031
      %v1052 = vadd.f32 %v885, %v1034
      %v1053 = vadd.f32 %v887, %v1036
      %v1056 = vunpack.c.l.b16 %v535
      %v1057 = vunpack.c.l.b16 %v536
      %v1058 = vpack.c.b16 %v1057, %v1056
      %v1060 = vshrl.u32 %v1058, 16
      %v1062 = vrot.slane %v1060, 7
      %v1063 = vshll.u32 %v1058, 16
      %v1065 = vor.u32 %v1062, %v1063
      %v1067 = vsel %vm645, 0, %v1065
      %s1068 = scalar_lea.vmem %s1, 192
      %v1069 = vld [vmem:[%s1068] sm:$0xf]
      %v1070 = vld [vmem:[%s1068 + $0x4] sm:$0xf]
      %v1071 = vld [vmem:[%s1068 + $0x8] sm:$0xf]
      %v1072 = vld [vmem:[%s1068 + $0xc] sm:$0xf]
      %v1073 = vld [vmem:[%s1068 + $0x10] sm:$0xf]
      %v1074 = vld [vmem:[%s1068 + $0x14] sm:$0xf]
      %v1075 = vld [vmem:[%s1068 + $0x18] sm:$0xf]
      %v1076 = vld [vmem:[%s1068 + $0x1c] sm:$0xf]
      %v1077 = vld [vmem:[%s1068 + $0x20] sm:$0xf]
      %v1078 = vld [vmem:[%s1068 + $0x24] sm:$0xf]
      %v1079 = vld [vmem:[%s1068 + $0x28] sm:$0xf]
      %v1080 = vld [vmem:[%s1068 + $0x2c] sm:$0xf]
      %v1081 = vld [vmem:[%s1068 + $0x30] sm:$0xf]
      %v1082 = vld [vmem:[%s1068 + $0x34] sm:$0xf]
      %v1083 = vld [vmem:[%s1068 + $0x38] sm:$0xf]
      %v1084 = vld [vmem:[%s1068 + $0x3c] sm:$0xf]
      %v1101 = vunpack.c.l.b16 %v1069
      %v1102 = vunpack.c.l.b16 %v1070
      %v1103 = vunpack.c.l.b16 %v1071
      %v1104 = vunpack.c.l.b16 %v1072
      %v1105 = vunpack.c.l.b16 %v1073
      %v1106 = vunpack.c.l.b16 %v1074
      %v1107 = vunpack.c.l.b16 %v1075
      %v1108 = vunpack.c.l.b16 %v1076
      %v1109 = vunpack.c.l.b16 %v1077
      %v1110 = vunpack.c.l.b16 %v1078
      %v1111 = vunpack.c.l.b16 %v1079
      %v1112 = vunpack.c.l.b16 %v1080
      %v1113 = vunpack.c.l.b16 %v1081
      %v1114 = vunpack.c.l.b16 %v1082
      %v1115 = vunpack.c.l.b16 %v1083
      %v1116 = vunpack.c.l.b16 %v1084
      %v1117 = vpack.c.b16 %v1102, %v1101
      %v1118 = vpack.c.b16 %v1104, %v1103
      %v1119 = vpack.c.b16 %v1106, %v1105
      %v1120 = vpack.c.b16 %v1108, %v1107
      %v1121 = vpack.c.b16 %v1110, %v1109
      %v1122 = vpack.c.b16 %v1112, %v1111
      %v1123 = vpack.c.b16 %v1114, %v1113
      %v1124 = vpack.c.b16 %v1116, %v1115
      %1133 = vmatpush.bf16.msra.mxu0 %v1124
      %1134 = vmatpush.bf16.msra.mxu0 %v1123
      %1135 = vmatpush.bf16.msra.mxu0 %v1122
      %1136 = vmatpush.bf16.msra.mxu0 %v1121
      %1137 = vmatpush.bf16.msra.mxu0 %v1120
      %1138 = vmatpush.bf16.msra.mxu0 %v1119
      %1139 = vmatpush.bf16.msra.mxu0 %v1118
      %1140 = vmatpush.bf16.msra.mxu0 %v1117
      %1141 = vmatmul.bf16.gmra.mxu0 %v647
      %v1142 = vpop.f32.mrf.mxu0
      %v1143 = vadd.f32 0.0, %v1142
      %v1144 = vpop.f32.mrf.mxu0
      %v1145 = vadd.f32 0.0, %v1144
      %1146 = vmatmul.bf16.gmra.mxu0 %v648
      %v1147 = vpop.f32.mrf.mxu0
      %v1148 = vadd.f32 0.0, %v1147
      %v1149 = vpop.f32.mrf.mxu0
      %v1150 = vadd.f32 0.0, %v1149
      %1151 = vmatmul.bf16.gmra.mxu0 %v649
      %v1152 = vpop.f32.mrf.mxu0
      %v1153 = vadd.f32 0.0, %v1152
      %v1154 = vpop.f32.mrf.mxu0
      %v1155 = vadd.f32 0.0, %v1154
      %1156 = vmatmul.bf16.gmra.mxu0 %v650
      %v1157 = vpop.f32.mrf.mxu0
      %v1158 = vadd.f32 0.0, %v1157
      %v1159 = vpop.f32.mrf.mxu0
      %v1160 = vadd.f32 0.0, %v1159
      %1161 = vmatmul.bf16.gmra.mxu0 %v651
      %v1162 = vpop.f32.mrf.mxu0
      %v1163 = vadd.f32 0.0, %v1162
      %v1164 = vpop.f32.mrf.mxu0
      %v1165 = vadd.f32 0.0, %v1164
      %1166 = vmatmul.bf16.gmra.mxu0 %v652
      %v1167 = vpop.f32.mrf.mxu0
      %v1168 = vadd.f32 0.0, %v1167
      %v1169 = vpop.f32.mrf.mxu0
      %v1170 = vadd.f32 0.0, %v1169
      %1171 = vmatmul.bf16.gmra.mxu0 %v653
      %v1172 = vpop.f32.mrf.mxu0
      %v1173 = vadd.f32 0.0, %v1172
      %v1174 = vpop.f32.mrf.mxu0
      %v1175 = vadd.f32 0.0, %v1174
      %1176 = vmatmul.bf16.gmra.mxu0 %v1067
      %v1177 = vpop.f32.mrf.mxu0
      %v1178 = vadd.f32 0.0, %v1177
      %v1179 = vpop.f32.mrf.mxu0
      %v1180 = vadd.f32 0.0, %v1179
      %1181 = vdwg.mxu0
      %v1182 = vadd.f32 %v1038, %v1143
      %v1183 = vadd.f32 %v1039, %v1145
      %v1184 = vadd.f32 %v1040, %v1148
      %v1185 = vadd.f32 %v1041, %v1150
      %v1186 = vadd.f32 %v1042, %v1153
      %v1187 = vadd.f32 %v1043, %v1155
      %v1188 = vadd.f32 %v1044, %v1158
      %v1189 = vadd.f32 %v1045, %v1160
      %v1190 = vadd.f32 %v1046, %v1163
      %v1191 = vadd.f32 %v1047, %v1165
      %v1192 = vadd.f32 %v1048, %v1168
      %v1193 = vadd.f32 %v1049, %v1170
      %v1194 = vadd.f32 %v1050, %v1173
      %v1195 = vadd.f32 %v1051, %v1175
      %v1196 = vadd.f32 %v1052, %v1178
      %v1197 = vadd.f32 %v1053, %v1180
      %s1198 = scalar_lea.vmem %s1, 256
      %v1199 = vld [vmem:[%s1198] sm:$0xf]
      %v1200 = vld [vmem:[%s1198 + $0x4] sm:$0xf]
      %v1201 = vld [vmem:[%s1198 + $0x8] sm:$0xf]
      %v1202 = vld [vmem:[%s1198 + $0xc] sm:$0xf]
      %v1203 = vld [vmem:[%s1198 + $0x10] sm:$0xf]
      %v1204 = vld [vmem:[%s1198 + $0x14] sm:$0xf]
      %v1205 = vld [vmem:[%s1198 + $0x18] sm:$0xf]
      %v1206 = vld [vmem:[%s1198 + $0x1c] sm:$0xf]
      %v1207 = vld [vmem:[%s1198 + $0x20] sm:$0xf]
      %v1208 = vld [vmem:[%s1198 + $0x24] sm:$0xf]
      %v1209 = vld [vmem:[%s1198 + $0x28] sm:$0xf]
      %v1210 = vld [vmem:[%s1198 + $0x2c] sm:$0xf]
      %v1211 = vld [vmem:[%s1198 + $0x30] sm:$0xf]
      %v1212 = vld [vmem:[%s1198 + $0x34] sm:$0xf]
      %v1213 = vld [vmem:[%s1198 + $0x38] sm:$0xf]
      %v1214 = vld [vmem:[%s1198 + $0x3c] sm:$0xf]
      %v1232 = vunpack.c.l.b16 %v1199
      %v1233 = vunpack.c.l.b16 %v1200
      %v1234 = vunpack.c.l.b16 %v1201
      %v1235 = vunpack.c.l.b16 %v1202
      %v1236 = vunpack.c.l.b16 %v1203
      %v1237 = vunpack.c.l.b16 %v1204
      %v1238 = vunpack.c.l.b16 %v1205
      %v1239 = vunpack.c.l.b16 %v1206
      %v1240 = vunpack.c.l.b16 %v1207
      %v1241 = vunpack.c.l.b16 %v1208
      %v1242 = vunpack.c.l.b16 %v1209
      %v1243 = vunpack.c.l.b16 %v1210
      %v1244 = vunpack.c.l.b16 %v1211
      %v1245 = vunpack.c.l.b16 %v1212
      %v1246 = vunpack.c.l.b16 %v1213
      %v1247 = vunpack.c.l.b16 %v1214
      %v1248 = vpack.c.b16 %v1233, %v1232
      %v1249 = vpack.c.b16 %v1235, %v1234
      %v1250 = vpack.c.b16 %v1237, %v1236
      %v1251 = vpack.c.b16 %v1239, %v1238
      %v1252 = vpack.c.b16 %v1241, %v1240
      %v1253 = vpack.c.b16 %v1243, %v1242
      %v1254 = vpack.c.b16 %v1245, %v1244
      %v1255 = vpack.c.b16 %v1247, %v1246
      %1264 = vmatpush.bf16.msra.mxu0 %v1255
      %1265 = vmatpush.bf16.msra.mxu0 %v1254
      %1266 = vmatpush.bf16.msra.mxu0 %v1253
      %1267 = vmatpush.bf16.msra.mxu0 %v1252
      %1268 = vmatpush.bf16.msra.mxu0 %v1251
      %1269 = vmatpush.bf16.msra.mxu0 %v1250
      %1270 = vmatpush.bf16.msra.mxu0 %v1249
      %1271 = vmatpush.bf16.msra.mxu0 %v1248
      %1272 = vmatmul.bf16.gmra.mxu0 %v572
      %v1273 = vpop.f32.mrf.mxu0
      %v1274 = vadd.f32 0.0, %v1273
      %v1275 = vpop.f32.mrf.mxu0
      %v1276 = vadd.f32 0.0, %v1275
      %1277 = vmatmul.bf16.gmra.mxu0 %v573
      %v1278 = vpop.f32.mrf.mxu0
      %v1279 = vadd.f32 0.0, %v1278
      %v1280 = vpop.f32.mrf.mxu0
      %v1281 = vadd.f32 0.0, %v1280
      %1282 = vmatmul.bf16.gmra.mxu0 %v574
      %v1283 = vpop.f32.mrf.mxu0
      %v1284 = vadd.f32 0.0, %v1283
      %v1285 = vpop.f32.mrf.mxu0
      %v1286 = vadd.f32 0.0, %v1285
      %1287 = vmatmul.bf16.gmra.mxu0 %v575
      %v1288 = vpop.f32.mrf.mxu0
      %v1289 = vadd.f32 0.0, %v1288
      %v1290 = vpop.f32.mrf.mxu0
      %v1291 = vadd.f32 0.0, %v1290
      %1292 = vmatmul.bf16.gmra.mxu0 %v576
      %v1293 = vpop.f32.mrf.mxu0
      %v1294 = vadd.f32 0.0, %v1293
      %v1295 = vpop.f32.mrf.mxu0
      %v1296 = vadd.f32 0.0, %v1295
      %1297 = vmatmul.bf16.gmra.mxu0 %v577
      %v1298 = vpop.f32.mrf.mxu0
      %v1299 = vadd.f32 0.0, %v1298
      %v1300 = vpop.f32.mrf.mxu0
      %v1301 = vadd.f32 0.0, %v1300
      %1302 = vmatmul.bf16.gmra.mxu0 %v578
      %v1303 = vpop.f32.mrf.mxu0
      %v1304 = vadd.f32 0.0, %v1303
      %v1305 = vpop.f32.mrf.mxu0
      %v1306 = vadd.f32 0.0, %v1305
      %1307 = vmatmul.bf16.gmra.mxu0 %v1058
      %v1308 = vpop.f32.mrf.mxu0
      %v1309 = vadd.f32 0.0, %v1308
      %v1310 = vpop.f32.mrf.mxu0
      %v1311 = vadd.f32 0.0, %v1310
      %1312 = vdwg.mxu0
      %v1313 = vadd.f32 %v1182, %v1274
      %v1314 = vadd.f32 %v1183, %v1276
      %v1315 = vadd.f32 %v1184, %v1279
      %v1316 = vadd.f32 %v1185, %v1281
      %v1317 = vadd.f32 %v1186, %v1284
      %v1318 = vadd.f32 %v1187, %v1286
      %v1319 = vadd.f32 %v1188, %v1289
      %v1320 = vadd.f32 %v1189, %v1291
      %v1321 = vadd.f32 %v1190, %v1294
      %v1322 = vadd.f32 %v1191, %v1296
      %v1323 = vadd.f32 %v1192, %v1299
      %v1324 = vadd.f32 %v1193, %v1301
      %v1325 = vadd.f32 %v1194, %v1304
      %v1326 = vadd.f32 %v1195, %v1306
      %v1327 = vadd.f32 %v1196, %v1309
      %v1328 = vadd.f32 %v1197, %v1311
      %v1329 = vrot.slane %v1063, 1
      %v1330 = vor.u32 %v1060, %v1329
      %v1332 = vsel %vm915, %v1330, 0
      %s1333 = scalar_lea.vmem %s1, 320
      %v1334 = vld [vmem:[%s1333] sm:$0xf]
      %v1335 = vld [vmem:[%s1333 + $0x4] sm:$0xf]
      %v1336 = vld [vmem:[%s1333 + $0x8] sm:$0xf]
      %v1337 = vld [vmem:[%s1333 + $0xc] sm:$0xf]
      %v1338 = vld [vmem:[%s1333 + $0x10] sm:$0xf]
      %v1339 = vld [vmem:[%s1333 + $0x14] sm:$0xf]
      %v1340 = vld [vmem:[%s1333 + $0x18] sm:$0xf]
      %v1341 = vld [vmem:[%s1333 + $0x1c] sm:$0xf]
      %v1342 = vld [vmem:[%s1333 + $0x20] sm:$0xf]
      %v1343 = vld [vmem:[%s1333 + $0x24] sm:$0xf]
      %v1344 = vld [vmem:[%s1333 + $0x28] sm:$0xf]
      %v1345 = vld [vmem:[%s1333 + $0x2c] sm:$0xf]
      %v1346 = vld [vmem:[%s1333 + $0x30] sm:$0xf]
      %v1347 = vld [vmem:[%s1333 + $0x34] sm:$0xf]
      %v1348 = vld [vmem:[%s1333 + $0x38] sm:$0xf]
      %v1349 = vld [vmem:[%s1333 + $0x3c] sm:$0xf]
      %v1366 = vunpack.c.l.b16 %v1334
      %v1367 = vunpack.c.l.b16 %v1335
      %v1368 = vunpack.c.l.b16 %v1336
      %v1369 = vunpack.c.l.b16 %v1337
      %v1370 = vunpack.c.l.b16 %v1338
      %v1371 = vunpack.c.l.b16 %v1339
      %v1372 = vunpack.c.l.b16 %v1340
      %v1373 = vunpack.c.l.b16 %v1341
      %v1374 = vunpack.c.l.b16 %v1342
      %v1375 = vunpack.c.l.b16 %v1343
      %v1376 = vunpack.c.l.b16 %v1344
      %v1377 = vunpack.c.l.b16 %v1345
      %v1378 = vunpack.c.l.b16 %v1346
      %v1379 = vunpack.c.l.b16 %v1347
      %v1380 = vunpack.c.l.b16 %v1348
      %v1381 = vunpack.c.l.b16 %v1349
      %v1382 = vpack.c.b16 %v1367, %v1366
      %v1383 = vpack.c.b16 %v1369, %v1368
      %v1384 = vpack.c.b16 %v1371, %v1370
      %v1385 = vpack.c.b16 %v1373, %v1372
      %v1386 = vpack.c.b16 %v1375, %v1374
      %v1387 = vpack.c.b16 %v1377, %v1376
      %v1388 = vpack.c.b16 %v1379, %v1378
      %v1389 = vpack.c.b16 %v1381, %v1380
      %1398 = vmatpush.bf16.msra.mxu0 %v1389
      %1399 = vmatpush.bf16.msra.mxu0 %v1388
      %1400 = vmatpush.bf16.msra.mxu0 %v1387
      %1401 = vmatpush.bf16.msra.mxu0 %v1386
      %1402 = vmatpush.bf16.msra.mxu0 %v1385
      %1403 = vmatpush.bf16.msra.mxu0 %v1384
      %1404 = vmatpush.bf16.msra.mxu0 %v1383
      %1405 = vmatpush.bf16.msra.mxu0 %v1382
      %1406 = vmatmul.bf16.gmra.mxu0 %v917
      %v1407 = vpop.f32.mrf.mxu0
      %v1408 = vadd.f32 0.0, %v1407
      %v1409 = vpop.f32.mrf.mxu0
      %v1410 = vadd.f32 0.0, %v1409
      %1411 = vmatmul.bf16.gmra.mxu0 %v918
      %v1412 = vpop.f32.mrf.mxu0
      %v1413 = vadd.f32 0.0, %v1412
      %v1414 = vpop.f32.mrf.mxu0
      %v1415 = vadd.f32 0.0, %v1414
      %1416 = vmatmul.bf16.gmra.mxu0 %v919
      %v1417 = vpop.f32.mrf.mxu0
      %v1418 = vadd.f32 0.0, %v1417
      %v1419 = vpop.f32.mrf.mxu0
      %v1420 = vadd.f32 0.0, %v1419
      %1421 = vmatmul.bf16.gmra.mxu0 %v920
      %v1422 = vpop.f32.mrf.mxu0
      %v1423 = vadd.f32 0.0, %v1422
      %v1424 = vpop.f32.mrf.mxu0
      %v1425 = vadd.f32 0.0, %v1424
      %1426 = vmatmul.bf16.gmra.mxu0 %v921
      %v1427 = vpop.f32.mrf.mxu0
      %v1428 = vadd.f32 0.0, %v1427
      %v1429 = vpop.f32.mrf.mxu0
      %v1430 = vadd.f32 0.0, %v1429
      %1431 = vmatmul.bf16.gmra.mxu0 %v922
      %v1432 = vpop.f32.mrf.mxu0
      %v1433 = vadd.f32 0.0, %v1432
      %v1434 = vpop.f32.mrf.mxu0
      %v1435 = vadd.f32 0.0, %v1434
      %1436 = vmatmul.bf16.gmra.mxu0 %v923
      %v1437 = vpop.f32.mrf.mxu0
      %v1438 = vadd.f32 0.0, %v1437
      %v1439 = vpop.f32.mrf.mxu0
      %v1440 = vadd.f32 0.0, %v1439
      %1441 = vmatmul.bf16.gmra.mxu0 %v1332
      %v1442 = vpop.f32.mrf.mxu0
      %v1443 = vadd.f32 0.0, %v1442
      %v1444 = vpop.f32.mrf.mxu0
      %v1445 = vadd.f32 0.0, %v1444
      %1446 = vdwg.mxu0
      %v1447 = vadd.f32 %v1313, %v1408
      %v1448 = vadd.f32 %v1314, %v1410
      %v1449 = vadd.f32 %v1315, %v1413
      %v1450 = vadd.f32 %v1316, %v1415
      %v1451 = vadd.f32 %v1317, %v1418
      %v1452 = vadd.f32 %v1318, %v1420
      %v1453 = vadd.f32 %v1319, %v1423
      %v1454 = vadd.f32 %v1320, %v1425
      %v1455 = vadd.f32 %v1321, %v1428
      %v1456 = vadd.f32 %v1322, %v1430
      %v1457 = vadd.f32 %v1323, %v1433
      %v1458 = vadd.f32 %v1324, %v1435
      %v1459 = vadd.f32 %v1325, %v1438
      %v1460 = vadd.f32 %v1326, %v1440
      %v1461 = vadd.f32 %v1327, %v1443
      %v1462 = vadd.f32 %v1328, %v1445
      %v1465 = vunpack.c.l.b16 %v537
      %v1466 = vunpack.c.l.b16 %v538
      %v1467 = vpack.c.b16 %v1466, %v1465
      %v1469 = vshrl.u32 %v1467, 16
      %v1471 = vrot.slane %v1469, 7
      %v1472 = vshll.u32 %v1467, 16
      %v1474 = vor.u32 %v1471, %v1472
      %v1476 = vsel %vm645, 0, %v1474
      %s1477 = scalar_lea.vmem %s1, 384
      %v1478 = vld [vmem:[%s1477] sm:$0xf]
      %v1479 = vld [vmem:[%s1477 + $0x4] sm:$0xf]
      %v1480 = vld [vmem:[%s1477 + $0x8] sm:$0xf]
      %v1481 = vld [vmem:[%s1477 + $0xc] sm:$0xf]
      %v1482 = vld [vmem:[%s1477 + $0x10] sm:$0xf]
      %v1483 = vld [vmem:[%s1477 + $0x14] sm:$0xf]
      %v1484 = vld [vmem:[%s1477 + $0x18] sm:$0xf]
      %v1485 = vld [vmem:[%s1477 + $0x1c] sm:$0xf]
      %v1486 = vld [vmem:[%s1477 + $0x20] sm:$0xf]
      %v1487 = vld [vmem:[%s1477 + $0x24] sm:$0xf]
      %v1488 = vld [vmem:[%s1477 + $0x28] sm:$0xf]
      %v1489 = vld [vmem:[%s1477 + $0x2c] sm:$0xf]
      %v1490 = vld [vmem:[%s1477 + $0x30] sm:$0xf]
      %v1491 = vld [vmem:[%s1477 + $0x34] sm:$0xf]
      %v1492 = vld [vmem:[%s1477 + $0x38] sm:$0xf]
      %v1493 = vld [vmem:[%s1477 + $0x3c] sm:$0xf]
      %v1510 = vunpack.c.l.b16 %v1478
      %v1511 = vunpack.c.l.b16 %v1479
      %v1512 = vunpack.c.l.b16 %v1480
      %v1513 = vunpack.c.l.b16 %v1481
      %v1514 = vunpack.c.l.b16 %v1482
      %v1515 = vunpack.c.l.b16 %v1483
      %v1516 = vunpack.c.l.b16 %v1484
      %v1517 = vunpack.c.l.b16 %v1485
      %v1518 = vunpack.c.l.b16 %v1486
      %v1519 = vunpack.c.l.b16 %v1487
      %v1520 = vunpack.c.l.b16 %v1488
      %v1521 = vunpack.c.l.b16 %v1489
      %v1522 = vunpack.c.l.b16 %v1490
      %v1523 = vunpack.c.l.b16 %v1491
      %v1524 = vunpack.c.l.b16 %v1492
      %v1525 = vunpack.c.l.b16 %v1493
      %v1526 = vpack.c.b16 %v1511, %v1510
      %v1527 = vpack.c.b16 %v1513, %v1512
      %v1528 = vpack.c.b16 %v1515, %v1514
      %v1529 = vpack.c.b16 %v1517, %v1516
      %v1530 = vpack.c.b16 %v1519, %v1518
      %v1531 = vpack.c.b16 %v1521, %v1520
      %v1532 = vpack.c.b16 %v1523, %v1522
      %v1533 = vpack.c.b16 %v1525, %v1524
      %1542 = vmatpush.bf16.msra.mxu0 %v1533
      %1543 = vmatpush.bf16.msra.mxu0 %v1532
      %1544 = vmatpush.bf16.msra.mxu0 %v1531
      %1545 = vmatpush.bf16.msra.mxu0 %v1530
      %1546 = vmatpush.bf16.msra.mxu0 %v1529
      %1547 = vmatpush.bf16.msra.mxu0 %v1528
      %1548 = vmatpush.bf16.msra.mxu0 %v1527
      %1549 = vmatpush.bf16.msra.mxu0 %v1526
      %1550 = vmatmul.bf16.gmra.mxu0 %v648
      %v1551 = vpop.f32.mrf.mxu0
      %v1552 = vadd.f32 0.0, %v1551
      %v1553 = vpop.f32.mrf.mxu0
      %v1554 = vadd.f32 0.0, %v1553
      %1555 = vmatmul.bf16.gmra.mxu0 %v649
      %v1556 = vpop.f32.mrf.mxu0
      %v1557 = vadd.f32 0.0, %v1556
      %v1558 = vpop.f32.mrf.mxu0
      %v1559 = vadd.f32 0.0, %v1558
      %1560 = vmatmul.bf16.gmra.mxu0 %v650
      %v1561 = vpop.f32.mrf.mxu0
      %v1562 = vadd.f32 0.0, %v1561
      %v1563 = vpop.f32.mrf.mxu0
      %v1564 = vadd.f32 0.0, %v1563
      %1565 = vmatmul.bf16.gmra.mxu0 %v651
      %v1566 = vpop.f32.mrf.mxu0
      %v1567 = vadd.f32 0.0, %v1566
      %v1568 = vpop.f32.mrf.mxu0
      %v1569 = vadd.f32 0.0, %v1568
      %1570 = vmatmul.bf16.gmra.mxu0 %v652
      %v1571 = vpop.f32.mrf.mxu0
      %v1572 = vadd.f32 0.0, %v1571
      %v1573 = vpop.f32.mrf.mxu0
      %v1574 = vadd.f32 0.0, %v1573
      %1575 = vmatmul.bf16.gmra.mxu0 %v653
      %v1576 = vpop.f32.mrf.mxu0
      %v1577 = vadd.f32 0.0, %v1576
      %v1578 = vpop.f32.mrf.mxu0
      %v1579 = vadd.f32 0.0, %v1578
      %1580 = vmatmul.bf16.gmra.mxu0 %v1067
      %v1581 = vpop.f32.mrf.mxu0
      %v1582 = vadd.f32 0.0, %v1581
      %v1583 = vpop.f32.mrf.mxu0
      %v1584 = vadd.f32 0.0, %v1583
      %1585 = vmatmul.bf16.gmra.mxu0 %v1476
      %v1586 = vpop.f32.mrf.mxu0
      %v1587 = vadd.f32 0.0, %v1586
      %v1588 = vpop.f32.mrf.mxu0
      %v1589 = vadd.f32 0.0, %v1588
      %1590 = vdwg.mxu0
      %v1591 = vadd.f32 %v1447, %v1552
      %v1592 = vadd.f32 %v1448, %v1554
      %v1593 = vadd.f32 %v1449, %v1557
      %v1594 = vadd.f32 %v1450, %v1559
      %v1595 = vadd.f32 %v1451, %v1562
      %v1596 = vadd.f32 %v1452, %v1564
      %v1597 = vadd.f32 %v1453, %v1567
      %v1598 = vadd.f32 %v1454, %v1569
      %v1599 = vadd.f32 %v1455, %v1572
      %v1600 = vadd.f32 %v1456, %v1574
      %v1601 = vadd.f32 %v1457, %v1577
      %v1602 = vadd.f32 %v1458, %v1579
      %v1603 = vadd.f32 %v1459, %v1582
      %v1604 = vadd.f32 %v1460, %v1584
      %v1605 = vadd.f32 %v1461, %v1587
      %v1606 = vadd.f32 %v1462, %v1589
      %s1607 = scalar_lea.vmem %s1, 448
      %v1608 = vld [vmem:[%s1607] sm:$0xf]
      %v1609 = vld [vmem:[%s1607 + $0x4] sm:$0xf]
      %v1610 = vld [vmem:[%s1607 + $0x8] sm:$0xf]
      %v1611 = vld [vmem:[%s1607 + $0xc] sm:$0xf]
      %v1612 = vld [vmem:[%s1607 + $0x10] sm:$0xf]
      %v1613 = vld [vmem:[%s1607 + $0x14] sm:$0xf]
      %v1614 = vld [vmem:[%s1607 + $0x18] sm:$0xf]
      %v1615 = vld [vmem:[%s1607 + $0x1c] sm:$0xf]
      %v1616 = vld [vmem:[%s1607 + $0x20] sm:$0xf]
      %v1617 = vld [vmem:[%s1607 + $0x24] sm:$0xf]
      %v1618 = vld [vmem:[%s1607 + $0x28] sm:$0xf]
      %v1619 = vld [vmem:[%s1607 + $0x2c] sm:$0xf]
      %v1620 = vld [vmem:[%s1607 + $0x30] sm:$0xf]
      %v1621 = vld [vmem:[%s1607 + $0x34] sm:$0xf]
      %v1622 = vld [vmem:[%s1607 + $0x38] sm:$0xf]
      %v1623 = vld [vmem:[%s1607 + $0x3c] sm:$0xf]
      %v1641 = vunpack.c.l.b16 %v1608
      %v1642 = vunpack.c.l.b16 %v1609
      %v1643 = vunpack.c.l.b16 %v1610
      %v1644 = vunpack.c.l.b16 %v1611
      %v1645 = vunpack.c.l.b16 %v1612
      %v1646 = vunpack.c.l.b16 %v1613
      %v1647 = vunpack.c.l.b16 %v1614
      %v1648 = vunpack.c.l.b16 %v1615
      %v1649 = vunpack.c.l.b16 %v1616
      %v1650 = vunpack.c.l.b16 %v1617
      %v1651 = vunpack.c.l.b16 %v1618
      %v1652 = vunpack.c.l.b16 %v1619
      %v1653 = vunpack.c.l.b16 %v1620
      %v1654 = vunpack.c.l.b16 %v1621
      %v1655 = vunpack.c.l.b16 %v1622
      %v1656 = vunpack.c.l.b16 %v1623
      %v1657 = vpack.c.b16 %v1642, %v1641
      %v1658 = vpack.c.b16 %v1644, %v1643
      %v1659 = vpack.c.b16 %v1646, %v1645
      %v1660 = vpack.c.b16 %v1648, %v1647
      %v1661 = vpack.c.b16 %v1650, %v1649
      %v1662 = vpack.c.b16 %v1652, %v1651
      %v1663 = vpack.c.b16 %v1654, %v1653
      %v1664 = vpack.c.b16 %v1656, %v1655
      %1673 = vmatpush.bf16.msra.mxu0 %v1664
      %1674 = vmatpush.bf16.msra.mxu0 %v1663
      %1675 = vmatpush.bf16.msra.mxu0 %v1662
      %1676 = vmatpush.bf16.msra.mxu0 %v1661
      %1677 = vmatpush.bf16.msra.mxu0 %v1660
      %1678 = vmatpush.bf16.msra.mxu0 %v1659
      %1679 = vmatpush.bf16.msra.mxu0 %v1658
      %1680 = vmatpush.bf16.msra.mxu0 %v1657
      %1681 = vmatmul.bf16.gmra.mxu0 %v573
      %v1682 = vpop.f32.mrf.mxu0
      %v1683 = vadd.f32 0.0, %v1682
      %v1684 = vpop.f32.mrf.mxu0
      %v1685 = vadd.f32 0.0, %v1684
      %1686 = vmatmul.bf16.gmra.mxu0 %v574
      %v1687 = vpop.f32.mrf.mxu0
      %v1688 = vadd.f32 0.0, %v1687
      %v1689 = vpop.f32.mrf.mxu0
      %v1690 = vadd.f32 0.0, %v1689
      %1691 = vmatmul.bf16.gmra.mxu0 %v575
      %v1692 = vpop.f32.mrf.mxu0
      %v1693 = vadd.f32 0.0, %v1692
      %v1694 = vpop.f32.mrf.mxu0
      %v1695 = vadd.f32 0.0, %v1694
      %1696 = vmatmul.bf16.gmra.mxu0 %v576
      %v1697 = vpop.f32.mrf.mxu0
      %v1698 = vadd.f32 0.0, %v1697
      %v1699 = vpop.f32.mrf.mxu0
      %v1700 = vadd.f32 0.0, %v1699
      %1701 = vmatmul.bf16.gmra.mxu0 %v577
      %v1702 = vpop.f32.mrf.mxu0
      %v1703 = vadd.f32 0.0, %v1702
      %v1704 = vpop.f32.mrf.mxu0
      %v1705 = vadd.f32 0.0, %v1704
      %1706 = vmatmul.bf16.gmra.mxu0 %v578
      %v1707 = vpop.f32.mrf.mxu0
      %v1708 = vadd.f32 0.0, %v1707
      %v1709 = vpop.f32.mrf.mxu0
      %v1710 = vadd.f32 0.0, %v1709
      %1711 = vmatmul.bf16.gmra.mxu0 %v1058
      %v1712 = vpop.f32.mrf.mxu0
      %v1713 = vadd.f32 0.0, %v1712
      %v1714 = vpop.f32.mrf.mxu0
      %v1715 = vadd.f32 0.0, %v1714
      %1716 = vmatmul.bf16.gmra.mxu0 %v1467
      %v1717 = vpop.f32.mrf.mxu0
      %v1718 = vadd.f32 0.0, %v1717
      %v1719 = vpop.f32.mrf.mxu0
      %v1720 = vadd.f32 0.0, %v1719
      %1721 = vdwg.mxu0
      %v1722 = vadd.f32 %v1591, %v1683
      %v1723 = vadd.f32 %v1592, %v1685
      %v1724 = vadd.f32 %v1593, %v1688
      %v1725 = vadd.f32 %v1594, %v1690
      %v1726 = vadd.f32 %v1595, %v1693
      %v1727 = vadd.f32 %v1596, %v1695
      %v1728 = vadd.f32 %v1597, %v1698
      %v1729 = vadd.f32 %v1598, %v1700
      %v1730 = vadd.f32 %v1599, %v1703
      %v1731 = vadd.f32 %v1600, %v1705
      %v1732 = vadd.f32 %v1601, %v1708
      %v1733 = vadd.f32 %v1602, %v1710
      %v1734 = vadd.f32 %v1603, %v1713
      %v1735 = vadd.f32 %v1604, %v1715
      %v1736 = vadd.f32 %v1605, %v1718
      %v1737 = vadd.f32 %v1606, %v1720
      %v1738 = vrot.slane %v1472, 1
      %v1739 = vor.u32 %v1469, %v1738
      %v1741 = vsel %vm915, %v1739, 0
      %s1742 = scalar_lea.vmem %s1, 512
      %v1743 = vld [vmem:[%s1742] sm:$0xf]
      %v1744 = vld [vmem:[%s1742 + $0x4] sm:$0xf]
      %v1745 = vld [vmem:[%s1742 + $0x8] sm:$0xf]
      %v1746 = vld [vmem:[%s1742 + $0xc] sm:$0xf]
      %v1747 = vld [vmem:[%s1742 + $0x10] sm:$0xf]
      %v1748 = vld [vmem:[%s1742 + $0x14] sm:$0xf]
      %v1749 = vld [vmem:[%s1742 + $0x18] sm:$0xf]
      %v1750 = vld [vmem:[%s1742 + $0x1c] sm:$0xf]
      %v1751 = vld [vmem:[%s1742 + $0x20] sm:$0xf]
      %v1752 = vld [vmem:[%s1742 + $0x24] sm:$0xf]
      %v1753 = vld [vmem:[%s1742 + $0x28] sm:$0xf]
      %v1754 = vld [vmem:[%s1742 + $0x2c] sm:$0xf]
      %v1755 = vld [vmem:[%s1742 + $0x30] sm:$0xf]
      %v1756 = vld [vmem:[%s1742 + $0x34] sm:$0xf]
      %v1757 = vld [vmem:[%s1742 + $0x38] sm:$0xf]
      %v1758 = vld [vmem:[%s1742 + $0x3c] sm:$0xf]
      %v1775 = vunpack.c.l.b16 %v1743
      %v1776 = vunpack.c.l.b16 %v1744
      %v1777 = vunpack.c.l.b16 %v1745
      %v1778 = vunpack.c.l.b16 %v1746
      %v1779 = vunpack.c.l.b16 %v1747
      %v1780 = vunpack.c.l.b16 %v1748
      %v1781 = vunpack.c.l.b16 %v1749
      %v1782 = vunpack.c.l.b16 %v1750
      %v1783 = vunpack.c.l.b16 %v1751
      %v1784 = vunpack.c.l.b16 %v1752
      %v1785 = vunpack.c.l.b16 %v1753
      %v1786 = vunpack.c.l.b16 %v1754
      %v1787 = vunpack.c.l.b16 %v1755
      %v1788 = vunpack.c.l.b16 %v1756
      %v1789 = vunpack.c.l.b16 %v1757
      %v1790 = vunpack.c.l.b16 %v1758
      %v1791 = vpack.c.b16 %v1776, %v1775
      %v1792 = vpack.c.b16 %v1778, %v1777
      %v1793 = vpack.c.b16 %v1780, %v1779
      %v1794 = vpack.c.b16 %v1782, %v1781
      %v1795 = vpack.c.b16 %v1784, %v1783
      %v1796 = vpack.c.b16 %v1786, %v1785
      %v1797 = vpack.c.b16 %v1788, %v1787
      %v1798 = vpack.c.b16 %v1790, %v1789
      %1807 = vmatpush.bf16.msra.mxu0 %v1798
      %1808 = vmatpush.bf16.msra.mxu0 %v1797
      %1809 = vmatpush.bf16.msra.mxu0 %v1796
      %1810 = vmatpush.bf16.msra.mxu0 %v1795
      %1811 = vmatpush.bf16.msra.mxu0 %v1794
      %1812 = vmatpush.bf16.msra.mxu0 %v1793
      %1813 = vmatpush.bf16.msra.mxu0 %v1792
      %1814 = vmatpush.bf16.msra.mxu0 %v1791
      %1815 = vmatmul.bf16.gmra.mxu0 %v918
      %v1816 = vpop.f32.mrf.mxu0
      %v1817 = vadd.f32 0.0, %v1816
      %v1818 = vpop.f32.mrf.mxu0
      %v1819 = vadd.f32 0.0, %v1818
      %1820 = vmatmul.bf16.gmra.mxu0 %v919
      %v1821 = vpop.f32.mrf.mxu0
      %v1822 = vadd.f32 0.0, %v1821
      %v1823 = vpop.f32.mrf.mxu0
      %v1824 = vadd.f32 0.0, %v1823
      %1825 = vmatmul.bf16.gmra.mxu0 %v920
      %v1826 = vpop.f32.mrf.mxu0
      %v1827 = vadd.f32 0.0, %v1826
      %v1828 = vpop.f32.mrf.mxu0
      %v1829 = vadd.f32 0.0, %v1828
      %1830 = vmatmul.bf16.gmra.mxu0 %v921
      %v1831 = vpop.f32.mrf.mxu0
      %v1832 = vadd.f32 0.0, %v1831
      %v1833 = vpop.f32.mrf.mxu0
      %v1834 = vadd.f32 0.0, %v1833
      %1835 = vmatmul.bf16.gmra.mxu0 %v922
      %v1836 = vpop.f32.mrf.mxu0
      %v1837 = vadd.f32 0.0, %v1836
      %v1838 = vpop.f32.mrf.mxu0
      %v1839 = vadd.f32 0.0, %v1838
      %1840 = vmatmul.bf16.gmra.mxu0 %v923
      %v1841 = vpop.f32.mrf.mxu0
      %v1842 = vadd.f32 0.0, %v1841
      %v1843 = vpop.f32.mrf.mxu0
      %v1844 = vadd.f32 0.0, %v1843
      %1845 = vmatmul.bf16.gmra.mxu0 %v1332
      %v1846 = vpop.f32.mrf.mxu0
      %v1847 = vadd.f32 0.0, %v1846
      %v1848 = vpop.f32.mrf.mxu0
      %v1849 = vadd.f32 0.0, %v1848
      %1850 = vmatmul.bf16.gmra.mxu0 %v1741
      %v1851 = vpop.f32.mrf.mxu0
      %v1852 = vadd.f32 0.0, %v1851
      %v1853 = vpop.f32.mrf.mxu0
      %v1854 = vadd.f32 0.0, %v1853
      %1855 = vdwg.mxu0
      %v1856 = vadd.f32 %v1722, %v1817
      %v1857 = vadd.f32 %v1723, %v1819
      %v1858 = vadd.f32 %v1724, %v1822
      %v1859 = vadd.f32 %v1725, %v1824
      %v1860 = vadd.f32 %v1726, %v1827
      %v1861 = vadd.f32 %v1727, %v1829
      %v1862 = vadd.f32 %v1728, %v1832
      %v1863 = vadd.f32 %v1729, %v1834
      %v1864 = vadd.f32 %v1730, %v1837
      %v1865 = vadd.f32 %v1731, %v1839
      %v1866 = vadd.f32 %v1732, %v1842
      %v1867 = vadd.f32 %v1733, %v1844
      %v1868 = vadd.f32 %v1734, %v1847
      %v1869 = vadd.f32 %v1735, %v1849
      %v1870 = vadd.f32 %v1736, %v1852
      %v1871 = vadd.f32 %v1737, %v1854
      %v1872 = vpack.c.bf16 %v1856, %v1856
      %v1873 = vpack.c.bf16 %v1857, %v1857
      %v1874 = vpack.c.bf16 %v1858, %v1858
      %v1875 = vpack.c.bf16 %v1859, %v1859
      %v1876 = vpack.c.bf16 %v1860, %v1860
      %v1877 = vpack.c.bf16 %v1861, %v1861
      %v1878 = vpack.c.bf16 %v1862, %v1862
      %v1879 = vpack.c.bf16 %v1863, %v1863
      %v1880 = vpack.c.bf16 %v1864, %v1864
      %v1881 = vpack.c.bf16 %v1865, %v1865
      %v1882 = vpack.c.bf16 %v1866, %v1866
      %v1883 = vpack.c.bf16 %v1867, %v1867
      %v1884 = vpack.c.bf16 %v1868, %v1868
      %v1885 = vpack.c.bf16 %v1869, %v1869
      %v1886 = vpack.c.bf16 %v1870, %v1870
      %v1887 = vpack.c.bf16 %v1871, %v1871
      %1888 = vst [vmem:[%s298] sm:$0xf] %v1872
      %1889 = vst [vmem:[%s298 + $0x4] sm:$0xf] %v1873
      %1890 = vst [vmem:[%s298 + $0x8] sm:$0xf] %v1874
      %1891 = vst [vmem:[%s298 + $0xc] sm:$0xf] %v1875
      %1892 = vst [vmem:[%s298 + $0x10] sm:$0xf] %v1876
      %1893 = vst [vmem:[%s298 + $0x14] sm:$0xf] %v1877
      %1894 = vst [vmem:[%s298 + $0x18] sm:$0xf] %v1878
      %1895 = vst [vmem:[%s298 + $0x1c] sm:$0xf] %v1879
      %1896 = vst [vmem:[%s298 + $0x20] sm:$0xf] %v1880
      %1897 = vst [vmem:[%s298 + $0x24] sm:$0xf] %v1881
      %1898 = vst [vmem:[%s298 + $0x28] sm:$0xf] %v1882
      %1899 = vst [vmem:[%s298 + $0x2c] sm:$0xf] %v1883
      %1900 = vst [vmem:[%s298 + $0x30] sm:$0xf] %v1884
      %1901 = vst [vmem:[%s298 + $0x34] sm:$0xf] %v1885
      %1902 = vst [vmem:[%s298 + $0x38] sm:$0xf] %v1886
      %1903 = vst [vmem:[%s298 + $0x3c] sm:$0xf] %v1887
      %v1904 = vadd.f32 %v1856, %v1857
      %v1905 = vadd.f32 %v1904, %v1858
      %v1906 = vadd.f32 %v1905, %v1859
      %v1907 = vadd.f32 %v1906, %v1860
      %v1908 = vadd.f32 %v1907, %v1861
      %v1909 = vadd.f32 %v1908, %v1862
      %v1910 = vadd.f32 %v1909, %v1863
      %v1911 = vadd.f32 %v1910, %v1864
      %v1912 = vadd.f32 %v1911, %v1865
      %v1913 = vadd.f32 %v1912, %v1866
      %v1914 = vadd.f32 %v1913, %v1867
      %v1915 = vadd.f32 %v1914, %v1868
      %v1916 = vadd.f32 %v1915, %v1869
      %v1917 = vadd.f32 %v1916, %v1870
      %v1918 = vadd.f32 %v1917, %v1871
      %v1919 = vrot.slane %v1918, 4
      %v1920 = vadd.f32 %v1918, %v1919
      %v1921 = vrot.slane %v1920, 2
      %v1922 = vadd.f32 %v1920, %v1921
      %v1923 = vrot.slane %v1922, 1
      %v1924 = vadd.f32 %v1922, %v1923
      %1925 = vst [vmem:[%s306] sm:$0x1] %v1924
      %v1926 = vmul.f32 %v1856, %v1856
      %v1927 = vmul.f32 %v1857, %v1857
      %v1928 = vmul.f32 %v1858, %v1858
      %v1929 = vmul.f32 %v1859, %v1859
      %v1930 = vmul.f32 %v1860, %v1860
      %v1931 = vmul.f32 %v1861, %v1861
      %v1932 = vmul.f32 %v1862, %v1862
      %v1933 = vmul.f32 %v1863, %v1863
      %v1934 = vmul.f32 %v1864, %v1864
      %v1935 = vmul.f32 %v1865, %v1865
      %v1936 = vmul.f32 %v1866, %v1866
      %v1937 = vmul.f32 %v1867, %v1867
      %v1938 = vmul.f32 %v1868, %v1868
      %v1939 = vmul.f32 %v1869, %v1869
      %v1940 = vmul.f32 %v1870, %v1870
      %v1941 = vmul.f32 %v1871, %v1871
      %v1942 = vadd.f32 %v1926, %v1927
      %v1943 = vadd.f32 %v1942, %v1928
      %v1944 = vadd.f32 %v1943, %v1929
      %v1945 = vadd.f32 %v1944, %v1930
      %v1946 = vadd.f32 %v1945, %v1931
      %v1947 = vadd.f32 %v1946, %v1932
      %v1948 = vadd.f32 %v1947, %v1933
      %v1949 = vadd.f32 %v1948, %v1934
      %v1950 = vadd.f32 %v1949, %v1935
      %v1951 = vadd.f32 %v1950, %v1936
      %v1952 = vadd.f32 %v1951, %v1937
      %v1953 = vadd.f32 %v1952, %v1938
      %v1954 = vadd.f32 %v1953, %v1939
      %v1955 = vadd.f32 %v1954, %v1940
      %v1956 = vadd.f32 %v1955, %v1941
      %v1957 = vrot.slane %v1956, 4
      %v1958 = vadd.f32 %v1956, %v1957
      %v1959 = vrot.slane %v1958, 2
      %v1960 = vadd.f32 %v1958, %v1959
      %v1961 = vrot.slane %v1960, 1
      %v1962 = vadd.f32 %v1960, %v1961
      %1963 = vst [vmem:[%s313] sm:$0x1] %v1962
      %s1964 = smul.u32 8, %s23
      %p1965 = scmp.lt.s32.totalorder %s22, 1
      %s1966 = scalar_select %p1965, %s22, 1
      %p1967 = scmp.lt.s32.totalorder %s1964, 15
      %s1968 = scalar_select %p1967, %s1964, 15
      %s1969 = smul.addr %s1968, 2
      %s1970 = smul.addr %s1966, 32
      %s1971 = sadd.s32 %s1969, %s1970
      %s1972 = smul.addr %s1971, 4
      %s1973 = scalar_lea.vmem %s4, %s1972
      %p1974 = scmp.lt.s32.totalorder %s22, 1
      %s1975 = scalar_select %p1974, %s22, 1
      %p1976 = scmp.lt.s32.totalorder %s23, 1
      %s1977 = scalar_select %p1976, %s23, 1
      %s1978 = smul.addr %s1975, 2
      %s1979 = sadd.s32 %s1977, %s1978
      %s1980 = scalar_lea.vmem %s5, %s1979
      %p1981 = scmp.lt.s32.totalorder %s22, 1
      %s1982 = scalar_select %p1981, %s22, 1
      %p1983 = scmp.lt.s32.totalorder %s23, 1
      %s1984 = scalar_select %p1983, %s23, 1
      %s1985 = smul.addr %s1982, 2
      %s1986 = sadd.s32 %s1984, %s1985
      %s1987 = scalar_lea.vmem %s6, %s1986
      // Predicated region
      $region37: #{residual_block_forward.4} parent=35 // pred_check
        %p1988 = pneg %p139
      $region38: #{residual_block_forward.4} parent=35 // pred_check_branch
        %1990 = sbr.rel (%p1988) target = $region40
      $region39: #{residual_block_forward.4} parent=35 // pred_region
        %s1991 = smul.u32 8, %s23
      $region40: #{residual_block_forward.4} parent=35 // pred_fallthru
        _
      // Predicated region
      $region41: #{residual_block_forward.4} parent=35 // pred_check
        %p1992 = pneg %p167
      $region42: #{residual_block_forward.4} parent=35 // pred_check_branch
        %1994 = sbr.rel (%p1992) target = $region44
      $region43: #{residual_block_forward.4} parent=35 // pred_region
        _
      $region44: #{residual_block_forward.4} parent=35 // pred_fallthru
        _
      // Predicated region
      $region45: #{residual_block_forward.4} parent=35 // pred_check
        %p1995 = pneg %p195
      $region46: #{residual_block_forward.4} parent=35 // pred_check_branch
        %1997 = sbr.rel (%p1995) target = $region48
      $region47: #{residual_block_forward.4} parent=35 // pred_region
        _
      $region48: #{residual_block_forward.4} parent=35 // pred_fallthru
        _
    $region36: #{residual_block_forward.4} parent=5 // pred_fallthru
      _
    %p1998 = scmp.le.s32.totalorder 2, %s13
    // Predicated region
    $region49: #{residual_block_forward.4} parent=5 // pred_check
      %p1999 = pneg %p1998
    $region50: #{residual_block_forward.4} parent=5 // pred_check_branch
      %2001 = sbr.rel (%p1999) target = $region52
    $region51: #{residual_block_forward.4} parent=5 // pred_region
      %s2002 = ssub.s32 %s13, 2
      // Predicated region
      $region53: #{residual_block_forward.4} parent=51 // pred_check
        %p2003 = pneg %p145
      $region54: #{residual_block_forward.4} parent=51 // pred_check_branch
        %2005 = sbr.rel (%p2003) target = $region56
      $region55: #{residual_block_forward.4} parent=51 // pred_region
        %s2006 = smul.u32 8, %s25
        %p2007 = scmp.lt.s32.totalorder %s24, 1
        %s2008 = scalar_select %p2007, %s24, 1
        %p2009 = scmp.lt.s32.totalorder %s2006, 15
        %s2010 = scalar_select %p2009, %s2006, 15
        %s2011 = smul.addr %s2010, 2
        %s2012 = smul.addr %s2008, 32
        %s2013 = sadd.s32 %s2011, %s2012
        %s2014 = smul.addr %s2013, 4
        %s2015 = scalar_lea.vmem %s4, %s2014
      $region56: #{residual_block_forward.4} parent=51 // pred_fallthru
        _
      // Predicated region
      $region57: #{residual_block_forward.4} parent=51 // pred_check
        %p2016 = pneg %p173
      $region58: #{residual_block_forward.4} parent=51 // pred_check_branch
        %2018 = sbr.rel (%p2016) target = $region60
      $region59: #{residual_block_forward.4} parent=51 // pred_region
        %p2019 = scmp.lt.s32.totalorder %s24, 1
        %s2020 = scalar_select %p2019, %s24, 1
        %p2021 = scmp.lt.s32.totalorder %s25, 1
        %s2022 = scalar_select %p2021, %s25, 1
        %s2023 = smul.addr %s2020, 2
        %s2024 = sadd.s32 %s2022, %s2023
        %s2025 = scalar_lea.vmem %s5, %s2024
      $region60: #{residual_block_forward.4} parent=51 // pred_fallthru
        _
      // Predicated region
      $region61: #{residual_block_forward.4} parent=51 // pred_check
        %p2026 = pneg %p201
      $region62: #{residual_block_forward.4} parent=51 // pred_check_branch
        %2028 = sbr.rel (%p2026) target = $region64
      $region63: #{residual_block_forward.4} parent=51 // pred_region
        %p2029 = scmp.lt.s32.totalorder %s24, 1
        %s2030 = scalar_select %p2029, %s24, 1
        %p2031 = scmp.lt.s32.totalorder %s25, 1
        %s2032 = scalar_select %p2031, %s25, 1
        %s2033 = smul.addr %s2030, 2
        %s2034 = sadd.s32 %s2032, %s2033
        %s2035 = scalar_lea.vmem %s6, %s2034
      $region64: #{residual_block_forward.4} parent=51 // pred_fallthru
        _
    $region52: #{residual_block_forward.4} parent=5 // pred_fallthru
      _
  $region6: #{residual_block_forward.4} parent=0 // loop_footer
    %s17 = sadd.s32 1, %s13
  $region7: #{residual_block_forward.4} parent=0 // loop_footer_branch
    %12 = sbr.rel target = $region3
  $region8: #{residual_block_forward.4} parent=0 // loop_exit
    _

</llo_original>
